<compile_context>
chip_gen: v7x
topology: tpu7x:2x2x1
jax: 0.10.0
libtpu: 0.0.40
codegen_flags: <defaults>
</compile_context>

<pallas_src>
import functools

import jax
import jax.numpy as jnp
from jax.experimental import pallas as pl
from jax.experimental.pallas import tpu as pltpu

HIDDEN = 2000
LATENT = 30
INNER = 40
DIV = 4
H2_DIV = 4

LANE = 128   # lane width  (last-dim alignment)
SUB = 8      # sublane width (second-to-last alignment)


def _ru(x, m):
    return ((x + m - 1) // m) * m


def _pick_tile(d):
    for c in (512, 256, 128):
        if d % c == 0:
            return c
    return 128


# ---------------------------------------------------------------------------
# Tiled fused linear kernel:  out = act( scale * (x @ W + b) )
# ---------------------------------------------------------------------------
def _linear_kernel(scale_ref, x_ref, w_ref, b_ref, o_ref, acc_ref, *, act):
    k = pl.program_id(2)

    @pl.when(k == 0)
    def _init():
        acc_ref[...] = jnp.zeros_like(acc_ref)

    acc_ref[...] += jnp.dot(x_ref[...], w_ref[...],
                            preferred_element_type=jnp.float32)

    @pl.when(k == pl.num_programs(2) - 1)
    def _finalize():
        y = (acc_ref[...] + b_ref[...]) * scale_ref[0]
        if act == "relu":
            y = jnp.maximum(y, 0.0)
        elif act == "sigmoid":
            y = jax.nn.sigmoid(y)
        o_ref[...] = y.astype(o_ref.dtype)


def pallas_linear(x, w, b=None, act="none", scale=None):
    """Fused tiled linear: act(scale * (x @ w + b)).  x:(M,K) w:(K,N) -> (M,N)."""
    M, K = x.shape
    K2, N = w.shape
    assert K == K2, (K, K2)

    if M <= 256:
        M_pad = _ru(M, SUB)
        tm = M_pad
    else:
        M_pad = _ru(M, 256)
        tm = 256
    K_pad = _ru(K, LANE)
    N_pad = _ru(N, LANE)
    tk = _pick_tile(K_pad)
    tn = _pick_tile(N_pad)

    # bf16 operands for the MXU; padded regions are zero (correctness-neutral).
    x_p = jnp.pad(x.astype(jnp.bfloat16), ((0, M_pad - M), (0, K_pad - K)))
    w_p = jnp.pad(w.astype(jnp.bfloat16), ((0, K_pad - K), (0, N_pad - N)))
    if b is None:
        b_p = jnp.zeros((1, N_pad), jnp.float32)
    else:
        b_p = jnp.pad(jnp.asarray(b, jnp.float32).reshape(1, N),
                      ((0, 0), (0, N_pad - N)))
    if scale is None:
        scale_arr = jnp.ones((1,), jnp.float32)
    else:
        scale_arr = jnp.asarray(scale, jnp.float32).reshape(1)

    grid = (M_pad // tm, N_pad // tn, K_pad // tk)
    out = pl.pallas_call(
        functools.partial(_linear_kernel, act=act),
        out_shape=jax.ShapeDtypeStruct((M_pad, N_pad), jnp.float32),
        grid=grid,
        in_specs=[
            pl.BlockSpec(memory_space=pltpu.MemorySpace.SMEM),      # scale scalar
            pl.BlockSpec((tm, tk), lambda i, j, k: (i, k)),         # x tile
            pl.BlockSpec((tk, tn), lambda i, j, k: (k, j)),         # w tile
            pl.BlockSpec((1, tn), lambda i, j, k: (0, j)),          # bias tile
        ],
        out_specs=pl.BlockSpec((tm, tn), lambda i, j, k: (i, j)),
        scratch_shapes=[pltpu.VMEM((tm, tn), jnp.float32)],
        compiler_params=pltpu.CompilerParams(
            dimension_semantics=("parallel", "parallel", "arbitrary"),
            vmem_limit_bytes=32 * 1024 * 1024,
        ),
    )(scale_arr, x_p, w_p, b_p)
    return out[:M, :N]


# ---------------------------------------------------------------------------
# log_softmax over the alphabet axis (dim=1 of (B, A, L)); tiny tensor.
# ---------------------------------------------------------------------------
def _log_softmax_axis1_kernel(x_ref, o_ref):
    x = x_ref[...]
    m = jnp.max(x, axis=1, keepdims=True)
    lse = jnp.log(jnp.sum(jnp.exp(x - m), axis=1, keepdims=True)) + m
    o_ref[...] = (x - lse).astype(o_ref.dtype)


def pallas_log_softmax_axis1(x):
    B, A, L = x.shape
    return pl.pallas_call(
        _log_softmax_axis1_kernel,
        out_shape=jax.ShapeDtypeStruct((B, A, L), jnp.float32),
        grid=(1,),
        in_specs=[pl.BlockSpec((B, A, L), lambda i: (0, 0, 0))],
        out_specs=pl.BlockSpec((B, A, L), lambda i: (0, 0, 0)),
    )(x.astype(jnp.float32))


# ---------------------------------------------------------------------------
# Parameter init (mirrors module __init__); deterministic weights stored
# pre-padded to (K_pad, N_pad) in bf16, biases as (1, N_pad) in f32.
# ---------------------------------------------------------------------------
def init_params(key, alphabet_size, seq_len):
    h1 = int(HIDDEN * 3 / 4)        # 1500
    h2 = HIDDEN // H2_DIV           # 500
    h3 = HIDDEN // 4                # 500
    input_size = alphabet_size * seq_len

    h1p = _ru(h1, LANE)             # 1536
    h2p = _ru(h2, LANE)             # 512
    h3p = _ru(h3, LANE)             # 512
    inp = _ru(input_size, LANE)
    latp = _ru(2 * LATENT, LANE)    # 128
    lat_in_p = _ru(LATENT, LANE)    # 128

    keys = jax.random.split(key, 10)

    def xavier(k, fi, fo):
        std = (2.0 / (fi + fo)) ** 0.5
        return std * jax.random.normal(k, (fi, fo), jnp.float32)

    def pad_w(wm, rp, cp):
        return jnp.pad(wm, ((0, rp - wm.shape[0]), (0, cp - wm.shape[1]))
                       ).astype(jnp.bfloat16)

    def pad_b(bv, cp):
        bv = jnp.asarray(bv, jnp.float32)
        return jnp.pad(bv, (0, cp - bv.shape[0])).reshape(1, cp)

    p = {}
    p["fc1_w"] = pad_w(xavier(keys[0], input_size, h1), inp, h1p)
    p["fc1_b"] = pad_b(0.1 * jnp.ones((h1,), jnp.float32), h1p)
    p["fc1h_w"] = pad_w(xavier(keys[1], h1, h1), h1p, h1p)
    p["fc1h_b"] = pad_b(0.1 * jnp.ones((h1,), jnp.float32), h1p)

    # fc21 | fc22 fused into one lane-padded matmul.
    w21 = xavier(keys[2], h1, LATENT)
    w22 = xavier(keys[3], h1, LATENT)
    p["fc2122_w"] = pad_w(jnp.concatenate([w21, w22], axis=1), h1p, latp)
    b2122 = jnp.concatenate([0.1 * jnp.ones((LATENT,), jnp.float32),
                             -5.0 * jnp.ones((LATENT,), jnp.float32)])  # fc22.bias=-5
    p["fc2122_b"] = pad_b(b2122, latp)

    p["fc3_w"] = pad_w(xavier(keys[4], LATENT, h3), lat_in_p, h3p)
    p["fc3_b"] = pad_b(0.1 * jnp.ones((h3,), jnp.float32), h3p)
    p["fc3h_w"] = pad_w(xavier(keys[5], h3, h2), h3p, h2p)
    p["fc3h_b"] = pad_b(0.1 * jnp.ones((h2,), jnp.float32), h2p)

    # Bayesian (variational) layers in torch orientation (out_features, in_features).
    def var_layer(k, out_f, in_f):
        std = (2.0 / (out_f + in_f)) ** 0.5
        mu = std * jax.random.normal(k, (out_f, in_f), jnp.float32)
        logvar = -5.0 * jnp.ones((out_f, in_f), jnp.float32)
        return mu, logvar

    p["W_mu"], p["W_logvar"] = var_layer(keys[6], h2 * seq_len, INNER)
    p["C_mu"], p["C_logvar"] = var_layer(keys[7], INNER, alphabet_size)
    p["S_mu"], p["S_logvar"] = var_layer(keys[8], h2 // DIV, seq_len)

    p["lamb_mu"] = jnp.array([1.0], jnp.float32)
    p["lamb_logvar"] = jnp.array([-5.0], jnp.float32)
    p["Wob_mu"] = 0.1 * jnp.ones((input_size,), jnp.float32)
    p["Wob_logvar"] = -5.0 * jnp.ones((input_size,), jnp.float32)
    return p


# ---------------------------------------------------------------------------
# Forward pass
# ---------------------------------------------------------------------------
def _rsample(key, mu, logvar):
    return mu + jnp.exp(0.5 * logvar) * jax.random.normal(key, mu.shape, mu.dtype)


@functools.partial(jax.jit, static_argnames=("alphabet_size", "seq_len", "rep"))
def vae_forward(params, x, key, alphabet_size, seq_len, rep=True):
    A, L = alphabet_size, seq_len
    B = x.shape[0]
    h2 = HIDDEN // H2_DIV
    h2p = _ru(h2, LANE)
    AL = A * L
    ALp = _ru(AL, LANE)
    Bp = _ru(B, SUB)

    # Flatten one-hot input exactly like torch x.view(-1, A*L); pad batch/lanes.
    x_flat = x.reshape(B, AL).astype(jnp.float32)
    x_p = jnp.pad(x_flat, ((0, Bp - B), (0, ALp - AL)))

    # --- encoder (all padded; activations stay (Bp, *_pad)) ---
    h = pallas_linear(x_p, params["fc1_w"], params["fc1_b"], act="relu")
    h = pallas_linear(h, params["fc1h_w"], params["fc1h_b"], act="relu")
    enc = pallas_linear(h, params["fc2122_w"], params["fc2122_b"])   # fused fc21|fc22
    mu = enc[:B, :LATENT]
    logvar = enc[:B, LATENT:2 * LATENT]

    k_z, k_w, k_c, k_s, k_l, k_b = jax.random.split(key, 6)
    z = _rsample(k_z, mu, logvar) if rep else mu
    z_p = jnp.pad(z, ((0, Bp - B), (0, _ru(LATENT, LANE) - LATENT)))

    # --- decoder ---
    hd = pallas_linear(z_p, params["fc3_w"], params["fc3_b"], act="relu")
    hd = pallas_linear(hd, params["fc3h_w"], params["fc3h_b"], act="sigmoid")

    # Sample Bayesian decoder weights (reparameterization; plain-JAX glue).
    W = _rsample(k_w, params["W_mu"], params["W_logvar"])        # (h2*L, INNER)
    C = _rsample(k_c, params["C_mu"], params["C_logvar"])        # (INNER, A)
    S = _rsample(k_s, params["S_mu"], params["S_logvar"])        # (h2//DIV, L)
    lamb = _rsample(k_l, params["lamb_mu"], params["lamb_logvar"])   # (1,)
    b_out = _rsample(k_b, params["Wob_mu"], params["Wob_logvar"])    # (A*L,)

    S = jax.nn.sigmoid(jnp.tile(S, (DIV, 1)))        # torch .repeat(div,1) -> (h2, L)

    # torch.mm(W, C) on the MXU with the alphabet axis padded to a full lane tile.
    WC = pallas_linear(W, C)                         # (h2*L, A)
    # Row-major reshape == torch .view(h2, A, L); S scale kept in JAX glue so the
    # element mapping is exactly the reference's.
    W_out = WC.reshape(h2, A, L) * S[:, None, :]
    W_out = W_out.reshape(h2, AL)
    W_out = jnp.pad(W_out, ((0, h2p - h2), (0, ALp - AL)))        # zero-pad K rows / N cols

    # (1 + lamb.exp()).log() == softplus(lamb), computed stably; fused in-kernel
    # as an SMEM scalar scale on the recon matmul.
    scale = jax.nn.softplus(lamb)

    recon = pallas_linear(hd, W_out, jnp.pad(b_out, (0, ALp - AL)), scale=scale)
    recon = recon[:B, :AL].reshape(B, A, L)
    logits = pallas_log_softmax_axis1(recon)         # log_softmax over alphabet (dim=1)
    return logits, mu, logvar


# ---------------------------------------------------------------------------
if __name__ == "__main__":
    alphabet_size, seq_len, batch = 8, 16, 2

    key = jax.random.PRNGKey(0)
    k_params, k_data, k_fwd = jax.random.split(key, 3)

    params = init_params(k_params, alphabet_size, seq_len)

    # One-hot sequence input, shape (B, alphabet_size, seq_len), like the torch model.
    idx = jax.random.randint(k_data, (batch, seq_len), 0, alphabet_size)
    x = jax.nn.one_hot(idx, alphabet_size, axis=1).astype(jnp.float32)

    logits, mu, logvar = vae_forward(
        params, x, k_fwd, alphabet_size=alphabet_size, seq_len=seq_len, rep=True
    )
    jax.block_until_ready((logits, mu, logvar))

    assert logits.shape == (batch, alphabet_size, seq_len)
    assert mu.shape == (batch, LATENT) and logvar.shape == (batch, LATENT)
    # log_softmax sanity: exp(logits) sums to 1 over the alphabet axis.
    assert jnp.allclose(jnp.exp(logits).sum(axis=1), 1.0, atol=1e-4)

    print("KERNEL_OK")
</pallas_src>

<mosaic_0001>
module attributes {stable_mosaic.version = 11 : i64} {
  func.func @_linear_kernel(%arg0: i32, %arg1: i32, %arg2: i32, %arg3: memref<1xf32, #tpu.memory_space<smem>>, %arg4: memref<256x128xbf16, #tpu.memory_space<vmem>>, %arg5: memref<128x128xbf16, #tpu.memory_space<vmem>>, %arg6: memref<1x128xf32, #tpu.memory_space<vmem>>, %arg7: memref<256x128xf32, #tpu.memory_space<vmem>>, %arg8: memref<256x128xf32, #tpu.memory_space<vmem>>) attributes {dimension_semantics = [#tpu.dimension_semantics<parallel>, #tpu.dimension_semantics<parallel>, #tpu.dimension_semantics<arbitrary>], iteration_bounds = array<i64: 32, 1, 1>, scalar_prefetch = 0 : i64, scratch_operands = 1 : i64, tpu.core_type = #tpu.core_type<tc>, window_params = [{transform_indices = @transform_0, window_bounds = array<i64: 1>}, {transform_indices = @transform_1, window_bounds = array<i64: 256, 128>}, {transform_indices = @transform_2, window_bounds = array<i64: 128, 128>}, {transform_indices = @transform_3, window_bounds = array<i64: 1, 128>}, {transform_indices = @transform_4, window_bounds = array<i64: 256, 128>}]} {
    %c0_i32 = arith.constant 0 : i32
    %0 = arith.cmpi eq, %arg2, %c0_i32 : i32
    %1 = arith.extui %0 : i1 to i32
    %c0_i32_0 = arith.constant 0 : i32
    %2 = arith.cmpi ne, %1, %c0_i32_0 : i32
    scf.if %2 {
      %cst_10 = arith.constant 0.000000e+00 : f32
      %12 = vector.broadcast %cst_10 : f32 to vector<256x128xf32>
      %c0_11 = arith.constant 0 : index
      %c0_12 = arith.constant 0 : index
      %13 = vector.load %arg8[%c0_11, %c0_12] : memref<256x128xf32, #tpu.memory_space<vmem>>, vector<256x128xf32>
      tpu.vector_store %arg8[%c0_11, %c0_12], %12 {strides = array<i32>} : memref<256x128xf32, #tpu.memory_space<vmem>>, vector<256x128xf32>,
    } else {
    }
    %c0 = arith.constant 0 : index
    %c0_1 = arith.constant 0 : index
    %3 = vector.load %arg8[%c0, %c0_1] : memref<256x128xf32, #tpu.memory_space<vmem>>, vector<256x128xf32>
    %c0_2 = arith.constant 0 : index
    %c0_3 = arith.constant 0 : index
    %4 = vector.load %arg4[%c0_2, %c0_3] : memref<256x128xbf16, #tpu.memory_space<vmem>>, vector<256x128xbf16>
    %c0_4 = arith.constant 0 : index
    %c0_5 = arith.constant 0 : index
    %5 = vector.load %arg5[%c0_4, %c0_5] : memref<128x128xbf16, #tpu.memory_space<vmem>>, vector<128x128xbf16>
    %cst = arith.constant dense<0.000000e+00> : vector<256x128xf32>
    %6 = tpu.matmul %4, %5, %cst {dimension_numbers = #tpu.dot_dimension_numbers<[1], [0], [0], [1], [0, 0, 1, 1], [], []>} : vector<256x128xbf16>, vector<128x128xbf16>, vector<256x128xf32> -> vector<256x128xf32>
    %7 = arith.addf %3, %6 : vector<256x128xf32>
    %c0_6 = arith.constant 0 : index
    %c0_7 = arith.constant 0 : index
    %8 = vector.load %arg8[%c0_6, %c0_7] : memref<256x128xf32, #tpu.memory_space<vmem>>, vector<256x128xf32>
    tpu.vector_store %arg8[%c0_6, %c0_7], %7 {strides = array<i32>} : memref<256x128xf32, #tpu.memory_space<vmem>>, vector<256x128xf32>,
    %c0_i32_8 = arith.constant 0 : i32
    %9 = arith.cmpi eq, %arg2, %c0_i32_8 : i32
    %10 = arith.extui %9 : i1 to i32
    %c0_i32_9 = arith.constant 0 : i32
    %11 = arith.cmpi ne, %10, %c0_i32_9 : i32
    scf.if %11 {
      %c0_10 = arith.constant 0 : index
      %c0_11 = arith.constant 0 : index
      %12 = vector.load %arg8[%c0_10, %c0_11] : memref<256x128xf32, #tpu.memory_space<vmem>>, vector<256x128xf32>
      %c0_12 = arith.constant 0 : index
      %c0_13 = arith.constant 0 : index
      %13 = vector.load %arg6[%c0_12, %c0_13] : memref<1x128xf32, #tpu.memory_space<vmem>>, vector<1x128xf32>
      %14 = vector.broadcast %13 : vector<1x128xf32> to vector<256x128xf32>
      %15 = arith.addf %12, %14 : vector<256x128xf32>
      %c0_14 = arith.constant 0 : index
      %16 = memref.load %arg3[%c0_14] : memref<1xf32, #tpu.memory_space<smem>>
      %17 = vector.broadcast %16 : f32 to vector<256x128xf32>
      %18 = arith.mulf %15, %17 : vector<256x128xf32>
      %c0_15 = arith.constant 0 : index
      %c0_16 = arith.constant 0 : index
      %19 = vector.load %arg7[%c0_15, %c0_16] : memref<256x128xf32, #tpu.memory_space<vmem>>, vector<256x128xf32>
      tpu.vector_store %arg7[%c0_15, %c0_16], %18 {strides = array<i32>} : memref<256x128xf32, #tpu.memory_space<vmem>>, vector<256x128xf32>,
    } else {
    }
    return
  }
  func.func @transform_0(%arg0: i32, %arg1: i32, %arg2: i32) -> i32 {
    %c0_i32 = arith.constant 0 : i32
    %c0_i32_0 = arith.constant 0 : i32
    return %c0_i32 : i32
  }
  func.func @transform_1(%arg0: i32, %arg1: i32, %arg2: i32) -> (i32, i32) {
    %c0_i32 = arith.constant 0 : i32
    return %arg0, %arg2 : i32, i32
  }
  func.func @transform_2(%arg0: i32, %arg1: i32, %arg2: i32) -> (i32, i32) {
    %c0_i32 = arith.constant 0 : i32
    return %arg2, %arg1 : i32, i32
  }
  func.func @transform_3(%arg0: i32, %arg1: i32, %arg2: i32) -> (i32, i32) {
    %c0_i32 = arith.constant 0 : i32
    %c0_i32_0 = arith.constant 0 : i32
    return %c0_i32, %arg1 : i32, i32
  }
  func.func @transform_4(%arg0: i32, %arg1: i32, %arg2: i32) -> (i32, i32) {
    %c0_i32 = arith.constant 0 : i32
    return %arg0, %arg1 : i32, i32
  }
}

module attributes {stable_mosaic.version = 11 : i64} {
  func.func @_linear_kernel(%arg0: i32, %arg1: i32, %arg2: i32, %arg3: memref<1xf32, #tpu.memory_space<smem>>, %arg4: memref<8x128xbf16, #tpu.memory_space<vmem>>, %arg5: memref<128x512xbf16, #tpu.memory_space<vmem>>, %arg6: memref<1x512xf32, #tpu.memory_space<vmem>>, %arg7: memref<8x512xf32, #tpu.memory_space<vmem>>, %arg8: memref<8x512xf32, #tpu.memory_space<vmem>>) attributes {dimension_semantics = [#tpu.dimension_semantics<parallel>, #tpu.dimension_semantics<parallel>, #tpu.dimension_semantics<arbitrary>], iteration_bounds = array<i64: 1, 3, 1>, scalar_prefetch = 0 : i64, scratch_operands = 1 : i64, tpu.core_type = #tpu.core_type<tc>, window_params = [{transform_indices = @transform_0, window_bounds = array<i64: 1>}, {transform_indices = @transform_1, window_bounds = array<i64: 8, 128>}, {transform_indices = @transform_2, window_bounds = array<i64: 128, 512>}, {transform_indices = @transform_3, window_bounds = array<i64: 1, 512>}, {transform_indices = @transform_4, window_bounds = array<i64: 8, 512>}]} {
    %c0_i32 = arith.constant 0 : i32
    %0 = arith.cmpi eq, %arg2, %c0_i32 : i32
    %1 = arith.extui %0 : i1 to i32
    %c0_i32_0 = arith.constant 0 : i32
    %2 = arith.cmpi ne, %1, %c0_i32_0 : i32
    scf.if %2 {
      %cst_10 = arith.constant 0.000000e+00 : f32
      %12 = vector.broadcast %cst_10 : f32 to vector<8x512xf32>
      %c0_11 = arith.constant 0 : index
      %c0_12 = arith.constant 0 : index
      %13 = vector.load %arg8[%c0_11, %c0_12] : memref<8x512xf32, #tpu.memory_space<vmem>>, vector<8x512xf32>
      tpu.vector_store %arg8[%c0_11, %c0_12], %12 {strides = array<i32>} : memref<8x512xf32, #tpu.memory_space<vmem>>, vector<8x512xf32>,
    } else {
    }
    %c0 = arith.constant 0 : index
    %c0_1 = arith.constant 0 : index
    %3 = vector.load %arg8[%c0, %c0_1] : memref<8x512xf32, #tpu.memory_space<vmem>>, vector<8x512xf32>
    %c0_2 = arith.constant 0 : index
    %c0_3 = arith.constant 0 : index
    %4 = vector.load %arg4[%c0_2, %c0_3] : memref<8x128xbf16, #tpu.memory_space<vmem>>, vector<8x128xbf16>
    %c0_4 = arith.constant 0 : index
    %c0_5 = arith.constant 0 : index
    %5 = vector.load %arg5[%c0_4, %c0_5] : memref<128x512xbf16, #tpu.memory_space<vmem>>, vector<128x512xbf16>
    %cst = arith.constant dense<0.000000e+00> : vector<8x512xf32>
    %6 = tpu.matmul %4, %5, %cst {dimension_numbers = #tpu.dot_dimension_numbers<[1], [0], [0], [1], [0, 0, 1, 1], [], []>} : vector<8x128xbf16>, vector<128x512xbf16>, vector<8x512xf32> -> vector<8x512xf32>
    %7 = arith.addf %3, %6 : vector<8x512xf32>
    %c0_6 = arith.constant 0 : index
    %c0_7 = arith.constant 0 : index
    %8 = vector.load %arg8[%c0_6, %c0_7] : memref<8x512xf32, #tpu.memory_space<vmem>>, vector<8x512xf32>
    tpu.vector_store %arg8[%c0_6, %c0_7], %7 {strides = array<i32>} : memref<8x512xf32, #tpu.memory_space<vmem>>, vector<8x512xf32>,
    %c0_i32_8 = arith.constant 0 : i32
    %9 = arith.cmpi eq, %arg2, %c0_i32_8 : i32
    %10 = arith.extui %9 : i1 to i32
    %c0_i32_9 = arith.constant 0 : i32
    %11 = arith.cmpi ne, %10, %c0_i32_9 : i32
    scf.if %11 {
      %c0_10 = arith.constant 0 : index
      %c0_11 = arith.constant 0 : index
      %12 = vector.load %arg8[%c0_10, %c0_11] : memref<8x512xf32, #tpu.memory_space<vmem>>, vector<8x512xf32>
      %c0_12 = arith.constant 0 : index
      %c0_13 = arith.constant 0 : index
      %13 = vector.load %arg6[%c0_12, %c0_13] : memref<1x512xf32, #tpu.memory_space<vmem>>, vector<1x512xf32>
      %14 = vector.broadcast %13 : vector<1x512xf32> to vector<8x512xf32>
      %15 = arith.addf %12, %14 : vector<8x512xf32>
      %c0_14 = arith.constant 0 : index
      %16 = memref.load %arg3[%c0_14] : memref<1xf32, #tpu.memory_space<smem>>
      %17 = vector.broadcast %16 : f32 to vector<8x512xf32>
      %18 = arith.mulf %15, %17 : vector<8x512xf32>
      %cst_15 = arith.constant 0.000000e+00 : f32
      %19 = vector.broadcast %cst_15 : f32 to vector<8x512xf32>
      %20 = arith.maximumf %18, %19 : vector<8x512xf32>
      %c0_16 = arith.constant 0 : index
      %c0_17 = arith.constant 0 : index
      %21 = vector.load %arg7[%c0_16, %c0_17] : memref<8x512xf32, #tpu.memory_space<vmem>>, vector<8x512xf32>
      tpu.vector_store %arg7[%c0_16, %c0_17], %20 {strides = array<i32>} : memref<8x512xf32, #tpu.memory_space<vmem>>, vector<8x512xf32>,
    } else {
    }
    return
  }
  func.func @transform_0(%arg0: i32, %arg1: i32, %arg2: i32) -> i32 {
    %c0_i32 = arith.constant 0 : i32
    %c0_i32_0 = arith.constant 0 : i32
    return %c0_i32 : i32
  }
  func.func @transform_1(%arg0: i32, %arg1: i32, %arg2: i32) -> (i32, i32) {
    %c0_i32 = arith.constant 0 : i32
    return %arg0, %arg2 : i32, i32
  }
  func.func @transform_2(%arg0: i32, %arg1: i32, %arg2: i32) -> (i32, i32) {
    %c0_i32 = arith.constant 0 : i32
    return %arg2, %arg1 : i32, i32
  }
  func.func @transform_3(%arg0: i32, %arg1: i32, %arg2: i32) -> (i32, i32) {
    %c0_i32 = arith.constant 0 : i32
    %c0_i32_0 = arith.constant 0 : i32
    return %c0_i32, %arg1 : i32, i32
  }
  func.func @transform_4(%arg0: i32, %arg1: i32, %arg2: i32) -> (i32, i32) {
    %c0_i32 = arith.constant 0 : i32
    return %arg0, %arg1 : i32, i32
  }
}

module attributes {stable_mosaic.version = 11 : i64} {
  func.func @_linear_kernel(%arg0: i32, %arg1: i32, %arg2: i32, %arg3: memref<1xf32, #tpu.memory_space<smem>>, %arg4: memref<8x512xbf16, #tpu.memory_space<vmem>>, %arg5: memref<512x512xbf16, #tpu.memory_space<vmem>>, %arg6: memref<1x512xf32, #tpu.memory_space<vmem>>, %arg7: memref<8x512xf32, #tpu.memory_space<vmem>>, %arg8: memref<8x512xf32, #tpu.memory_space<vmem>>) attributes {dimension_semantics = [#tpu.dimension_semantics<parallel>, #tpu.dimension_semantics<parallel>, #tpu.dimension_semantics<arbitrary>], iteration_bounds = array<i64: 1, 3, 3>, scalar_prefetch = 0 : i64, scratch_operands = 1 : i64, tpu.core_type = #tpu.core_type<tc>, window_params = [{transform_indices = @transform_0, window_bounds = array<i64: 1>}, {transform_indices = @transform_1, window_bounds = array<i64: 8, 512>}, {transform_indices = @transform_2, window_bounds = array<i64: 512, 512>}, {transform_indices = @transform_3, window_bounds = array<i64: 1, 512>}, {transform_indices = @transform_4, window_bounds = array<i64: 8, 512>}]} {
    %c0_i32 = arith.constant 0 : i32
    %0 = arith.cmpi eq, %arg2, %c0_i32 : i32
    %1 = arith.extui %0 : i1 to i32
    %c0_i32_0 = arith.constant 0 : i32
    %2 = arith.cmpi ne, %1, %c0_i32_0 : i32
    scf.if %2 {
      %cst_9 = arith.constant 0.000000e+00 : f32
      %12 = vector.broadcast %cst_9 : f32 to vector<8x512xf32>
      %c0_10 = arith.constant 0 : index
      %c0_11 = arith.constant 0 : index
      %13 = vector.load %arg8[%c0_10, %c0_11] : memref<8x512xf32, #tpu.memory_space<vmem>>, vector<8x512xf32>
      tpu.vector_store %arg8[%c0_10, %c0_11], %12 {strides = array<i32>} : memref<8x512xf32, #tpu.memory_space<vmem>>, vector<8x512xf32>,
    } else {
    }
    %c0 = arith.constant 0 : index
    %c0_1 = arith.constant 0 : index
    %3 = vector.load %arg8[%c0, %c0_1] : memref<8x512xf32, #tpu.memory_space<vmem>>, vector<8x512xf32>
    %c0_2 = arith.constant 0 : index
    %c0_3 = arith.constant 0 : index
    %4 = vector.load %arg4[%c0_2, %c0_3] : memref<8x512xbf16, #tpu.memory_space<vmem>>, vector<8x512xbf16>
    %c0_4 = arith.constant 0 : index
    %c0_5 = arith.constant 0 : index
    %5 = vector.load %arg5[%c0_4, %c0_5] : memref<512x512xbf16, #tpu.memory_space<vmem>>, vector<512x512xbf16>
    %cst = arith.constant dense<0.000000e+00> : vector<8x512xf32>
    %6 = tpu.matmul %4, %5, %cst {dimension_numbers = #tpu.dot_dimension_numbers<[1], [0], [0], [1], [0, 0, 1, 1], [], []>} : vector<8x512xbf16>, vector<512x512xbf16>, vector<8x512xf32> -> vector<8x512xf32>
    %7 = arith.addf %3, %6 : vector<8x512xf32>
    %c0_6 = arith.constant 0 : index
    %c0_7 = arith.constant 0 : index
    %8 = vector.load %arg8[%c0_6, %c0_7] : memref<8x512xf32, #tpu.memory_space<vmem>>, vector<8x512xf32>
    tpu.vector_store %arg8[%c0_6, %c0_7], %7 {strides = array<i32>} : memref<8x512xf32, #tpu.memory_space<vmem>>, vector<8x512xf32>,
    %c2_i32 = arith.constant 2 : i32
    %9 = arith.cmpi eq, %arg2, %c2_i32 : i32
    %10 = arith.extui %9 : i1 to i32
    %c0_i32_8 = arith.constant 0 : i32
    %11 = arith.cmpi ne, %10, %c0_i32_8 : i32
    scf.if %11 {
      %c0_9 = arith.constant 0 : index
      %c0_10 = arith.constant 0 : index
      %12 = vector.load %arg8[%c0_9, %c0_10] : memref<8x512xf32, #tpu.memory_space<vmem>>, vector<8x512xf32>
      %c0_11 = arith.constant 0 : index
      %c0_12 = arith.constant 0 : index
      %13 = vector.load %arg6[%c0_11, %c0_12] : memref<1x512xf32, #tpu.memory_space<vmem>>, vector<1x512xf32>
      %14 = vector.broadcast %13 : vector<1x512xf32> to vector<8x512xf32>
      %15 = arith.addf %12, %14 : vector<8x512xf32>
      %c0_13 = arith.constant 0 : index
      %16 = memref.load %arg3[%c0_13] : memref<1xf32, #tpu.memory_space<smem>>
      %17 = vector.broadcast %16 : f32 to vector<8x512xf32>
      %18 = arith.mulf %15, %17 : vector<8x512xf32>
      %cst_14 = arith.constant 0.000000e+00 : f32
      %19 = vector.broadcast %cst_14 : f32 to vector<8x512xf32>
      %20 = arith.maximumf %18, %19 : vector<8x512xf32>
      %c0_15 = arith.constant 0 : index
      %c0_16 = arith.constant 0 : index
      %21 = vector.load %arg7[%c0_15, %c0_16] : memref<8x512xf32, #tpu.memory_space<vmem>>, vector<8x512xf32>
      tpu.vector_store %arg7[%c0_15, %c0_16], %20 {strides = array<i32>} : memref<8x512xf32, #tpu.memory_space<vmem>>, vector<8x512xf32>,
    } else {
    }
    return
  }
  func.func @transform_0(%arg0: i32, %arg1: i32, %arg2: i32) -> i32 {
    %c0_i32 = arith.constant 0 : i32
    %c0_i32_0 = arith.constant 0 : i32
    return %c0_i32 : i32
  }
  func.func @transform_1(%arg0: i32, %arg1: i32, %arg2: i32) -> (i32, i32) {
    %c0_i32 = arith.constant 0 : i32
    return %arg0, %arg2 : i32, i32
  }
  func.func @transform_2(%arg0: i32, %arg1: i32, %arg2: i32) -> (i32, i32) {
    %c0_i32 = arith.constant 0 : i32
    return %arg2, %arg1 : i32, i32
  }
  func.func @transform_3(%arg0: i32, %arg1: i32, %arg2: i32) -> (i32, i32) {
    %c0_i32 = arith.constant 0 : i32
    %c0_i32_0 = arith.constant 0 : i32
    return %c0_i32, %arg1 : i32, i32
  }
  func.func @transform_4(%arg0: i32, %arg1: i32, %arg2: i32) -> (i32, i32) {
    %c0_i32 = arith.constant 0 : i32
    return %arg0, %arg1 : i32, i32
  }
}

module attributes {stable_mosaic.version = 11 : i64} {
  func.func @_linear_kernel(%arg0: i32, %arg1: i32, %arg2: i32, %arg3: memref<1xf32, #tpu.memory_space<smem>>, %arg4: memref<8x512xbf16, #tpu.memory_space<vmem>>, %arg5: memref<512x128xbf16, #tpu.memory_space<vmem>>, %arg6: memref<1x128xf32, #tpu.memory_space<vmem>>, %arg7: memref<8x128xf32, #tpu.memory_space<vmem>>, %arg8: memref<8x128xf32, #tpu.memory_space<vmem>>) attributes {dimension_semantics = [#tpu.dimension_semantics<parallel>, #tpu.dimension_semantics<parallel>, #tpu.dimension_semantics<arbitrary>], iteration_bounds = array<i64: 1, 1, 3>, scalar_prefetch = 0 : i64, scratch_operands = 1 : i64, tpu.core_type = #tpu.core_type<tc>, window_params = [{transform_indices = @transform_0, window_bounds = array<i64: 1>}, {transform_indices = @transform_1, window_bounds = array<i64: 8, 512>}, {transform_indices = @transform_2, window_bounds = array<i64: 512, 128>}, {transform_indices = @transform_3, window_bounds = array<i64: 1, 128>}, {transform_indices = @transform_4, window_bounds = array<i64: 8, 128>}]} {
    %c0_i32 = arith.constant 0 : i32
    %0 = arith.cmpi eq, %arg2, %c0_i32 : i32
    %1 = arith.extui %0 : i1 to i32
    %c0_i32_0 = arith.constant 0 : i32
    %2 = arith.cmpi ne, %1, %c0_i32_0 : i32
    scf.if %2 {
      %cst_9 = arith.constant 0.000000e+00 : f32
      %12 = vector.broadcast %cst_9 : f32 to vector<8x128xf32>
      %c0_10 = arith.constant 0 : index
      %c0_11 = arith.constant 0 : index
      %13 = vector.load %arg8[%c0_10, %c0_11] : memref<8x128xf32, #tpu.memory_space<vmem>>, vector<8x128xf32>
      tpu.vector_store %arg8[%c0_10, %c0_11], %12 {strides = array<i32>} : memref<8x128xf32, #tpu.memory_space<vmem>>, vector<8x128xf32>,
    } else {
    }
    %c0 = arith.constant 0 : index
    %c0_1 = arith.constant 0 : index
    %3 = vector.load %arg8[%c0, %c0_1] : memref<8x128xf32, #tpu.memory_space<vmem>>, vector<8x128xf32>
    %c0_2 = arith.constant 0 : index
    %c0_3 = arith.constant 0 : index
    %4 = vector.load %arg4[%c0_2, %c0_3] : memref<8x512xbf16, #tpu.memory_space<vmem>>, vector<8x512xbf16>
    %c0_4 = arith.constant 0 : index
    %c0_5 = arith.constant 0 : index
    %5 = vector.load %arg5[%c0_4, %c0_5] : memref<512x128xbf16, #tpu.memory_space<vmem>>, vector<512x128xbf16>
    %cst = arith.constant dense<0.000000e+00> : vector<8x128xf32>
    %6 = tpu.matmul %4, %5, %cst {dimension_numbers = #tpu.dot_dimension_numbers<[1], [0], [0], [1], [0, 0, 1, 1], [], []>} : vector<8x512xbf16>, vector<512x128xbf16>, vector<8x128xf32> -> vector<8x128xf32>
    %7 = arith.addf %3, %6 : vector<8x128xf32>
    %c0_6 = arith.constant 0 : index
    %c0_7 = arith.constant 0 : index
    %8 = vector.load %arg8[%c0_6, %c0_7] : memref<8x128xf32, #tpu.memory_space<vmem>>, vector<8x128xf32>
    tpu.vector_store %arg8[%c0_6, %c0_7], %7 {strides = array<i32>} : memref<8x128xf32, #tpu.memory_space<vmem>>, vector<8x128xf32>,
    %c2_i32 = arith.constant 2 : i32
    %9 = arith.cmpi eq, %arg2, %c2_i32 : i32
    %10 = arith.extui %9 : i1 to i32
    %c0_i32_8 = arith.constant 0 : i32
    %11 = arith.cmpi ne, %10, %c0_i32_8 : i32
    scf.if %11 {
      %c0_9 = arith.constant 0 : index
      %c0_10 = arith.constant 0 : index
      %12 = vector.load %arg8[%c0_9, %c0_10] : memref<8x128xf32, #tpu.memory_space<vmem>>, vector<8x128xf32>
      %c0_11 = arith.constant 0 : index
      %c0_12 = arith.constant 0 : index
      %13 = vector.load %arg6[%c0_11, %c0_12] : memref<1x128xf32, #tpu.memory_space<vmem>>, vector<1x128xf32>
      %14 = vector.broadcast %13 : vector<1x128xf32> to vector<8x128xf32>
      %15 = arith.addf %12, %14 : vector<8x128xf32>
      %c0_13 = arith.constant 0 : index
      %16 = memref.load %arg3[%c0_13] : memref<1xf32, #tpu.memory_space<smem>>
      %17 = vector.broadcast %16 : f32 to vector<8x128xf32>
      %18 = arith.mulf %15, %17 : vector<8x128xf32>
      %c0_14 = arith.constant 0 : index
      %c0_15 = arith.constant 0 : index
      %19 = vector.load %arg7[%c0_14, %c0_15] : memref<8x128xf32, #tpu.memory_space<vmem>>, vector<8x128xf32>
      tpu.vector_store %arg7[%c0_14, %c0_15], %18 {strides = array<i32>} : memref<8x128xf32, #tpu.memory_space<vmem>>, vector<8x128xf32>,
    } else {
    }
    return
  }
  func.func @transform_0(%arg0: i32, %arg1: i32, %arg2: i32) -> i32 {
    %c0_i32 = arith.constant 0 : i32
    %c0_i32_0 = arith.constant 0 : i32
    return %c0_i32 : i32
  }
  func.func @transform_1(%arg0: i32, %arg1: i32, %arg2: i32) -> (i32, i32) {
    %c0_i32 = arith.constant 0 : i32
    return %arg0, %arg2 : i32, i32
  }
  func.func @transform_2(%arg0: i32, %arg1: i32, %arg2: i32) -> (i32, i32) {
    %c0_i32 = arith.constant 0 : i32
    return %arg2, %arg1 : i32, i32
  }
  func.func @transform_3(%arg0: i32, %arg1: i32, %arg2: i32) -> (i32, i32) {
    %c0_i32 = arith.constant 0 : i32
    %c0_i32_0 = arith.constant 0 : i32
    return %c0_i32, %arg1 : i32, i32
  }
  func.func @transform_4(%arg0: i32, %arg1: i32, %arg2: i32) -> (i32, i32) {
    %c0_i32 = arith.constant 0 : i32
    return %arg0, %arg1 : i32, i32
  }
}

module attributes {stable_mosaic.version = 11 : i64} {
  func.func @_linear_kernel(%arg0: i32, %arg1: i32, %arg2: i32, %arg3: memref<1xf32, #tpu.memory_space<smem>>, %arg4: memref<8x128xbf16, #tpu.memory_space<vmem>>, %arg5: memref<128x512xbf16, #tpu.memory_space<vmem>>, %arg6: memref<1x512xf32, #tpu.memory_space<vmem>>, %arg7: memref<8x512xf32, #tpu.memory_space<vmem>>, %arg8: memref<8x512xf32, #tpu.memory_space<vmem>>) attributes {dimension_semantics = [#tpu.dimension_semantics<parallel>, #tpu.dimension_semantics<parallel>, #tpu.dimension_semantics<arbitrary>], iteration_bounds = array<i64: 1, 1, 1>, scalar_prefetch = 0 : i64, scratch_operands = 1 : i64, tpu.core_type = #tpu.core_type<tc>, window_params = [{transform_indices = @transform_0, window_bounds = array<i64: 1>}, {transform_indices = @transform_1, window_bounds = array<i64: 8, 128>}, {transform_indices = @transform_2, window_bounds = array<i64: 128, 512>}, {transform_indices = @transform_3, window_bounds = array<i64: 1, 512>}, {transform_indices = @transform_4, window_bounds = array<i64: 8, 512>}]} {
    %c0_i32 = arith.constant 0 : i32
    %0 = arith.cmpi eq, %arg2, %c0_i32 : i32
    %1 = arith.extui %0 : i1 to i32
    %c0_i32_0 = arith.constant 0 : i32
    %2 = arith.cmpi ne, %1, %c0_i32_0 : i32
    scf.if %2 {
      %cst_10 = arith.constant 0.000000e+00 : f32
      %12 = vector.broadcast %cst_10 : f32 to vector<8x512xf32>
      %c0_11 = arith.constant 0 : index
      %c0_12 = arith.constant 0 : index
      %13 = vector.load %arg8[%c0_11, %c0_12] : memref<8x512xf32, #tpu.memory_space<vmem>>, vector<8x512xf32>
      tpu.vector_store %arg8[%c0_11, %c0_12], %12 {strides = array<i32>} : memref<8x512xf32, #tpu.memory_space<vmem>>, vector<8x512xf32>,
    } else {
    }
    %c0 = arith.constant 0 : index
    %c0_1 = arith.constant 0 : index
    %3 = vector.load %arg8[%c0, %c0_1] : memref<8x512xf32, #tpu.memory_space<vmem>>, vector<8x512xf32>
    %c0_2 = arith.constant 0 : index
    %c0_3 = arith.constant 0 : index
    %4 = vector.load %arg4[%c0_2, %c0_3] : memref<8x128xbf16, #tpu.memory_space<vmem>>, vector<8x128xbf16>
    %c0_4 = arith.constant 0 : index
    %c0_5 = arith.constant 0 : index
    %5 = vector.load %arg5[%c0_4, %c0_5] : memref<128x512xbf16, #tpu.memory_space<vmem>>, vector<128x512xbf16>
    %cst = arith.constant dense<0.000000e+00> : vector<8x512xf32>
    %6 = tpu.matmul %4, %5, %cst {dimension_numbers = #tpu.dot_dimension_numbers<[1], [0], [0], [1], [0, 0, 1, 1], [], []>} : vector<8x128xbf16>, vector<128x512xbf16>, vector<8x512xf32> -> vector<8x512xf32>
    %7 = arith.addf %3, %6 : vector<8x512xf32>
    %c0_6 = arith.constant 0 : index
    %c0_7 = arith.constant 0 : index
    %8 = vector.load %arg8[%c0_6, %c0_7] : memref<8x512xf32, #tpu.memory_space<vmem>>, vector<8x512xf32>
    tpu.vector_store %arg8[%c0_6, %c0_7], %7 {strides = array<i32>} : memref<8x512xf32, #tpu.memory_space<vmem>>, vector<8x512xf32>,
    %c0_i32_8 = arith.constant 0 : i32
    %9 = arith.cmpi eq, %arg2, %c0_i32_8 : i32
    %10 = arith.extui %9 : i1 to i32
    %c0_i32_9 = arith.constant 0 : i32
    %11 = arith.cmpi ne, %10, %c0_i32_9 : i32
    scf.if %11 {
      %c0_10 = arith.constant 0 : index
      %c0_11 = arith.constant 0 : index
      %12 = vector.load %arg8[%c0_10, %c0_11] : memref<8x512xf32, #tpu.memory_space<vmem>>, vector<8x512xf32>
      %c0_12 = arith.constant 0 : index
      %c0_13 = arith.constant 0 : index
      %13 = vector.load %arg6[%c0_12, %c0_13] : memref<1x512xf32, #tpu.memory_space<vmem>>, vector<1x512xf32>
      %14 = vector.broadcast %13 : vector<1x512xf32> to vector<8x512xf32>
      %15 = arith.addf %12, %14 : vector<8x512xf32>
      %c0_14 = arith.constant 0 : index
      %16 = memref.load %arg3[%c0_14] : memref<1xf32, #tpu.memory_space<smem>>
      %17 = vector.broadcast %16 : f32 to vector<8x512xf32>
      %18 = arith.mulf %15, %17 : vector<8x512xf32>
      %cst_15 = arith.constant 0.000000e+00 : f32
      %19 = vector.broadcast %cst_15 : f32 to vector<8x512xf32>
      %20 = arith.maximumf %18, %19 : vector<8x512xf32>
      %c0_16 = arith.constant 0 : index
      %c0_17 = arith.constant 0 : index
      %21 = vector.load %arg7[%c0_16, %c0_17] : memref<8x512xf32, #tpu.memory_space<vmem>>, vector<8x512xf32>
      tpu.vector_store %arg7[%c0_16, %c0_17], %20 {strides = array<i32>} : memref<8x512xf32, #tpu.memory_space<vmem>>, vector<8x512xf32>,
    } else {
    }
    return
  }
  func.func @transform_0(%arg0: i32, %arg1: i32, %arg2: i32) -> i32 {
    %c0_i32 = arith.constant 0 : i32
    %c0_i32_0 = arith.constant 0 : i32
    return %c0_i32 : i32
  }
  func.func @transform_1(%arg0: i32, %arg1: i32, %arg2: i32) -> (i32, i32) {
    %c0_i32 = arith.constant 0 : i32
    return %arg0, %arg2 : i32, i32
  }
  func.func @transform_2(%arg0: i32, %arg1: i32, %arg2: i32) -> (i32, i32) {
    %c0_i32 = arith.constant 0 : i32
    return %arg2, %arg1 : i32, i32
  }
  func.func @transform_3(%arg0: i32, %arg1: i32, %arg2: i32) -> (i32, i32) {
    %c0_i32 = arith.constant 0 : i32
    %c0_i32_0 = arith.constant 0 : i32
    return %c0_i32, %arg1 : i32, i32
  }
  func.func @transform_4(%arg0: i32, %arg1: i32, %arg2: i32) -> (i32, i32) {
    %c0_i32 = arith.constant 0 : i32
    return %arg0, %arg1 : i32, i32
  }
}

module attributes {stable_mosaic.version = 11 : i64} {
  func.func @_linear_kernel(%arg0: i32, %arg1: i32, %arg2: i32, %arg3: memref<1xf32, #tpu.memory_space<smem>>, %arg4: memref<8x512xbf16, #tpu.memory_space<vmem>>, %arg5: memref<512x512xbf16, #tpu.memory_space<vmem>>, %arg6: memref<1x512xf32, #tpu.memory_space<vmem>>, %arg7: memref<8x512xf32, #tpu.memory_space<vmem>>, %arg8: memref<8x512xf32, #tpu.memory_space<vmem>>) attributes {dimension_semantics = [#tpu.dimension_semantics<parallel>, #tpu.dimension_semantics<parallel>, #tpu.dimension_semantics<arbitrary>], iteration_bounds = array<i64: 1, 1, 1>, scalar_prefetch = 0 : i64, scratch_operands = 1 : i64, tpu.core_type = #tpu.core_type<tc>, window_params = [{transform_indices = @transform_0, window_bounds = array<i64: 1>}, {transform_indices = @transform_1, window_bounds = array<i64: 8, 512>}, {transform_indices = @transform_2, window_bounds = array<i64: 512, 512>}, {transform_indices = @transform_3, window_bounds = array<i64: 1, 512>}, {transform_indices = @transform_4, window_bounds = array<i64: 8, 512>}]} {
    %c0_i32 = arith.constant 0 : i32
    %0 = arith.cmpi eq, %arg2, %c0_i32 : i32
    %1 = arith.extui %0 : i1 to i32
    %c0_i32_0 = arith.constant 0 : i32
    %2 = arith.cmpi ne, %1, %c0_i32_0 : i32
    scf.if %2 {
      %cst_10 = arith.constant 0.000000e+00 : f32
      %12 = vector.broadcast %cst_10 : f32 to vector<8x512xf32>
      %c0_11 = arith.constant 0 : index
      %c0_12 = arith.constant 0 : index
      %13 = vector.load %arg8[%c0_11, %c0_12] : memref<8x512xf32, #tpu.memory_space<vmem>>, vector<8x512xf32>
      tpu.vector_store %arg8[%c0_11, %c0_12], %12 {strides = array<i32>} : memref<8x512xf32, #tpu.memory_space<vmem>>, vector<8x512xf32>,
    } else {
    }
    %c0 = arith.constant 0 : index
    %c0_1 = arith.constant 0 : index
    %3 = vector.load %arg8[%c0, %c0_1] : memref<8x512xf32, #tpu.memory_space<vmem>>, vector<8x512xf32>
    %c0_2 = arith.constant 0 : index
    %c0_3 = arith.constant 0 : index
    %4 = vector.load %arg4[%c0_2, %c0_3] : memref<8x512xbf16, #tpu.memory_space<vmem>>, vector<8x512xbf16>
    %c0_4 = arith.constant 0 : index
    %c0_5 = arith.constant 0 : index
    %5 = vector.load %arg5[%c0_4, %c0_5] : memref<512x512xbf16, #tpu.memory_space<vmem>>, vector<512x512xbf16>
    %cst = arith.constant dense<0.000000e+00> : vector<8x512xf32>
    %6 = tpu.matmul %4, %5, %cst {dimension_numbers = #tpu.dot_dimension_numbers<[1], [0], [0], [1], [0, 0, 1, 1], [], []>} : vector<8x512xbf16>, vector<512x512xbf16>, vector<8x512xf32> -> vector<8x512xf32>
    %7 = arith.addf %3, %6 : vector<8x512xf32>
    %c0_6 = arith.constant 0 : index
    %c0_7 = arith.constant 0 : index
    %8 = vector.load %arg8[%c0_6, %c0_7] : memref<8x512xf32, #tpu.memory_space<vmem>>, vector<8x512xf32>
    tpu.vector_store %arg8[%c0_6, %c0_7], %7 {strides = array<i32>} : memref<8x512xf32, #tpu.memory_space<vmem>>, vector<8x512xf32>,
    %c0_i32_8 = arith.constant 0 : i32
    %9 = arith.cmpi eq, %arg2, %c0_i32_8 : i32
    %10 = arith.extui %9 : i1 to i32
    %c0_i32_9 = arith.constant 0 : i32
    %11 = arith.cmpi ne, %10, %c0_i32_9 : i32
    scf.if %11 {
      %c0_10 = arith.constant 0 : index
      %c0_11 = arith.constant 0 : index
      %12 = vector.load %arg8[%c0_10, %c0_11] : memref<8x512xf32, #tpu.memory_space<vmem>>, vector<8x512xf32>
      %c0_12 = arith.constant 0 : index
      %c0_13 = arith.constant 0 : index
      %13 = vector.load %arg6[%c0_12, %c0_13] : memref<1x512xf32, #tpu.memory_space<vmem>>, vector<1x512xf32>
      %14 = vector.broadcast %13 : vector<1x512xf32> to vector<8x512xf32>
      %15 = arith.addf %12, %14 : vector<8x512xf32>
      %c0_14 = arith.constant 0 : index
      %16 = memref.load %arg3[%c0_14] : memref<1xf32, #tpu.memory_space<smem>>
      %17 = vector.broadcast %16 : f32 to vector<8x512xf32>
      %18 = arith.mulf %15, %17 : vector<8x512xf32>
      %19 = arith.negf %18 : vector<8x512xf32>
      %20 = math.exp %19 : vector<8x512xf32>
      %cst_15 = arith.constant 1.000000e+00 : f32
      %21 = vector.broadcast %cst_15 : f32 to vector<8x512xf32>
      %22 = arith.addf %21, %20 : vector<8x512xf32>
      %23 = arith.divf %21, %22 : vector<8x512xf32>
      %c0_16 = arith.constant 0 : index
      %c0_17 = arith.constant 0 : index
      %24 = vector.load %arg7[%c0_16, %c0_17] : memref<8x512xf32, #tpu.memory_space<vmem>>, vector<8x512xf32>
      tpu.vector_store %arg7[%c0_16, %c0_17], %23 {strides = array<i32>} : memref<8x512xf32, #tpu.memory_space<vmem>>, vector<8x512xf32>,
    } else {
    }
    return
  }
  func.func @transform_0(%arg0: i32, %arg1: i32, %arg2: i32) -> i32 {
    %c0_i32 = arith.constant 0 : i32
    %c0_i32_0 = arith.constant 0 : i32
    return %c0_i32 : i32
  }
  func.func @transform_1(%arg0: i32, %arg1: i32, %arg2: i32) -> (i32, i32) {
    %c0_i32 = arith.constant 0 : i32
    return %arg0, %arg2 : i32, i32
  }
  func.func @transform_2(%arg0: i32, %arg1: i32, %arg2: i32) -> (i32, i32) {
    %c0_i32 = arith.constant 0 : i32
    return %arg2, %arg1 : i32, i32
  }
  func.func @transform_3(%arg0: i32, %arg1: i32, %arg2: i32) -> (i32, i32) {
    %c0_i32 = arith.constant 0 : i32
    %c0_i32_0 = arith.constant 0 : i32
    return %c0_i32, %arg1 : i32, i32
  }
  func.func @transform_4(%arg0: i32, %arg1: i32, %arg2: i32) -> (i32, i32) {
    %c0_i32 = arith.constant 0 : i32
    return %arg0, %arg1 : i32, i32
  }
}

module attributes {stable_mosaic.version = 11 : i64} {
  func.func @_linear_kernel(%arg0: i32, %arg1: i32, %arg2: i32, %arg3: memref<1xf32, #tpu.memory_space<smem>>, %arg4: memref<8x512xbf16, #tpu.memory_space<vmem>>, %arg5: memref<512x128xbf16, #tpu.memory_space<vmem>>, %arg6: memref<1x128xf32, #tpu.memory_space<vmem>>, %arg7: memref<8x128xf32, #tpu.memory_space<vmem>>, %arg8: memref<8x128xf32, #tpu.memory_space<vmem>>) attributes {dimension_semantics = [#tpu.dimension_semantics<parallel>, #tpu.dimension_semantics<parallel>, #tpu.dimension_semantics<arbitrary>], iteration_bounds = array<i64: 1, 1, 1>, scalar_prefetch = 0 : i64, scratch_operands = 1 : i64, tpu.core_type = #tpu.core_type<tc>, window_params = [{transform_indices = @transform_0, window_bounds = array<i64: 1>}, {transform_indices = @transform_1, window_bounds = array<i64: 8, 512>}, {transform_indices = @transform_2, window_bounds = array<i64: 512, 128>}, {transform_indices = @transform_3, window_bounds = array<i64: 1, 128>}, {transform_indices = @transform_4, window_bounds = array<i64: 8, 128>}]} {
    %c0_i32 = arith.constant 0 : i32
    %0 = arith.cmpi eq, %arg2, %c0_i32 : i32
    %1 = arith.extui %0 : i1 to i32
    %c0_i32_0 = arith.constant 0 : i32
    %2 = arith.cmpi ne, %1, %c0_i32_0 : i32
    scf.if %2 {
      %cst_10 = arith.constant 0.000000e+00 : f32
      %12 = vector.broadcast %cst_10 : f32 to vector<8x128xf32>
      %c0_11 = arith.constant 0 : index
      %c0_12 = arith.constant 0 : index
      %13 = vector.load %arg8[%c0_11, %c0_12] : memref<8x128xf32, #tpu.memory_space<vmem>>, vector<8x128xf32>
      tpu.vector_store %arg8[%c0_11, %c0_12], %12 {strides = array<i32>} : memref<8x128xf32, #tpu.memory_space<vmem>>, vector<8x128xf32>,
    } else {
    }
    %c0 = arith.constant 0 : index
    %c0_1 = arith.constant 0 : index
    %3 = vector.load %arg8[%c0, %c0_1] : memref<8x128xf32, #tpu.memory_space<vmem>>, vector<8x128xf32>
    %c0_2 = arith.constant 0 : index
    %c0_3 = arith.constant 0 : index
    %4 = vector.load %arg4[%c0_2, %c0_3] : memref<8x512xbf16, #tpu.memory_space<vmem>>, vector<8x512xbf16>
    %c0_4 = arith.constant 0 : index
    %c0_5 = arith.constant 0 : index
    %5 = vector.load %arg5[%c0_4, %c0_5] : memref<512x128xbf16, #tpu.memory_space<vmem>>, vector<512x128xbf16>
    %cst = arith.constant dense<0.000000e+00> : vector<8x128xf32>
    %6 = tpu.matmul %4, %5, %cst {dimension_numbers = #tpu.dot_dimension_numbers<[1], [0], [0], [1], [0, 0, 1, 1], [], []>} : vector<8x512xbf16>, vector<512x128xbf16>, vector<8x128xf32> -> vector<8x128xf32>
    %7 = arith.addf %3, %6 : vector<8x128xf32>
    %c0_6 = arith.constant 0 : index
    %c0_7 = arith.constant 0 : index
    %8 = vector.load %arg8[%c0_6, %c0_7] : memref<8x128xf32, #tpu.memory_space<vmem>>, vector<8x128xf32>
    tpu.vector_store %arg8[%c0_6, %c0_7], %7 {strides = array<i32>} : memref<8x128xf32, #tpu.memory_space<vmem>>, vector<8x128xf32>,
    %c0_i32_8 = arith.constant 0 : i32
    %9 = arith.cmpi eq, %arg2, %c0_i32_8 : i32
    %10 = arith.extui %9 : i1 to i32
    %c0_i32_9 = arith.constant 0 : i32
    %11 = arith.cmpi ne, %10, %c0_i32_9 : i32
    scf.if %11 {
      %c0_10 = arith.constant 0 : index
      %c0_11 = arith.constant 0 : index
      %12 = vector.load %arg8[%c0_10, %c0_11] : memref<8x128xf32, #tpu.memory_space<vmem>>, vector<8x128xf32>
      %c0_12 = arith.constant 0 : index
      %c0_13 = arith.constant 0 : index
      %13 = vector.load %arg6[%c0_12, %c0_13] : memref<1x128xf32, #tpu.memory_space<vmem>>, vector<1x128xf32>
      %14 = vector.broadcast %13 : vector<1x128xf32> to vector<8x128xf32>
      %15 = arith.addf %12, %14 : vector<8x128xf32>
      %c0_14 = arith.constant 0 : index
      %16 = memref.load %arg3[%c0_14] : memref<1xf32, #tpu.memory_space<smem>>
      %17 = vector.broadcast %16 : f32 to vector<8x128xf32>
      %18 = arith.mulf %15, %17 : vector<8x128xf32>
      %c0_15 = arith.constant 0 : index
      %c0_16 = arith.constant 0 : index
      %19 = vector.load %arg7[%c0_15, %c0_16] : memref<8x128xf32, #tpu.memory_space<vmem>>, vector<8x128xf32>
      tpu.vector_store %arg7[%c0_15, %c0_16], %18 {strides = array<i32>} : memref<8x128xf32, #tpu.memory_space<vmem>>, vector<8x128xf32>,
    } else {
    }
    return
  }
  func.func @transform_0(%arg0: i32, %arg1: i32, %arg2: i32) -> i32 {
    %c0_i32 = arith.constant 0 : i32
    %c0_i32_0 = arith.constant 0 : i32
    return %c0_i32 : i32
  }
  func.func @transform_1(%arg0: i32, %arg1: i32, %arg2: i32) -> (i32, i32) {
    %c0_i32 = arith.constant 0 : i32
    return %arg0, %arg2 : i32, i32
  }
  func.func @transform_2(%arg0: i32, %arg1: i32, %arg2: i32) -> (i32, i32) {
    %c0_i32 = arith.constant 0 : i32
    return %arg2, %arg1 : i32, i32
  }
  func.func @transform_3(%arg0: i32, %arg1: i32, %arg2: i32) -> (i32, i32) {
    %c0_i32 = arith.constant 0 : i32
    %c0_i32_0 = arith.constant 0 : i32
    return %c0_i32, %arg1 : i32, i32
  }
  func.func @transform_4(%arg0: i32, %arg1: i32, %arg2: i32) -> (i32, i32) {
    %c0_i32 = arith.constant 0 : i32
    return %arg0, %arg1 : i32, i32
  }
}

module attributes {stable_mosaic.version = 11 : i64} {
  func.func @_log_softmax_axis1_kernel(%arg0: i32, %arg1: memref<2x8x16xf32, #tpu.memory_space<vmem>>, %arg2: memref<2x8x16xf32, #tpu.memory_space<vmem>>) attributes {dimension_semantics = [#tpu.dimension_semantics<arbitrary>], iteration_bounds = array<i64: 1>, scalar_prefetch = 0 : i64, scratch_operands = 0 : i64, tpu.core_type = #tpu.core_type<tc>, window_params = [{pipeline_mode = #tpu.pipeline_mode<synchronous>, transform_indices = @transform_0, window_bounds = array<i64: 2, 8, 16>}, {pipeline_mode = #tpu.pipeline_mode<synchronous>, transform_indices = @transform_1, window_bounds = array<i64: 2, 8, 16>}]} {
    %c0 = arith.constant 0 : index
    %c0_0 = arith.constant 0 : index
    %c0_1 = arith.constant 0 : index
    %0 = vector.load %arg1[%c0, %c0_0, %c0_1] : memref<2x8x16xf32, #tpu.memory_space<vmem>>, vector<2x8x16xf32>
    %cst = arith.constant dense<0xFF800000> : vector<2x16xf32>
    %1 = vector.multi_reduction <maximumf>, %0, %cst [1] : vector<2x8x16xf32> to vector<2x16xf32>
    %2 = vector.shape_cast %1 : vector<2x16xf32> to vector<2x1x16xf32>
    %3 = vector.broadcast %2 : vector<2x1x16xf32> to vector<2x8x16xf32>
    %4 = arith.subf %0, %3 : vector<2x8x16xf32>
    %5 = math.exp %4 : vector<2x8x16xf32>
    %cst_2 = arith.constant dense<0.000000e+00> : vector<2x16xf32>
    %6 = vector.multi_reduction <add>, %5, %cst_2 [1] : vector<2x8x16xf32> to vector<2x16xf32>
    %7 = vector.shape_cast %6 : vector<2x16xf32> to vector<2x1x16xf32>
    %8 = math.log %7 : vector<2x1x16xf32>
    %9 = arith.addf %8, %2 : vector<2x1x16xf32>
    %10 = vector.broadcast %9 : vector<2x1x16xf32> to vector<2x8x16xf32>
    %11 = arith.subf %0, %10 : vector<2x8x16xf32>
    %c0_3 = arith.constant 0 : index
    %c0_4 = arith.constant 0 : index
    %c0_5 = arith.constant 0 : index
    %12 = vector.load %arg2[%c0_3, %c0_4, %c0_5] : memref<2x8x16xf32, #tpu.memory_space<vmem>>, vector<2x8x16xf32>
    tpu.vector_store %arg2[%c0_3, %c0_4, %c0_5], %11 {strides = array<i32>} : memref<2x8x16xf32, #tpu.memory_space<vmem>>, vector<2x8x16xf32>,
    return
  }
  func.func @transform_0(%arg0: i32) -> (i32, i32, i32) {
    %c0_i32 = arith.constant 0 : i32
    %c0_i32_0 = arith.constant 0 : i32
    %c0_i32_1 = arith.constant 0 : i32
    %c0_i32_2 = arith.constant 0 : i32
    return %c0_i32, %c0_i32_0, %c0_i32_1 : i32, i32, i32
  }
  func.func @transform_1(%arg0: i32) -> (i32, i32, i32) {
    %c0_i32 = arith.constant 0 : i32
    %c0_i32_0 = arith.constant 0 : i32
    %c0_i32_1 = arith.constant 0 : i32
    %c0_i32_2 = arith.constant 0 : i32
    return %c0_i32, %c0_i32_0, %c0_i32_1 : i32, i32, i32
  }
}

</mosaic_0001>

<llo_original>
// kernel: vae_forward.15
$region0: #{vae_forward.15}
  #allocation0 [shape = 'u32[]', space=smem, size = 0x4, offset = 0x4, fixed_abs, tag = 'smem constant byte address 0x4 - core index']
  #allocation1 [shape = 'u32[144,128]{1,0:T(1,128)}', space=vmem, size = 0x12000, scoped, tag = 'internal scratch']
  #allocation2 [shape = 'f32[256,128]{1,0:T(8,128)}', space=vmem, size = 0x20000, scoped, tag = 'scratch operand']
  #allocation3 [shape = 'f32[1]{0:T(128)S(6)}', space=smem, size = 0x200, scoped, tag = 'scoped memory for vae_forward.15']
  %s0 = inlined_call_operand.<no memory space> [shape: f32[1], index: 0, kind: input, shape index: {}]
  %s1 = inlined_call_operand.vmem [shape: bf16[8192,128], index: 1, kind: input, shape index: {}]
  %s2 = inlined_call_operand.vmem [shape: bf16[128,128], index: 2, kind: input, shape index: {}]
  %s3 = inlined_call_operand.vmem [shape: f32[1,128], index: 3, kind: input, shape index: {}]
  %s4 = inlined_call_operand.vmem [shape: f32[8192,128], index: 4, kind: output, shape index: {}]
  %s5 = sld [smem:[#allocation0]]
  $region57: #{vae_forward.15} parent=0
    _
  %s7 = ssub.s32 1, %s5
  %s8 = scalar_select 0, %s7, %s5
  %9 = sst [smem:[#allocation3]] %s0
  loop: start=0, step=1, limit=34
  $region2: #{vae_forward.15} parent=0 // loop_pre_header
    _
  $region3: #{vae_forward.15} parent=0 // loop_header
    %s11 = sphi 0, %s15
    %p12 = scmp.ge.s32.totalorder %s11, 34
    %s18 = sphi 0, %s37
    %s19 = sphi 0, %s33
    %s20 = sphi 0, %s29
    %s21 = sphi 0, %s18
    %s22 = sphi 0, %s19
    %s23 = sphi 0, %s20
    %s24 = sphi 0, %s21
    %s25 = sphi 0, %s22
    %s26 = sphi 0, %s23
    %s38 = sphi 0, %s38
    %s40 = sphi 0, %s38
    %s41 = sphi 0, %s40
    %s55 = sphi 0, %s41
    %s63 = sphi 0, %s65
    %s66 = sphi 0, %s63
    %s67 = sphi 0, %s66
    %s83 = sphi 0, %s67
    %s91 = sphi 0, %s93
    %s94 = sphi 0, %s91
    %s95 = sphi 0, %s94
    %s111 = sphi 0, %s95
    %s117 = sphi 0, %s119
    %s120 = sphi 0, %s117
    %s121 = sphi 0, %s120
    %s137 = sphi 0, %s121
    %s145 = sphi 0, %s147
    %s148 = sphi 0, %s145
    %s149 = sphi 0, %s148
    %s165 = sphi 0, %s149
  $region4: #{vae_forward.15} parent=0 // loop_header_branch
    %14 = sbr.rel (%p12) target = $region8
  $region5: #{vae_forward.15} parent=0 // loop_body
    %s16 = ssub.s32 %s11, 1
    %s17 = ssub.s32 %s11, 2
    %s27 = sadd.s32 1, %s20
    %p28 = scmp.ge.s32.totalorder %s27, 1
    %s29 = scalar_select %p28, 0, %s27
    %s30 = sadd.s32 1, %s19
    %s31 = scalar_select %p28, %s30, %s19
    %p32 = scmp.ge.s32.totalorder %s31, 1
    %s33 = scalar_select %p32, 0, %s31
    %s34 = sadd.s32 1, %s18
    %s35 = scalar_select %p32, %s34, %s18
    %p36 = scmp.ge.s32.totalorder %s35, 32
    %s37 = scalar_select %p36, 0, %s35
    %s39 = sadd.s32 %s38, 1
    %p42 = scmp.eq.s32.totalorder %s11, 31
    %p43 = scmp.ne.s32.totalorder %s38, %s40
    %p44 = scmp.eq.s32.totalorder %s11, 0
    %p45 = por %p43, %p44
    %p46 = scmp.ne.s32.totalorder %s38, %s40
    %p47 = scmp.eq.s32.totalorder %s16, 31
    %p48 = por %p46, %p47
    %p49 = scmp.ne.s32.totalorder %s40, %s41
    %p50 = scmp.eq.s32.totalorder %s16, 0
    %p51 = por %p49, %p50
    %p52 = scmp.ne.s32.totalorder %s40, %s41
    %p53 = scmp.eq.s32.totalorder %s17, 31
    %p54 = por %p52, %p53
    %p56 = scmp.ne.s32.totalorder %s41, %s55
    %p57 = scmp.eq.s32.totalorder %s17, 0
    %p58 = por %p56, %p57
    %s59 = ssub.s32 %s18, %s37
    %s60 = ssub.s32 %s20, %s29
    %s61 = sor.u32 %s59, %s60
    %p62 = scmp.eq.s32.totalorder %s61, 0
    %s64 = sadd.s32 %s63, 1
    %s65 = scalar_select %p62, %s63, %s64
    %p68 = pneg %p62
    %p69 = scmp.eq.s32.totalorder %s11, 31
    %p70 = por %p68, %p69
    %p71 = scmp.ne.s32.totalorder %s63, %s66
    %p72 = scmp.eq.s32.totalorder %s11, 0
    %p73 = por %p71, %p72
    %p74 = scmp.ne.s32.totalorder %s63, %s66
    %p75 = scmp.eq.s32.totalorder %s16, 31
    %p76 = por %p74, %p75
    %p77 = scmp.ne.s32.totalorder %s66, %s67
    %p78 = scmp.eq.s32.totalorder %s16, 0
    %p79 = por %p77, %p78
    %p80 = scmp.ne.s32.totalorder %s66, %s67
    %p81 = scmp.eq.s32.totalorder %s17, 31
    %p82 = por %p80, %p81
    %p84 = scmp.ne.s32.totalorder %s67, %s83
    %p85 = scmp.eq.s32.totalorder %s17, 0
    %p86 = por %p84, %p85
    %s87 = ssub.s32 %s20, %s29
    %s88 = ssub.s32 %s19, %s33
    %s89 = sor.u32 %s87, %s88
    %p90 = scmp.eq.s32.totalorder %s89, 0
    %s92 = sadd.s32 %s91, 1
    %s93 = scalar_select %p90, %s91, %s92
    %p96 = pneg %p90
    %p97 = scmp.eq.s32.totalorder %s11, 31
    %p98 = por %p96, %p97
    %p99 = scmp.ne.s32.totalorder %s91, %s94
    %p100 = scmp.eq.s32.totalorder %s11, 0
    %p101 = por %p99, %p100
    %p102 = scmp.ne.s32.totalorder %s91, %s94
    %p103 = scmp.eq.s32.totalorder %s16, 31
    %p104 = por %p102, %p103
    %p105 = scmp.ne.s32.totalorder %s94, %s95
    %p106 = scmp.eq.s32.totalorder %s16, 0
    %p107 = por %p105, %p106
    %p108 = scmp.ne.s32.totalorder %s94, %s95
    %p109 = scmp.eq.s32.totalorder %s17, 31
    %p110 = por %p108, %p109
    %p112 = scmp.ne.s32.totalorder %s95, %s111
    %p113 = scmp.eq.s32.totalorder %s17, 0
    %p114 = por %p112, %p113
    %s115 = ssub.s32 %s19, %s33
    %p116 = scmp.eq.s32.totalorder %s115, 0
    %s118 = sadd.s32 %s117, 1
    %s119 = scalar_select %p116, %s117, %s118
    %p122 = pneg %p116
    %p123 = scmp.eq.s32.totalorder %s11, 31
    %p124 = por %p122, %p123
    %p125 = scmp.ne.s32.totalorder %s117, %s120
    %p126 = scmp.eq.s32.totalorder %s11, 0
    %p127 = por %p125, %p126
    %p128 = scmp.ne.s32.totalorder %s117, %s120
    %p129 = scmp.eq.s32.totalorder %s16, 31
    %p130 = por %p128, %p129
    %p131 = scmp.ne.s32.totalorder %s120, %s121
    %p132 = scmp.eq.s32.totalorder %s16, 0
    %p133 = por %p131, %p132
    %p134 = scmp.ne.s32.totalorder %s120, %s121
    %p135 = scmp.eq.s32.totalorder %s17, 31
    %p136 = por %p134, %p135
    %p138 = scmp.ne.s32.totalorder %s121, %s137
    %p139 = scmp.eq.s32.totalorder %s17, 0
    %p140 = por %p138, %p139
    %s141 = ssub.s32 %s18, %s37
    %s142 = ssub.s32 %s19, %s33
    %s143 = sor.u32 %s141, %s142
    %p144 = scmp.eq.s32.totalorder %s143, 0
    %s146 = sadd.s32 %s145, 1
    %s147 = scalar_select %p144, %s145, %s146
    %p150 = pneg %p144
    %p151 = scmp.eq.s32.totalorder %s11, 31
    %p152 = por %p150, %p151
    %p153 = scmp.ne.s32.totalorder %s145, %s148
    %p154 = scmp.eq.s32.totalorder %s11, 0
    %p155 = por %p153, %p154
    %p156 = scmp.ne.s32.totalorder %s145, %s148
    %p157 = scmp.eq.s32.totalorder %s16, 31
    %p158 = por %p156, %p157
    %p159 = scmp.ne.s32.totalorder %s148, %s149
    %p160 = scmp.eq.s32.totalorder %s16, 0
    %p161 = por %p159, %p160
    %p162 = scmp.ne.s32.totalorder %s148, %s149
    %p163 = scmp.eq.s32.totalorder %s17, 31
    %p164 = por %p162, %p163
    %p166 = scmp.ne.s32.totalorder %s149, %s165
    %p167 = scmp.eq.s32.totalorder %s17, 0
    %p168 = por %p166, %p167
    %p169 = scmp.le.s32.totalorder 1, %s11
    %p170 = scmp.lt.s32.totalorder %s11, 33
    %p171 = pnand %p169, %p170
    %p172 = pneg %p171
    // Predicated region
    $region9: #{vae_forward.15} parent=5 // pred_check
      _
    $region10: #{vae_forward.15} parent=5 // pred_check_branch
      %174 = sbr.rel (%p171) target = $region12
    $region11: #{vae_forward.15} parent=5 // pred_region
      %s175 = ssub.s32 %s11, 1
      // Predicated region
      $region13: #{vae_forward.15} parent=11 // pred_check
        %p176 = pneg %p51
      $region14: #{vae_forward.15} parent=11 // pred_check_branch
        %178 = sbr.rel (%p176) target = $region16
      $region15: #{vae_forward.15} parent=11 // pred_region
        _
      $region16: #{vae_forward.15} parent=11 // pred_fallthru
        _
      // Predicated region
      $region17: #{vae_forward.15} parent=11 // pred_check
        %p179 = pneg %p107
      $region18: #{vae_forward.15} parent=11 // pred_check_branch
        %181 = sbr.rel (%p179) target = $region20
      $region19: #{vae_forward.15} parent=11 // pred_region
        %s182 = smul.u32 16, %s23
        %p183 = scmp.lt.s32.totalorder %s182, 15
        %s184 = scalar_select %p183, %s182, 15
        %p185 = scmp.lt.s32.totalorder %s22, 0
        %s186 = scalar_select %p185, %s22, 0
        %s187 = sadd.s32 %s186, %s184
        %s188 = smul.addr %s187, 4
        %s189 = scalar_lea.vmem %s2, %s188
        %s190 = smul.u32 16, %s23
      $region20: #{vae_forward.15} parent=11 // pred_fallthru
        _
      // Predicated region
      $region21: #{vae_forward.15} parent=11 // pred_check
        %p191 = pneg %p133
      $region22: #{vae_forward.15} parent=11 // pred_check_branch
        %193 = sbr.rel (%p191) target = $region24
      $region23: #{vae_forward.15} parent=11 // pred_region
        %p194 = scmp.lt.s32.totalorder %s22, 0
        %s195 = scalar_select %p194, %s22, 0
        %s196 = scalar_lea.vmem %s3, %s195
      $region24: #{vae_forward.15} parent=11 // pred_fallthru
        _
    $region12: #{vae_forward.15} parent=5 // pred_fallthru
      _
    %p197 = scmp.lt.s32.totalorder %s11, 32
    // Predicated region
    $region25: #{vae_forward.15} parent=5 // pred_check
      %p198 = pneg %p197
    $region26: #{vae_forward.15} parent=5 // pred_check_branch
      %200 = sbr.rel (%p198) target = $region28
    $region27: #{vae_forward.15} parent=5 // pred_region
      // Predicated region
      $region29: #{vae_forward.15} parent=27 // pred_check
        %p201 = pneg %p73
      $region30: #{vae_forward.15} parent=27 // pred_check_branch
        %203 = sbr.rel (%p201) target = $region32
      $region31: #{vae_forward.15} parent=27 // pred_region
        %s204 = smul.u32 32, %s18
        %p205 = scmp.lt.s32.totalorder %s204, 1023
        %s206 = scalar_select %p205, %s204, 1023
        %p207 = scmp.lt.s32.totalorder %s20, 0
        %s208 = scalar_select %p207, %s20, 0
        %s209 = sadd.s32 %s208, %s206
        %s210 = smul.addr %s209, 4
        %s211 = scalar_lea.vmem %s1, %s210
        %s212 = smul.u32 32, %s18
      $region32: #{vae_forward.15} parent=27 // pred_fallthru
        _
    $region28: #{vae_forward.15} parent=5 // pred_fallthru
      _
    %p213 = scmp.le.s32.totalorder 1, %s11
    %p214 = scmp.lt.s32.totalorder %s11, 33
    %p215 = pnand %p213, %p214
    %p216 = pneg %p215
    // Predicated region
    $region33: #{vae_forward.15} parent=5 // pred_check
      _
    $region34: #{vae_forward.15} parent=5 // pred_check_branch
      %218 = sbr.rel (%p215) target = $region36
    $region35: #{vae_forward.15} parent=5 // pred_region
      %s219 = ssub.s32 %s11, 1
      %p220 = pneg %p51
      %p221 = pneg %p48
      %s222 = smul.u32 32, %s21
      %p223 = scmp.lt.s32.totalorder %s222, 1023
      %s224 = scalar_select %p223, %s222, 1023
      %p225 = scmp.lt.s32.totalorder %s23, 0
      %s226 = scalar_select %p225, %s23, 0
      %s227 = sadd.s32 %s226, %s224
      %s228 = smul.addr %s227, 4
      %s229 = scalar_lea.vmem %s1, %s228
      %p230 = pneg %p79
      %p231 = pneg %p76
      %s232 = smul.u32 16, %s23
      %p233 = scmp.lt.s32.totalorder %s232, 15
      %s234 = scalar_select %p233, %s232, 15
      %p235 = scmp.lt.s32.totalorder %s22, 0
      %s236 = scalar_select %p235, %s22, 0
      %s237 = sadd.s32 %s236, %s234
      %s238 = smul.addr %s237, 4
      %s239 = scalar_lea.vmem %s2, %s238
      %p240 = pneg %p107
      %p241 = pneg %p104
      %p242 = scmp.lt.s32.totalorder %s22, 0
      %s243 = scalar_select %p242, %s22, 0
      %s244 = scalar_lea.vmem %s3, %s243
      %p245 = pneg %p133
      %p246 = pneg %p130
      %p247 = pneg %p161
      %p248 = pneg %p158
      %s249 = smul.u32 32, %s21
      %p250 = scmp.lt.s32.totalorder %s249, 1023
      %s251 = scalar_select %p250, %s249, 1023
      %p252 = scmp.lt.s32.totalorder %s22, 0
      %s253 = scalar_select %p252, %s22, 0
      %s254 = sadd.s32 %s253, %s251
      %s255 = smul.addr %s254, 8
      %s256 = scalar_lea.vmem %s4, %s255
      %s257 = smul.u32 32, %s21
      %p258 = scmp.lt.s32.totalorder %s257, 1023
      %s259 = scalar_select %p258, %s257, 1023
      %p260 = scmp.lt.s32.totalorder %s23, 0
      %s261 = scalar_select %p260, %s23, 0
      %s262 = sadd.s32 %s261, %s259
      %s263 = smul.addr %s262, 4
      %s264 = scalar_lea.vmem %s1, %s263
      %s265 = smul.u32 32, %s21
      %s266 = smul.u32 16, %s23
      %p267 = scmp.lt.s32.totalorder %s266, 15
      %s268 = scalar_select %p267, %s266, 15
      %p269 = scmp.lt.s32.totalorder %s22, 0
      %s270 = scalar_select %p269, %s22, 0
      %s271 = sadd.s32 %s270, %s268
      %s272 = smul.addr %s271, 4
      %s273 = scalar_lea.vmem %s2, %s272
      %s274 = smul.u32 16, %s23
      %p275 = scmp.lt.s32.totalorder %s22, 0
      %s276 = scalar_select %p275, %s22, 0
      %s277 = scalar_lea.vmem %s3, %s276
      %s278 = smul.u32 32, %s21
      %p279 = scmp.lt.s32.totalorder %s278, 1023
      %s280 = scalar_select %p279, %s278, 1023
      %p281 = scmp.lt.s32.totalorder %s22, 0
      %s282 = scalar_select %p281, %s22, 0
      %s283 = sadd.s32 %s282, %s280
      %s284 = smul.addr %s283, 8
      %s285 = scalar_lea.vmem %s4, %s284
      %s286 = smul.u32 32, %s21
      %p288 = scmp.eq.s32.totalorder %s23, 0
      // Predicated region
      $region37: #{vae_forward.15} parent=35 // pred_check
        %p289 = pneg %p288
      $region38: #{vae_forward.15} parent=35 // pred_check_branch
        %291 = sbr.rel (%p289) target = $region40
      $region39: #{vae_forward.15} parent=35 // pred_region
        %292 = vst [vmem:[#allocation2] sm:$0xff] 0.0
        %293 = vst [vmem:[#allocation2 + $0x8] sm:$0xff] 0.0
        %294 = vst [vmem:[#allocation2 + $0x10] sm:$0xff] 0.0
        %295 = vst [vmem:[#allocation2 + $0x18] sm:$0xff] 0.0
        %296 = vst [vmem:[#allocation2 + $0x20] sm:$0xff] 0.0
        %297 = vst [vmem:[#allocation2 + $0x28] sm:$0xff] 0.0
        %298 = vst [vmem:[#allocation2 + $0x30] sm:$0xff] 0.0
        %299 = vst [vmem:[#allocation2 + $0x38] sm:$0xff] 0.0
        %300 = vst [vmem:[#allocation2 + $0x40] sm:$0xff] 0.0
        %301 = vst [vmem:[#allocation2 + $0x48] sm:$0xff] 0.0
        %302 = vst [vmem:[#allocation2 + $0x50] sm:$0xff] 0.0
        %303 = vst [vmem:[#allocation2 + $0x58] sm:$0xff] 0.0
        %304 = vst [vmem:[#allocation2 + $0x60] sm:$0xff] 0.0
        %305 = vst [vmem:[#allocation2 + $0x68] sm:$0xff] 0.0
        %306 = vst [vmem:[#allocation2 + $0x70] sm:$0xff] 0.0
        %307 = vst [vmem:[#allocation2 + $0x78] sm:$0xff] 0.0
        %308 = vst [vmem:[#allocation2 + $0x80] sm:$0xff] 0.0
        %309 = vst [vmem:[#allocation2 + $0x88] sm:$0xff] 0.0
        %310 = vst [vmem:[#allocation2 + $0x90] sm:$0xff] 0.0
        %311 = vst [vmem:[#allocation2 + $0x98] sm:$0xff] 0.0
        %312 = vst [vmem:[#allocation2 + $0xa0] sm:$0xff] 0.0
        %313 = vst [vmem:[#allocation2 + $0xa8] sm:$0xff] 0.0
        %314 = vst [vmem:[#allocation2 + $0xb0] sm:$0xff] 0.0
        %315 = vst [vmem:[#allocation2 + $0xb8] sm:$0xff] 0.0
        %316 = vst [vmem:[#allocation2 + $0xc0] sm:$0xff] 0.0
        %317 = vst [vmem:[#allocation2 + $0xc8] sm:$0xff] 0.0
        %318 = vst [vmem:[#allocation2 + $0xd0] sm:$0xff] 0.0
        %319 = vst [vmem:[#allocation2 + $0xd8] sm:$0xff] 0.0
        %320 = vst [vmem:[#allocation2 + $0xe0] sm:$0xff] 0.0
        %321 = vst [vmem:[#allocation2 + $0xe8] sm:$0xff] 0.0
        %322 = vst [vmem:[#allocation2 + $0xf0] sm:$0xff] 0.0
        %323 = vst [vmem:[#allocation2 + $0xf8] sm:$0xff] 0.0
      $region40: #{vae_forward.15} parent=35 // pred_fallthru
        _
      %v324 = vld [vmem:[#allocation2] sm:$0xff]
      %v325 = vld [vmem:[#allocation2 + $0x8] sm:$0xff]
      %v326 = vld [vmem:[#allocation2 + $0x10] sm:$0xff]
      %v327 = vld [vmem:[#allocation2 + $0x18] sm:$0xff]
      %v328 = vld [vmem:[#allocation2 + $0x20] sm:$0xff]
      %v329 = vld [vmem:[#allocation2 + $0x28] sm:$0xff]
      %v330 = vld [vmem:[#allocation2 + $0x30] sm:$0xff]
      %v331 = vld [vmem:[#allocation2 + $0x38] sm:$0xff]
      %v332 = vld [vmem:[#allocation2 + $0x40] sm:$0xff]
      %v333 = vld [vmem:[#allocation2 + $0x48] sm:$0xff]
      %v334 = vld [vmem:[#allocation2 + $0x50] sm:$0xff]
      %v335 = vld [vmem:[#allocation2 + $0x58] sm:$0xff]
      %v336 = vld [vmem:[#allocation2 + $0x60] sm:$0xff]
      %v337 = vld [vmem:[#allocation2 + $0x68] sm:$0xff]
      %v338 = vld [vmem:[#allocation2 + $0x70] sm:$0xff]
      %v339 = vld [vmem:[#allocation2 + $0x78] sm:$0xff]
      %v340 = vld [vmem:[#allocation2 + $0x80] sm:$0xff]
      %v341 = vld [vmem:[#allocation2 + $0x88] sm:$0xff]
      %v342 = vld [vmem:[#allocation2 + $0x90] sm:$0xff]
      %v343 = vld [vmem:[#allocation2 + $0x98] sm:$0xff]
      %v344 = vld [vmem:[#allocation2 + $0xa0] sm:$0xff]
      %v345 = vld [vmem:[#allocation2 + $0xa8] sm:$0xff]
      %v346 = vld [vmem:[#allocation2 + $0xb0] sm:$0xff]
      %v347 = vld [vmem:[#allocation2 + $0xb8] sm:$0xff]
      %v348 = vld [vmem:[#allocation2 + $0xc0] sm:$0xff]
      %v349 = vld [vmem:[#allocation2 + $0xc8] sm:$0xff]
      %v350 = vld [vmem:[#allocation2 + $0xd0] sm:$0xff]
      %v351 = vld [vmem:[#allocation2 + $0xd8] sm:$0xff]
      %v352 = vld [vmem:[#allocation2 + $0xe0] sm:$0xff]
      %v353 = vld [vmem:[#allocation2 + $0xe8] sm:$0xff]
      %v354 = vld [vmem:[#allocation2 + $0xf0] sm:$0xff]
      %v355 = vld [vmem:[#allocation2 + $0xf8] sm:$0xff]
      %v356 = vld [vmem:[%s264] sm:$0xf]
      %v357 = vld [vmem:[%s264 + $0x4] sm:$0xf]
      %v358 = vld [vmem:[%s264 + $0x8] sm:$0xf]
      %v359 = vld [vmem:[%s264 + $0xc] sm:$0xf]
      %v360 = vld [vmem:[%s264 + $0x10] sm:$0xf]
      %v361 = vld [vmem:[%s264 + $0x14] sm:$0xf]
      %v362 = vld [vmem:[%s264 + $0x18] sm:$0xf]
      %v363 = vld [vmem:[%s264 + $0x1c] sm:$0xf]
      %v364 = vld [vmem:[%s264 + $0x20] sm:$0xf]
      %v365 = vld [vmem:[%s264 + $0x24] sm:$0xf]
      %v366 = vld [vmem:[%s264 + $0x28] sm:$0xf]
      %v367 = vld [vmem:[%s264 + $0x2c] sm:$0xf]
      %v368 = vld [vmem:[%s264 + $0x30] sm:$0xf]
      %v369 = vld [vmem:[%s264 + $0x34] sm:$0xf]
      %v370 = vld [vmem:[%s264 + $0x38] sm:$0xf]
      %v371 = vld [vmem:[%s264 + $0x3c] sm:$0xf]
      %v372 = vld [vmem:[%s264 + $0x40] sm:$0xf]
      %v373 = vld [vmem:[%s264 + $0x44] sm:$0xf]
      %v374 = vld [vmem:[%s264 + $0x48] sm:$0xf]
      %v375 = vld [vmem:[%s264 + $0x4c] sm:$0xf]
      %v376 = vld [vmem:[%s264 + $0x50] sm:$0xf]
      %v377 = vld [vmem:[%s264 + $0x54] sm:$0xf]
      %v378 = vld [vmem:[%s264 + $0x58] sm:$0xf]
      %v379 = vld [vmem:[%s264 + $0x5c] sm:$0xf]
      %v380 = vld [vmem:[%s264 + $0x60] sm:$0xf]
      %v381 = vld [vmem:[%s264 + $0x64] sm:$0xf]
      %v382 = vld [vmem:[%s264 + $0x68] sm:$0xf]
      %v383 = vld [vmem:[%s264 + $0x6c] sm:$0xf]
      %v384 = vld [vmem:[%s264 + $0x70] sm:$0xf]
      %v385 = vld [vmem:[%s264 + $0x74] sm:$0xf]
      %v386 = vld [vmem:[%s264 + $0x78] sm:$0xf]
      %v387 = vld [vmem:[%s264 + $0x7c] sm:$0xf]
      %v388 = vld [vmem:[%s273] sm:$0xf]
      %v389 = vld [vmem:[%s273 + $0x4] sm:$0xf]
      %v390 = vld [vmem:[%s273 + $0x8] sm:$0xf]
      %v391 = vld [vmem:[%s273 + $0xc] sm:$0xf]
      %v392 = vld [vmem:[%s273 + $0x10] sm:$0xf]
      %v393 = vld [vmem:[%s273 + $0x14] sm:$0xf]
      %v394 = vld [vmem:[%s273 + $0x18] sm:$0xf]
      %v395 = vld [vmem:[%s273 + $0x1c] sm:$0xf]
      %v396 = vld [vmem:[%s273 + $0x20] sm:$0xf]
      %v397 = vld [vmem:[%s273 + $0x24] sm:$0xf]
      %v398 = vld [vmem:[%s273 + $0x28] sm:$0xf]
      %v399 = vld [vmem:[%s273 + $0x2c] sm:$0xf]
      %v400 = vld [vmem:[%s273 + $0x30] sm:$0xf]
      %v401 = vld [vmem:[%s273 + $0x34] sm:$0xf]
      %v402 = vld [vmem:[%s273 + $0x38] sm:$0xf]
      %v403 = vld [vmem:[%s273 + $0x3c] sm:$0xf]
      %v436 = vunpack.c.l.b16 %v356
      %v437 = vunpack.c.l.b16 %v357
      %v438 = vunpack.c.l.b16 %v358
      %v439 = vunpack.c.l.b16 %v359
      %v440 = vunpack.c.l.b16 %v360
      %v441 = vunpack.c.l.b16 %v361
      %v442 = vunpack.c.l.b16 %v362
      %v443 = vunpack.c.l.b16 %v363
      %v444 = vunpack.c.l.b16 %v364
      %v445 = vunpack.c.l.b16 %v365
      %v446 = vunpack.c.l.b16 %v366
      %v447 = vunpack.c.l.b16 %v367
      %v448 = vunpack.c.l.b16 %v368
      %v449 = vunpack.c.l.b16 %v369
      %v450 = vunpack.c.l.b16 %v370
      %v451 = vunpack.c.l.b16 %v371
      %v452 = vunpack.c.l.b16 %v372
      %v453 = vunpack.c.l.b16 %v373
      %v454 = vunpack.c.l.b16 %v374
      %v455 = vunpack.c.l.b16 %v375
      %v456 = vunpack.c.l.b16 %v376
      %v457 = vunpack.c.l.b16 %v377
      %v458 = vunpack.c.l.b16 %v378
      %v459 = vunpack.c.l.b16 %v379
      %v460 = vunpack.c.l.b16 %v380
      %v461 = vunpack.c.l.b16 %v381
      %v462 = vunpack.c.l.b16 %v382
      %v463 = vunpack.c.l.b16 %v383
      %v464 = vunpack.c.l.b16 %v384
      %v465 = vunpack.c.l.b16 %v385
      %v466 = vunpack.c.l.b16 %v386
      %v467 = vunpack.c.l.b16 %v387
      %v468 = vpack.c.b16 %v437, %v436
      %v469 = vpack.c.b16 %v439, %v438
      %v470 = vpack.c.b16 %v441, %v440
      %v471 = vpack.c.b16 %v443, %v442
      %v472 = vpack.c.b16 %v445, %v444
      %v473 = vpack.c.b16 %v447, %v446
      %v474 = vpack.c.b16 %v449, %v448
      %v475 = vpack.c.b16 %v451, %v450
      %v476 = vpack.c.b16 %v453, %v452
      %v477 = vpack.c.b16 %v455, %v454
      %v478 = vpack.c.b16 %v457, %v456
      %v479 = vpack.c.b16 %v459, %v458
      %v480 = vpack.c.b16 %v461, %v460
      %v481 = vpack.c.b16 %v463, %v462
      %v482 = vpack.c.b16 %v465, %v464
      %v483 = vpack.c.b16 %v467, %v466
      %v516 = vunpack.c.l.b16 %v388
      %v517 = vunpack.c.l.b16 %v389
      %v518 = vunpack.c.l.b16 %v390
      %v519 = vunpack.c.l.b16 %v391
      %v520 = vunpack.c.l.b16 %v392
      %v521 = vunpack.c.l.b16 %v393
      %v522 = vunpack.c.l.b16 %v394
      %v523 = vunpack.c.l.b16 %v395
      %v524 = vunpack.c.l.b16 %v396
      %v525 = vunpack.c.l.b16 %v397
      %v526 = vunpack.c.l.b16 %v398
      %v527 = vunpack.c.l.b16 %v399
      %v528 = vunpack.c.l.b16 %v400
      %v529 = vunpack.c.l.b16 %v401
      %v530 = vunpack.c.l.b16 %v402
      %v531 = vunpack.c.l.b16 %v403
      %v532 = vpack.c.b16 %v517, %v516
      %v533 = vpack.c.b16 %v519, %v518
      %v534 = vpack.c.b16 %v521, %v520
      %v535 = vpack.c.b16 %v523, %v522
      %v536 = vpack.c.b16 %v525, %v524
      %v537 = vpack.c.b16 %v527, %v526
      %v538 = vpack.c.b16 %v529, %v528
      %v539 = vpack.c.b16 %v531, %v530
      %548 = vmatprep.subr.bf16.mxu0 0
      %549 = vmatpush1.bf16.msra.mxu0 %v532
      %550 = vmatprep.subr.bf16.mxu0 0
      %551 = vmatpush1.bf16.msra.mxu0 %v533
      %552 = vmatprep.subr.bf16.mxu0 0
      %553 = vmatpush1.bf16.msra.mxu0 %v534
      %554 = vmatprep.subr.bf16.mxu0 0
      %555 = vmatpush1.bf16.msra.mxu0 %v535
      %556 = vmatprep.subr.bf16.mxu0 0
      %557 = vmatpush1.bf16.msra.mxu0 %v536
      %558 = vmatprep.subr.bf16.mxu0 0
      %559 = vmatpush1.bf16.msra.mxu0 %v537
      %560 = vmatprep.subr.bf16.mxu0 0
      %561 = vmatpush1.bf16.msra.mxu0 %v538
      %562 = vmatprep.subr.bf16.mxu0 0
      %563 = vmatpush1.bf16.msra.mxu0 %v539
      %564 = vmatprep.subr.bf16.mxu0 0
      %565 = vmatpush1.bf16.msra.mxu0 0
      %566 = vmatprep.subr.bf16.mxu0 0
      %567 = vmatpush1.bf16.msra.mxu0 0
      %568 = vmatprep.subr.bf16.mxu0 0
      %569 = vmatpush1.bf16.msra.mxu0 0
      %570 = vmatprep.subr.bf16.mxu0 0
      %571 = vmatpush1.bf16.msra.mxu0 0
      %572 = vmatprep.subr.bf16.mxu0 0
      %573 = vmatpush1.bf16.msra.mxu0 0
      %574 = vmatprep.subr.bf16.mxu0 0
      %575 = vmatpush1.bf16.msra.mxu0 0
      %576 = vmatprep.subr.bf16.mxu0 0
      %577 = vmatpush1.bf16.msra.mxu0 0
      %578 = vmatprep.subr.bf16.mxu0 0
      %579 = vmatpush1.bf16.msra.mxu0 0
      %580 = vmatprep.mubr.bf16.mxu0 0
      %581 = vmatmul.mubr.bf16.gmra.mrb[0].mxu0 %v468
      %v582 = vpop.f32.mrb[0].mxu0
      %v583 = vadd.f32 0.0, %v582
      %v584 = vpop.f32.mrb[0].mxu0
      %v585 = vpop.f32.mrb[0].mxu0
      %v586 = vadd.f32 0.0, %v585
      %v587 = vpop.f32.mrb[0].mxu0
      %588 = vmatprep.mubr.bf16.mxu0 0
      %589 = vmatmul.mubr.bf16.gmra.mrb[0].mxu0 %v469
      %v590 = vpop.f32.mrb[0].mxu0
      %v591 = vadd.f32 0.0, %v590
      %v592 = vpop.f32.mrb[0].mxu0
      %v593 = vpop.f32.mrb[0].mxu0
      %v594 = vadd.f32 0.0, %v593
      %v595 = vpop.f32.mrb[0].mxu0
      %596 = vmatprep.mubr.bf16.mxu0 0
      %597 = vmatmul.mubr.bf16.gmra.mrb[0].mxu0 %v470
      %v598 = vpop.f32.mrb[0].mxu0
      %v599 = vadd.f32 0.0, %v598
      %v600 = vpop.f32.mrb[0].mxu0
      %v601 = vpop.f32.mrb[0].mxu0
      %v602 = vadd.f32 0.0, %v601
      %v603 = vpop.f32.mrb[0].mxu0
      %604 = vmatprep.mubr.bf16.mxu0 0
      %605 = vmatmul.mubr.bf16.gmra.mrb[0].mxu0 %v471
      %v606 = vpop.f32.mrb[0].mxu0
      %v607 = vadd.f32 0.0, %v606
      %v608 = vpop.f32.mrb[0].mxu0
      %v609 = vpop.f32.mrb[0].mxu0
      %v610 = vadd.f32 0.0, %v609
      %v611 = vpop.f32.mrb[0].mxu0
      %612 = vmatprep.mubr.bf16.mxu0 0
      %613 = vmatmul.mubr.bf16.gmra.mrb[0].mxu0 %v472
      %v614 = vpop.f32.mrb[0].mxu0
      %v615 = vadd.f32 0.0, %v614
      %v616 = vpop.f32.mrb[0].mxu0
      %v617 = vpop.f32.mrb[0].mxu0
      %v618 = vadd.f32 0.0, %v617
      %v619 = vpop.f32.mrb[0].mxu0
      %620 = vmatprep.mubr.bf16.mxu0 0
      %621 = vmatmul.mubr.bf16.gmra.mrb[0].mxu0 %v473
      %v622 = vpop.f32.mrb[0].mxu0
      %v623 = vadd.f32 0.0, %v622
      %v624 = vpop.f32.mrb[0].mxu0
      %v625 = vpop.f32.mrb[0].mxu0
      %v626 = vadd.f32 0.0, %v625
      %v627 = vpop.f32.mrb[0].mxu0
      %628 = vmatprep.mubr.bf16.mxu0 0
      %629 = vmatmul.mubr.bf16.gmra.mrb[0].mxu0 %v474
      %v630 = vpop.f32.mrb[0].mxu0
      %v631 = vadd.f32 0.0, %v630
      %v632 = vpop.f32.mrb[0].mxu0
      %v633 = vpop.f32.mrb[0].mxu0
      %v634 = vadd.f32 0.0, %v633
      %v635 = vpop.f32.mrb[0].mxu0
      %636 = vmatprep.mubr.bf16.mxu0 0
      %637 = vmatmul.mubr.bf16.gmra.mrb[0].mxu0 %v475
      %v638 = vpop.f32.mrb[0].mxu0
      %v639 = vadd.f32 0.0, %v638
      %v640 = vpop.f32.mrb[0].mxu0
      %v641 = vpop.f32.mrb[0].mxu0
      %v642 = vadd.f32 0.0, %v641
      %v643 = vpop.f32.mrb[0].mxu0
      %644 = vmatprep.mubr.bf16.mxu0 0
      %645 = vmatmul.mubr.bf16.gmra.mrb[0].mxu0 %v476
      %v646 = vpop.f32.mrb[0].mxu0
      %v647 = vadd.f32 0.0, %v646
      %v648 = vpop.f32.mrb[0].mxu0
      %v649 = vpop.f32.mrb[0].mxu0
      %v650 = vadd.f32 0.0, %v649
      %v651 = vpop.f32.mrb[0].mxu0
      %652 = vmatprep.mubr.bf16.mxu0 0
      %653 = vmatmul.mubr.bf16.gmra.mrb[0].mxu0 %v477
      %v654 = vpop.f32.mrb[0].mxu0
      %v655 = vadd.f32 0.0, %v654
      %v656 = vpop.f32.mrb[0].mxu0
      %v657 = vpop.f32.mrb[0].mxu0
      %v658 = vadd.f32 0.0, %v657
      %v659 = vpop.f32.mrb[0].mxu0
      %660 = vmatprep.mubr.bf16.mxu0 0
      %661 = vmatmul.mubr.bf16.gmra.mrb[0].mxu0 %v478
      %v662 = vpop.f32.mrb[0].mxu0
      %v663 = vadd.f32 0.0, %v662
      %v664 = vpop.f32.mrb[0].mxu0
      %v665 = vpop.f32.mrb[0].mxu0
      %v666 = vadd.f32 0.0, %v665
      %v667 = vpop.f32.mrb[0].mxu0
      %668 = vmatprep.mubr.bf16.mxu0 0
      %669 = vmatmul.mubr.bf16.gmra.mrb[0].mxu0 %v479
      %v670 = vpop.f32.mrb[0].mxu0
      %v671 = vadd.f32 0.0, %v670
      %v672 = vpop.f32.mrb[0].mxu0
      %v673 = vpop.f32.mrb[0].mxu0
      %v674 = vadd.f32 0.0, %v673
      %v675 = vpop.f32.mrb[0].mxu0
      %676 = vmatprep.mubr.bf16.mxu0 0
      %677 = vmatmul.mubr.bf16.gmra.mrb[0].mxu0 %v480
      %v678 = vpop.f32.mrb[0].mxu0
      %v679 = vadd.f32 0.0, %v678
      %v680 = vpop.f32.mrb[0].mxu0
      %v681 = vpop.f32.mrb[0].mxu0
      %v682 = vadd.f32 0.0, %v681
      %v683 = vpop.f32.mrb[0].mxu0
      %684 = vmatprep.mubr.bf16.mxu0 0
      %685 = vmatmul.mubr.bf16.gmra.mrb[0].mxu0 %v481
      %v686 = vpop.f32.mrb[0].mxu0
      %v687 = vadd.f32 0.0, %v686
      %v688 = vpop.f32.mrb[0].mxu0
      %v689 = vpop.f32.mrb[0].mxu0
      %v690 = vadd.f32 0.0, %v689
      %v691 = vpop.f32.mrb[0].mxu0
      %692 = vmatprep.mubr.bf16.mxu0 0
      %693 = vmatmul.mubr.bf16.gmra.mrb[0].mxu0 %v482
      %v694 = vpop.f32.mrb[0].mxu0
      %v695 = vadd.f32 0.0, %v694
      %v696 = vpop.f32.mrb[0].mxu0
      %v697 = vpop.f32.mrb[0].mxu0
      %v698 = vadd.f32 0.0, %v697
      %v699 = vpop.f32.mrb[0].mxu0
      %700 = vmatprep.mubr.bf16.mxu0 0
      %701 = vmatmul.mubr.bf16.gmra.mrb[0].mxu0 %v483
      %v702 = vpop.f32.mrb[0].mxu0
      %v703 = vadd.f32 0.0, %v702
      %v704 = vpop.f32.mrb[0].mxu0
      %v705 = vpop.f32.mrb[0].mxu0
      %v706 = vadd.f32 0.0, %v705
      %v707 = vpop.f32.mrb[0].mxu0
      %708 = vdwg.mxu0
      %v709 = vadd.f32 %v324, %v583
      %v710 = vadd.f32 %v325, %v586
      %v711 = vadd.f32 %v326, %v591
      %v712 = vadd.f32 %v327, %v594
      %v713 = vadd.f32 %v328, %v599
      %v714 = vadd.f32 %v329, %v602
      %v715 = vadd.f32 %v330, %v607
      %v716 = vadd.f32 %v331, %v610
      %v717 = vadd.f32 %v332, %v615
      %v718 = vadd.f32 %v333, %v618
      %v719 = vadd.f32 %v334, %v623
      %v720 = vadd.f32 %v335, %v626
      %v721 = vadd.f32 %v336, %v631
      %v722 = vadd.f32 %v337, %v634
      %v723 = vadd.f32 %v338, %v639
      %v724 = vadd.f32 %v339, %v642
      %v725 = vadd.f32 %v340, %v647
      %v726 = vadd.f32 %v341, %v650
      %v727 = vadd.f32 %v342, %v655
      %v728 = vadd.f32 %v343, %v658
      %v729 = vadd.f32 %v344, %v663
      %v730 = vadd.f32 %v345, %v666
      %v731 = vadd.f32 %v346, %v671
      %v732 = vadd.f32 %v347, %v674
      %v733 = vadd.f32 %v348, %v679
      %v734 = vadd.f32 %v349, %v682
      %v735 = vadd.f32 %v350, %v687
      %v736 = vadd.f32 %v351, %v690
      %v737 = vadd.f32 %v352, %v695
      %v738 = vadd.f32 %v353, %v698
      %v739 = vadd.f32 %v354, %v703
      %v740 = vadd.f32 %v355, %v706
      %741 = vst [vmem:[#allocation2] sm:$0xff] %v709
      %742 = vst [vmem:[#allocation2 + $0x8] sm:$0xff] %v710
      %743 = vst [vmem:[#allocation2 + $0x10] sm:$0xff] %v711
      %744 = vst [vmem:[#allocation2 + $0x18] sm:$0xff] %v712
      %745 = vst [vmem:[#allocation2 + $0x20] sm:$0xff] %v713
      %746 = vst [vmem:[#allocation2 + $0x28] sm:$0xff] %v714
      %747 = vst [vmem:[#allocation2 + $0x30] sm:$0xff] %v715
      %748 = vst [vmem:[#allocation2 + $0x38] sm:$0xff] %v716
      %749 = vst [vmem:[#allocation2 + $0x40] sm:$0xff] %v717
      %750 = vst [vmem:[#allocation2 + $0x48] sm:$0xff] %v718
      %751 = vst [vmem:[#allocation2 + $0x50] sm:$0xff] %v719
      %752 = vst [vmem:[#allocation2 + $0x58] sm:$0xff] %v720
      %753 = vst [vmem:[#allocation2 + $0x60] sm:$0xff] %v721
      %754 = vst [vmem:[#allocation2 + $0x68] sm:$0xff] %v722
      %755 = vst [vmem:[#allocation2 + $0x70] sm:$0xff] %v723
      %756 = vst [vmem:[#allocation2 + $0x78] sm:$0xff] %v724
      %757 = vst [vmem:[#allocation2 + $0x80] sm:$0xff] %v725
      %758 = vst [vmem:[#allocation2 + $0x88] sm:$0xff] %v726
      %759 = vst [vmem:[#allocation2 + $0x90] sm:$0xff] %v727
      %760 = vst [vmem:[#allocation2 + $0x98] sm:$0xff] %v728
      %761 = vst [vmem:[#allocation2 + $0xa0] sm:$0xff] %v729
      %762 = vst [vmem:[#allocation2 + $0xa8] sm:$0xff] %v730
      %763 = vst [vmem:[#allocation2 + $0xb0] sm:$0xff] %v731
      %764 = vst [vmem:[#allocation2 + $0xb8] sm:$0xff] %v732
      %765 = vst [vmem:[#allocation2 + $0xc0] sm:$0xff] %v733
      %766 = vst [vmem:[#allocation2 + $0xc8] sm:$0xff] %v734
      %767 = vst [vmem:[#allocation2 + $0xd0] sm:$0xff] %v735
      %768 = vst [vmem:[#allocation2 + $0xd8] sm:$0xff] %v736
      %769 = vst [vmem:[#allocation2 + $0xe0] sm:$0xff] %v737
      %770 = vst [vmem:[#allocation2 + $0xe8] sm:$0xff] %v738
      %771 = vst [vmem:[#allocation2 + $0xf0] sm:$0xff] %v739
      %772 = vst [vmem:[#allocation2 + $0xf8] sm:$0xff] %v740
      // Predicated region
      $region41: #{vae_forward.15} parent=35 // pred_check
        %p773 = pneg %p288
      $region42: #{vae_forward.15} parent=35 // pred_check_branch
        %775 = sbr.rel (%p773) target = $region44
      $region43: #{vae_forward.15} parent=35 // pred_region
        %v776 = vld [vmem:[#allocation2] sm:$0xff]
        %v777 = vld [vmem:[#allocation2 + $0x8] sm:$0xff]
        %v778 = vld [vmem:[#allocation2 + $0x10] sm:$0xff]
        %v779 = vld [vmem:[#allocation2 + $0x18] sm:$0xff]
        %v780 = vld [vmem:[#allocation2 + $0x20] sm:$0xff]
        %v781 = vld [vmem:[#allocation2 + $0x28] sm:$0xff]
        %v782 = vld [vmem:[#allocation2 + $0x30] sm:$0xff]
        %v783 = vld [vmem:[#allocation2 + $0x38] sm:$0xff]
        %v784 = vld [vmem:[#allocation2 + $0x40] sm:$0xff]
        %v785 = vld [vmem:[#allocation2 + $0x48] sm:$0xff]
        %v786 = vld [vmem:[#allocation2 + $0x50] sm:$0xff]
        %v787 = vld [vmem:[#allocation2 + $0x58] sm:$0xff]
        %v788 = vld [vmem:[#allocation2 + $0x60] sm:$0xff]
        %v789 = vld [vmem:[#allocation2 + $0x68] sm:$0xff]
        %v790 = vld [vmem:[#allocation2 + $0x70] sm:$0xff]
        %v791 = vld [vmem:[#allocation2 + $0x78] sm:$0xff]
        %v792 = vld [vmem:[#allocation2 + $0x80] sm:$0xff]
        %v793 = vld [vmem:[#allocation2 + $0x88] sm:$0xff]
        %v794 = vld [vmem:[#allocation2 + $0x90] sm:$0xff]
        %v795 = vld [vmem:[#allocation2 + $0x98] sm:$0xff]
        %v796 = vld [vmem:[#allocation2 + $0xa0] sm:$0xff]
        %v797 = vld [vmem:[#allocation2 + $0xa8] sm:$0xff]
        %v798 = vld [vmem:[#allocation2 + $0xb0] sm:$0xff]
        %v799 = vld [vmem:[#allocation2 + $0xb8] sm:$0xff]
        %v800 = vld [vmem:[#allocation2 + $0xc0] sm:$0xff]
        %v801 = vld [vmem:[#allocation2 + $0xc8] sm:$0xff]
        %v802 = vld [vmem:[#allocation2 + $0xd0] sm:$0xff]
        %v803 = vld [vmem:[#allocation2 + $0xd8] sm:$0xff]
        %v804 = vld [vmem:[#allocation2 + $0xe0] sm:$0xff]
        %v805 = vld [vmem:[#allocation2 + $0xe8] sm:$0xff]
        %v806 = vld [vmem:[#allocation2 + $0xf0] sm:$0xff]
        %v807 = vld [vmem:[#allocation2 + $0xf8] sm:$0xff]
        %v808 = vld [vmem:[%s277] sm:$0x1]
        %v810 = vlaneseq
        %v811 = vshrl.u32 %v810, 7
        %v812 = vsub.s32 0, %v811
        %v813 = vrot.slane %v808, %v812
        %v815 = vadd.f32 %v776, %v813
        %v816 = vadd.f32 %v777, %v813
        %v817 = vadd.f32 %v778, %v813
        %v818 = vadd.f32 %v779, %v813
        %v819 = vadd.f32 %v780, %v813
        %v820 = vadd.f32 %v781, %v813
        %v821 = vadd.f32 %v782, %v813
        %v822 = vadd.f32 %v783, %v813
        %v823 = vadd.f32 %v784, %v813
        %v824 = vadd.f32 %v785, %v813
        %v825 = vadd.f32 %v786, %v813
        %v826 = vadd.f32 %v787, %v813
        %v827 = vadd.f32 %v788, %v813
        %v828 = vadd.f32 %v789, %v813
        %v829 = vadd.f32 %v790, %v813
        %v830 = vadd.f32 %v791, %v813
        %v831 = vadd.f32 %v792, %v813
        %v832 = vadd.f32 %v793, %v813
        %v833 = vadd.f32 %v794, %v813
        %v834 = vadd.f32 %v795, %v813
        %v835 = vadd.f32 %v796, %v813
        %v836 = vadd.f32 %v797, %v813
        %v837 = vadd.f32 %v798, %v813
        %v838 = vadd.f32 %v799, %v813
        %v839 = vadd.f32 %v800, %v813
        %v840 = vadd.f32 %v801, %v813
        %v841 = vadd.f32 %v802, %v813
        %v842 = vadd.f32 %v803, %v813
        %v843 = vadd.f32 %v804, %v813
        %v844 = vadd.f32 %v805, %v813
        %v845 = vadd.f32 %v806, %v813
        %v846 = vadd.f32 %v807, %v813
        %s847 = sld [smem:[#allocation3]]
        %v848 = vstv %s847
        %v849 = vmul.f32 %v815, %v848
        %v850 = vmul.f32 %v816, %v848
        %v851 = vmul.f32 %v817, %v848
        %v852 = vmul.f32 %v818, %v848
        %v853 = vmul.f32 %v819, %v848
        %v854 = vmul.f32 %v820, %v848
        %v855 = vmul.f32 %v821, %v848
        %v856 = vmul.f32 %v822, %v848
        %v857 = vmul.f32 %v823, %v848
        %v858 = vmul.f32 %v824, %v848
        %v859 = vmul.f32 %v825, %v848
        %v860 = vmul.f32 %v826, %v848
        %v861 = vmul.f32 %v827, %v848
        %v862 = vmul.f32 %v828, %v848
        %v863 = vmul.f32 %v829, %v848
        %v864 = vmul.f32 %v830, %v848
        %v865 = vmul.f32 %v831, %v848
        %v866 = vmul.f32 %v832, %v848
        %v867 = vmul.f32 %v833, %v848
        %v868 = vmul.f32 %v834, %v848
        %v869 = vmul.f32 %v835, %v848
        %v870 = vmul.f32 %v836, %v848
        %v871 = vmul.f32 %v837, %v848
        %v872 = vmul.f32 %v838, %v848
        %v873 = vmul.f32 %v839, %v848
        %v874 = vmul.f32 %v840, %v848
        %v875 = vmul.f32 %v841, %v848
        %v876 = vmul.f32 %v842, %v848
        %v877 = vmul.f32 %v843, %v848
        %v878 = vmul.f32 %v844, %v848
        %v879 = vmul.f32 %v845, %v848
        %v880 = vmul.f32 %v846, %v848
        %881 = vst [vmem:[%s285] sm:$0xff] %v849
        %882 = vst [vmem:[%s285 + $0x8] sm:$0xff] %v850
        %883 = vst [vmem:[%s285 + $0x10] sm:$0xff] %v851
        %884 = vst [vmem:[%s285 + $0x18] sm:$0xff] %v852
        %885 = vst [vmem:[%s285 + $0x20] sm:$0xff] %v853
        %886 = vst [vmem:[%s285 + $0x28] sm:$0xff] %v854
        %887 = vst [vmem:[%s285 + $0x30] sm:$0xff] %v855
        %888 = vst [vmem:[%s285 + $0x38] sm:$0xff] %v856
        %889 = vst [vmem:[%s285 + $0x40] sm:$0xff] %v857
        %890 = vst [vmem:[%s285 + $0x48] sm:$0xff] %v858
        %891 = vst [vmem:[%s285 + $0x50] sm:$0xff] %v859
        %892 = vst [vmem:[%s285 + $0x58] sm:$0xff] %v860
        %893 = vst [vmem:[%s285 + $0x60] sm:$0xff] %v861
        %894 = vst [vmem:[%s285 + $0x68] sm:$0xff] %v862
        %895 = vst [vmem:[%s285 + $0x70] sm:$0xff] %v863
        %896 = vst [vmem:[%s285 + $0x78] sm:$0xff] %v864
        %897 = vst [vmem:[%s285 + $0x80] sm:$0xff] %v865
        %898 = vst [vmem:[%s285 + $0x88] sm:$0xff] %v866
        %899 = vst [vmem:[%s285 + $0x90] sm:$0xff] %v867
        %900 = vst [vmem:[%s285 + $0x98] sm:$0xff] %v868
        %901 = vst [vmem:[%s285 + $0xa0] sm:$0xff] %v869
        %902 = vst [vmem:[%s285 + $0xa8] sm:$0xff] %v870
        %903 = vst [vmem:[%s285 + $0xb0] sm:$0xff] %v871
        %904 = vst [vmem:[%s285 + $0xb8] sm:$0xff] %v872
        %905 = vst [vmem:[%s285 + $0xc0] sm:$0xff] %v873
        %906 = vst [vmem:[%s285 + $0xc8] sm:$0xff] %v874
        %907 = vst [vmem:[%s285 + $0xd0] sm:$0xff] %v875
        %908 = vst [vmem:[%s285 + $0xd8] sm:$0xff] %v876
        %909 = vst [vmem:[%s285 + $0xe0] sm:$0xff] %v877
        %910 = vst [vmem:[%s285 + $0xe8] sm:$0xff] %v878
        %911 = vst [vmem:[%s285 + $0xf0] sm:$0xff] %v879
        %912 = vst [vmem:[%s285 + $0xf8] sm:$0xff] %v880
      $region44: #{vae_forward.15} parent=35 // pred_fallthru
        _
      %s913 = smul.u32 32, %s21
      %p914 = scmp.lt.s32.totalorder %s913, 1023
      %s915 = scalar_select %p914, %s913, 1023
      %p916 = scmp.lt.s32.totalorder %s22, 0
      %s917 = scalar_select %p916, %s22, 0
      %s918 = sadd.s32 %s917, %s915
      %s919 = smul.addr %s918, 8
      %s920 = scalar_lea.vmem %s4, %s919
      // Predicated region
      $region45: #{vae_forward.15} parent=35 // pred_check
        %p921 = pneg %p158
      $region46: #{vae_forward.15} parent=35 // pred_check_branch
        %923 = sbr.rel (%p921) target = $region48
      $region47: #{vae_forward.15} parent=35 // pred_region
        %s924 = smul.u32 32, %s21
      $region48: #{vae_forward.15} parent=35 // pred_fallthru
        _
    $region36: #{vae_forward.15} parent=5 // pred_fallthru
      _
    %p925 = scmp.le.s32.totalorder 2, %s11
    // Predicated region
    $region49: #{vae_forward.15} parent=5 // pred_check
      %p926 = pneg %p925
    $region50: #{vae_forward.15} parent=5 // pred_check_branch
      %928 = sbr.rel (%p926) target = $region52
    $region51: #{vae_forward.15} parent=5 // pred_region
      %s929 = ssub.s32 %s11, 2
      // Predicated region
      $region53: #{vae_forward.15} parent=51 // pred_check
        %p930 = pneg %p164
      $region54: #{vae_forward.15} parent=51 // pred_check_branch
        %932 = sbr.rel (%p930) target = $region56
      $region55: #{vae_forward.15} parent=51 // pred_region
        %s933 = smul.u32 32, %s24
        %p934 = scmp.lt.s32.totalorder %s933, 1023
        %s935 = scalar_select %p934, %s933, 1023
        %p936 = scmp.lt.s32.totalorder %s25, 0
        %s937 = scalar_select %p936, %s25, 0
        %s938 = sadd.s32 %s937, %s935
        %s939 = smul.addr %s938, 8
        %s940 = scalar_lea.vmem %s4, %s939
      $region56: #{vae_forward.15} parent=51 // pred_fallthru
        _
    $region52: #{vae_forward.15} parent=5 // pred_fallthru
      _
  $region6: #{vae_forward.15} parent=0 // loop_footer
    %s15 = sadd.s32 1, %s11
  $region7: #{vae_forward.15} parent=0 // loop_footer_branch
    %10 = sbr.rel target = $region3
  $region8: #{vae_forward.15} parent=0 // loop_exit
    _

// kernel: vae_forward.10
$region0: #{vae_forward.10}
  #allocation0 [shape = 'u32[]', space=smem, size = 0x4, offset = 0x4, fixed_abs, tag = 'smem constant byte address 0x4 - core index']
  #allocation1 [shape = 'u32[144,128]{1,0:T(1,128)}', space=vmem, size = 0x12000, scoped, tag = 'internal scratch']
  #allocation2 [shape = 'f32[8,512]{1,0:T(8,128)}', space=vmem, size = 0x4000, scoped, tag = 'scratch operand']
  #allocation3 [shape = 'f32[1]{0:T(128)S(6)}', space=smem, size = 0x200, scoped, tag = 'scoped memory for vae_forward.10']
  %s0 = inlined_call_operand.<no memory space> [shape: f32[1], index: 0, kind: input, shape index: {}]
  %s1 = inlined_call_operand.vmem [shape: bf16[8,128], index: 1, kind: input, shape index: {}]
  %s2 = inlined_call_operand.vmem [shape: bf16[128,1536], index: 2, kind: input, shape index: {}]
  %s3 = inlined_call_operand.vmem [shape: f32[1,1536], index: 3, kind: input, shape index: {}]
  %s4 = inlined_call_operand.vmem [shape: f32[8,1536], index: 4, kind: output, shape index: {}]
  %s5 = sld [smem:[#allocation0]]
  $region80: #{vae_forward.10} parent=0
    _
  %s7 = ssub.s32 1, %s5
  %s8 = scalar_select 0, %s7, %s5
  %9 = sst [smem:[#allocation3]] %s0
  $region1: #{vae_forward.10} parent=0
    #allocation4 [shape = 'u8[262144]{0}', space=vmem, size = 0x40000, scoped, tag = 'input window, operand 2']
    loop: start=0, step=1, limit=5
    $region2: #{vae_forward.10} parent=1 // loop_pre_header
      _
    $region3: #{vae_forward.10} parent=1 // loop_header
      %s11 = sphi 0, %s15
      %p12 = scmp.ge.s32.totalorder %s11, 5
      %s18 = sphi 0, %s37
      %s19 = sphi 0, %s33
      %s20 = sphi 0, %s29
      %s21 = sphi 0, %s18
      %s22 = sphi 0, %s19
      %s23 = sphi 0, %s20
      %s24 = sphi 0, %s21
      %s25 = sphi 0, %s22
      %s26 = sphi 0, %s23
      %s38 = sphi 0, %s38
      %s40 = sphi 0, %s38
      %s41 = sphi 0, %s40
      %s55 = sphi 0, %s41
      %s63 = sphi 0, %s65
      %s66 = sphi 0, %s63
      %s67 = sphi 0, %s66
      %s83 = sphi 0, %s67
      %s91 = sphi 0, %s93
      %s94 = sphi 0, %s91
      %s95 = sphi 0, %s94
      %s111 = sphi 0, %s95
      %s117 = sphi 0, %s119
      %s120 = sphi 0, %s117
      %s121 = sphi 0, %s120
      %s137 = sphi 0, %s121
      %s145 = sphi 0, %s147
      %s148 = sphi 0, %s145
      %s149 = sphi 0, %s148
      %s165 = sphi 0, %s149
    $region4: #{vae_forward.10} parent=1 // loop_header_branch
      %14 = sbr.rel (%p12) target = $region8
    $region5: #{vae_forward.10} parent=1 // loop_body
      %s16 = ssub.s32 %s11, 1
      %s17 = ssub.s32 %s11, 2
      %s27 = sadd.s32 1, %s20
      %p28 = scmp.ge.s32.totalorder %s27, 1
      %s29 = scalar_select %p28, 0, %s27
      %s30 = sadd.s32 1, %s19
      %s31 = scalar_select %p28, %s30, %s19
      %p32 = scmp.ge.s32.totalorder %s31, 3
      %s33 = scalar_select %p32, 0, %s31
      %s34 = sadd.s32 1, %s18
      %s35 = scalar_select %p32, %s34, %s18
      %p36 = scmp.ge.s32.totalorder %s35, 1
      %s37 = scalar_select %p36, 0, %s35
      %s39 = sadd.s32 %s38, 1
      %p42 = scmp.eq.s32.totalorder %s11, 2
      %p43 = scmp.ne.s32.totalorder %s38, %s40
      %p44 = scmp.eq.s32.totalorder %s11, 0
      %p45 = por %p43, %p44
      %p46 = scmp.ne.s32.totalorder %s38, %s40
      %p47 = scmp.eq.s32.totalorder %s16, 2
      %p48 = por %p46, %p47
      %p49 = scmp.ne.s32.totalorder %s40, %s41
      %p50 = scmp.eq.s32.totalorder %s16, 0
      %p51 = por %p49, %p50
      %p52 = scmp.ne.s32.totalorder %s40, %s41
      %p53 = scmp.eq.s32.totalorder %s17, 2
      %p54 = por %p52, %p53
      %p56 = scmp.ne.s32.totalorder %s41, %s55
      %p57 = scmp.eq.s32.totalorder %s17, 0
      %p58 = por %p56, %p57
      %s59 = ssub.s32 %s18, %s37
      %s60 = ssub.s32 %s20, %s29
      %s61 = sor.u32 %s59, %s60
      %p62 = scmp.eq.s32.totalorder %s61, 0
      %s64 = sadd.s32 %s63, 1
      %s65 = scalar_select %p62, %s63, %s64
      %p68 = pneg %p62
      %p69 = scmp.eq.s32.totalorder %s11, 2
      %p70 = por %p68, %p69
      %p71 = scmp.ne.s32.totalorder %s63, %s66
      %p72 = scmp.eq.s32.totalorder %s11, 0
      %p73 = por %p71, %p72
      %p74 = scmp.ne.s32.totalorder %s63, %s66
      %p75 = scmp.eq.s32.totalorder %s16, 2
      %p76 = por %p74, %p75
      %p77 = scmp.ne.s32.totalorder %s66, %s67
      %p78 = scmp.eq.s32.totalorder %s16, 0
      %p79 = por %p77, %p78
      %p80 = scmp.ne.s32.totalorder %s66, %s67
      %p81 = scmp.eq.s32.totalorder %s17, 2
      %p82 = por %p80, %p81
      %p84 = scmp.ne.s32.totalorder %s67, %s83
      %p85 = scmp.eq.s32.totalorder %s17, 0
      %p86 = por %p84, %p85
      %s87 = ssub.s32 %s20, %s29
      %s88 = ssub.s32 %s19, %s33
      %s89 = sor.u32 %s87, %s88
      %p90 = scmp.eq.s32.totalorder %s89, 0
      %s92 = sadd.s32 %s91, 1
      %s93 = scalar_select %p90, %s91, %s92
      %p96 = pneg %p90
      %p97 = scmp.eq.s32.totalorder %s11, 2
      %p98 = por %p96, %p97
      %p99 = scmp.ne.s32.totalorder %s91, %s94
      %p100 = scmp.eq.s32.totalorder %s11, 0
      %p101 = por %p99, %p100
      %p102 = scmp.ne.s32.totalorder %s91, %s94
      %p103 = scmp.eq.s32.totalorder %s16, 2
      %p104 = por %p102, %p103
      %p105 = scmp.ne.s32.totalorder %s94, %s95
      %p106 = scmp.eq.s32.totalorder %s16, 0
      %p107 = por %p105, %p106
      %p108 = scmp.ne.s32.totalorder %s94, %s95
      %p109 = scmp.eq.s32.totalorder %s17, 2
      %p110 = por %p108, %p109
      %p112 = scmp.ne.s32.totalorder %s95, %s111
      %p113 = scmp.eq.s32.totalorder %s17, 0
      %p114 = por %p112, %p113
      %s115 = ssub.s32 %s19, %s33
      %p116 = scmp.eq.s32.totalorder %s115, 0
      %s118 = sadd.s32 %s117, 1
      %s119 = scalar_select %p116, %s117, %s118
      %p122 = pneg %p116
      %p123 = scmp.eq.s32.totalorder %s11, 2
      %p124 = por %p122, %p123
      %p125 = scmp.ne.s32.totalorder %s117, %s120
      %p126 = scmp.eq.s32.totalorder %s11, 0
      %p127 = por %p125, %p126
      %p128 = scmp.ne.s32.totalorder %s117, %s120
      %p129 = scmp.eq.s32.totalorder %s16, 2
      %p130 = por %p128, %p129
      %p131 = scmp.ne.s32.totalorder %s120, %s121
      %p132 = scmp.eq.s32.totalorder %s16, 0
      %p133 = por %p131, %p132
      %p134 = scmp.ne.s32.totalorder %s120, %s121
      %p135 = scmp.eq.s32.totalorder %s17, 2
      %p136 = por %p134, %p135
      %p138 = scmp.ne.s32.totalorder %s121, %s137
      %p139 = scmp.eq.s32.totalorder %s17, 0
      %p140 = por %p138, %p139
      %s141 = ssub.s32 %s18, %s37
      %s142 = ssub.s32 %s19, %s33
      %s143 = sor.u32 %s141, %s142
      %p144 = scmp.eq.s32.totalorder %s143, 0
      %s146 = sadd.s32 %s145, 1
      %s147 = scalar_select %p144, %s145, %s146
      %p150 = pneg %p144
      %p151 = scmp.eq.s32.totalorder %s11, 2
      %p152 = por %p150, %p151
      %p153 = scmp.ne.s32.totalorder %s145, %s148
      %p154 = scmp.eq.s32.totalorder %s11, 0
      %p155 = por %p153, %p154
      %p156 = scmp.ne.s32.totalorder %s145, %s148
      %p157 = scmp.eq.s32.totalorder %s16, 2
      %p158 = por %p156, %p157
      %p159 = scmp.ne.s32.totalorder %s148, %s149
      %p160 = scmp.eq.s32.totalorder %s16, 0
      %p161 = por %p159, %p160
      %p162 = scmp.ne.s32.totalorder %s148, %s149
      %p163 = scmp.eq.s32.totalorder %s17, 2
      %p164 = por %p162, %p163
      %p166 = scmp.ne.s32.totalorder %s149, %s165
      %p167 = scmp.eq.s32.totalorder %s17, 0
      %p168 = por %p166, %p167
      %p169 = scmp.le.s32.totalorder 1, %s11
      %p170 = scmp.lt.s32.totalorder %s11, 4
      %p171 = pnand %p169, %p170
      %p172 = pneg %p171
      // Predicated region
      $region9: #{vae_forward.10} parent=5 // pred_check
        _
      $region10: #{vae_forward.10} parent=5 // pred_check_branch
        %174 = sbr.rel (%p171) target = $region12
      $region11: #{vae_forward.10} parent=5 // pred_region
        %s175 = ssub.s32 %s11, 1
        // Predicated region
        $region13: #{vae_forward.10} parent=11 // pred_check
          %p176 = pneg %p51
        $region14: #{vae_forward.10} parent=11 // pred_check_branch
          %178 = sbr.rel (%p176) target = $region16
        $region15: #{vae_forward.10} parent=11 // pred_region
          _
        $region16: #{vae_forward.10} parent=11 // pred_fallthru
          _
        // Predicated region
        $region17: #{vae_forward.10} parent=11 // pred_check
          %p179 = pneg %p79
        $region18: #{vae_forward.10} parent=11 // pred_check_branch
          %181 = sbr.rel (%p179) target = $region20
        $region19: #{vae_forward.10} parent=11 // pred_region
          %p182 = scmp.lt.s32.totalorder %s21, 0
          %s183 = scalar_select %p182, %s21, 0
          %p184 = scmp.lt.s32.totalorder %s23, 0
          %s185 = scalar_select %p184, %s23, 0
          %s186 = sadd.s32 %s185, %s183
          %s187 = smul.addr %s186, 4
          %s188 = scalar_lea.vmem %s1, %s187
        $region20: #{vae_forward.10} parent=11 // pred_fallthru
          _
      $region12: #{vae_forward.10} parent=5 // pred_fallthru
        _
      %p189 = scmp.lt.s32.totalorder %s11, 3
      // Predicated region
      $region21: #{vae_forward.10} parent=5 // pred_check
        %p190 = pneg %p189
      $region22: #{vae_forward.10} parent=5 // pred_check_branch
        %192 = sbr.rel (%p190) target = $region24
      $region23: #{vae_forward.10} parent=5 // pred_region
        // Predicated region
        $region25: #{vae_forward.10} parent=23 // pred_check
          %p193 = pneg %p101
        $region26: #{vae_forward.10} parent=23 // pred_check_branch
          %195 = sbr.rel (%p193) target = $region28
        $region27: #{vae_forward.10} parent=23 // pred_region
          %s196 = sand.u32 %s91, 1
          %s197 = sand.u32 %s91, 1
          %s198 = smul.addr %s197, 256
          %s199 = scalar_lea.vmem [#allocation4], %s198
          %s200 = smul.u32 16, %s20
          %s201 = smul.u32 4, %s19
          %s202 = smul.addr %s200, 12
          %s203 = sadd.s32 %s201, %s202
          %s204 = smul.addr %s203, 4
          %s205 = scalar_lea.vmem %s2, %s204
          // Predicated region
          $region29: #{vae_forward.10} parent=27 // pred_check
            _
          $region30: #{vae_forward.10} parent=27 // pred_check_branch
            %207 = sbr.rel (0) target = $region32
          $region31: #{vae_forward.10} parent=27 // pred_region
            // Predicated region
            $region33: #{vae_forward.10} parent=31 // pred_check
              _
            $region34: #{vae_forward.10} parent=31 // pred_check_branch
              %209 = sbr.rel (0) target = $region36
            $region35: #{vae_forward.10} parent=31 // pred_region
              loop: start=0, step=1, limit=1
              $region37: #{vae_forward.10} parent=35 // loop_pre_header
                _
              $region38: #{vae_forward.10} parent=35 // loop_header
                %s211 = sphi 0, %s215
                %p212 = scmp.ge.s32.totalorder %s211, 1
                %s216 = sphi %s205, %s205
                %s217 = sphi %s199, %s199
              $region39: #{vae_forward.10} parent=35 // loop_header_branch
                %214 = sbr.rel (%p212) target = $region43
              $region40: #{vae_forward.10} parent=35 // loop_body
                %v218 = vld [vmem:[%s216] sm:$0xff]
                %219 = vst [vmem:[%s217] sm:$0xff] %v218
                %v220 = vld [vmem:[%s216 + $0x8] sm:$0xff]
                %221 = vst [vmem:[%s217 + $0x8] sm:$0xff] %v220
                %v222 = vld [vmem:[%s216 + $0x30] sm:$0xff]
                %223 = vst [vmem:[%s217 + $0x10] sm:$0xff] %v222
                %v224 = vld [vmem:[%s216 + $0x38] sm:$0xff]
                %225 = vst [vmem:[%s217 + $0x18] sm:$0xff] %v224
                %v226 = vld [vmem:[%s216 + $0x60] sm:$0xff]
                %227 = vst [vmem:[%s217 + $0x20] sm:$0xff] %v226
                %v228 = vld [vmem:[%s216 + $0x68] sm:$0xff]
                %229 = vst [vmem:[%s217 + $0x28] sm:$0xff] %v228
                %v230 = vld [vmem:[%s216 + $0x90] sm:$0xff]
                %231 = vst [vmem:[%s217 + $0x30] sm:$0xff] %v230
                %v232 = vld [vmem:[%s216 + $0x98] sm:$0xff]
                %233 = vst [vmem:[%s217 + $0x38] sm:$0xff] %v232
                %v234 = vld [vmem:[%s216 + $0xc0] sm:$0xff]
                %235 = vst [vmem:[%s217 + $0x40] sm:$0xff] %v234
                %v236 = vld [vmem:[%s216 + $0xc8] sm:$0xff]
                %237 = vst [vmem:[%s217 + $0x48] sm:$0xff] %v236
                %v238 = vld [vmem:[%s216 + $0xf0] sm:$0xff]
                %239 = vst [vmem:[%s217 + $0x50] sm:$0xff] %v238
                %v240 = vld [vmem:[%s216 + $0xf8] sm:$0xff]
                %241 = vst [vmem:[%s217 + $0x58] sm:$0xff] %v240
                %v242 = vld [vmem:[%s216 + $0x120] sm:$0xff]
                %243 = vst [vmem:[%s217 + $0x60] sm:$0xff] %v242
                %v244 = vld [vmem:[%s216 + $0x128] sm:$0xff]
                %245 = vst [vmem:[%s217 + $0x68] sm:$0xff] %v244
                %v246 = vld [vmem:[%s216 + $0x150] sm:$0xff]
                %247 = vst [vmem:[%s217 + $0x70] sm:$0xff] %v246
                %v248 = vld [vmem:[%s216 + $0x158] sm:$0xff]
                %249 = vst [vmem:[%s217 + $0x78] sm:$0xff] %v248
                %v250 = vld [vmem:[%s216 + $0x180] sm:$0xff]
                %251 = vst [vmem:[%s217 + $0x80] sm:$0xff] %v250
                %v252 = vld [vmem:[%s216 + $0x188] sm:$0xff]
                %253 = vst [vmem:[%s217 + $0x88] sm:$0xff] %v252
                %v254 = vld [vmem:[%s216 + $0x1b0] sm:$0xff]
                %255 = vst [vmem:[%s217 + $0x90] sm:$0xff] %v254
                %v256 = vld [vmem:[%s216 + $0x1b8] sm:$0xff]
                %257 = vst [vmem:[%s217 + $0x98] sm:$0xff] %v256
                %v258 = vld [vmem:[%s216 + $0x1e0] sm:$0xff]
                %259 = vst [vmem:[%s217 + $0xa0] sm:$0xff] %v258
                %v260 = vld [vmem:[%s216 + $0x1e8] sm:$0xff]
                %261 = vst [vmem:[%s217 + $0xa8] sm:$0xff] %v260
                %v262 = vld [vmem:[%s216 + $0x210] sm:$0xff]
                %263 = vst [vmem:[%s217 + $0xb0] sm:$0xff] %v262
                %v264 = vld [vmem:[%s216 + $0x218] sm:$0xff]
                %265 = vst [vmem:[%s217 + $0xb8] sm:$0xff] %v264
                %v266 = vld [vmem:[%s216 + $0x240] sm:$0xff]
                %267 = vst [vmem:[%s217 + $0xc0] sm:$0xff] %v266
                %v268 = vld [vmem:[%s216 + $0x248] sm:$0xff]
                %269 = vst [vmem:[%s217 + $0xc8] sm:$0xff] %v268
                %v270 = vld [vmem:[%s216 + $0x270] sm:$0xff]
                %271 = vst [vmem:[%s217 + $0xd0] sm:$0xff] %v270
                %v272 = vld [vmem:[%s216 + $0x278] sm:$0xff]
                %273 = vst [vmem:[%s217 + $0xd8] sm:$0xff] %v272
                %v274 = vld [vmem:[%s216 + $0x2a0] sm:$0xff]
                %275 = vst [vmem:[%s217 + $0xe0] sm:$0xff] %v274
                %v276 = vld [vmem:[%s216 + $0x2a8] sm:$0xff]
                %277 = vst [vmem:[%s217 + $0xe8] sm:$0xff] %v276
                %v278 = vld [vmem:[%s216 + $0x2d0] sm:$0xff]
                %279 = vst [vmem:[%s217 + $0xf0] sm:$0xff] %v278
                %v280 = vld [vmem:[%s216 + $0x2d8] sm:$0xff]
                %281 = vst [vmem:[%s217 + $0xf8] sm:$0xff] %v280
              $region41: #{vae_forward.10} parent=35 // loop_footer
                %s215 = sadd.s32 1, %s211
              $region42: #{vae_forward.10} parent=35 // loop_footer_branch
                %210 = sbr.rel target = $region38
              $region43: #{vae_forward.10} parent=35 // loop_exit
                _
            $region36: #{vae_forward.10} parent=31 // pred_fallthru
              _
            // Predicated region
            $region44: #{vae_forward.10} parent=31 // pred_check
              _
            $region45: #{vae_forward.10} parent=31 // pred_check_branch
              %283 = sbr.rel target = $region47
            $region46: #{vae_forward.10} parent=31 // pred_region
              _
            $region47: #{vae_forward.10} parent=31 // pred_fallthru
              _
          $region32: #{vae_forward.10} parent=27 // pred_fallthru
            _
          %284 = vnop
        $region28: #{vae_forward.10} parent=23 // pred_fallthru
          _
        // Predicated region
        $region48: #{vae_forward.10} parent=23 // pred_check
          %p285 = pneg %p127
        $region49: #{vae_forward.10} parent=23 // pred_check_branch
          %287 = sbr.rel (%p285) target = $region51
        $region50: #{vae_forward.10} parent=23 // pred_region
          %s288 = smul.u32 4, %s19
          %p289 = scmp.lt.s32.totalorder %s288, 11
          %s290 = scalar_select %p289, %s288, 11
          %s291 = scalar_lea.vmem %s3, %s290
          %s292 = smul.u32 4, %s19
        $region51: #{vae_forward.10} parent=23 // pred_fallthru
          _
      $region24: #{vae_forward.10} parent=5 // pred_fallthru
        _
      %p293 = scmp.le.s32.totalorder 1, %s11
      %p294 = scmp.lt.s32.totalorder %s11, 4
      %p295 = pnand %p293, %p294
      %p296 = pneg %p295
      // Predicated region
      $region52: #{vae_forward.10} parent=5 // pred_check
        _
      $region53: #{vae_forward.10} parent=5 // pred_check_branch
        %298 = sbr.rel (%p295) target = $region55
      $region54: #{vae_forward.10} parent=5 // pred_region
        %s299 = ssub.s32 %s11, 1
        %s300 = sand.u32 %s94, 1
        %s301 = sand.u32 %s94, 1
        %s302 = smul.addr %s301, 256
        %s303 = scalar_lea.vmem [#allocation4], %s302
        // Predicated region
        $region56: #{vae_forward.10} parent=54 // pred_check
          %p304 = pneg %p107
        $region57: #{vae_forward.10} parent=54 // pred_check_branch
          %306 = sbr.rel (%p304) target = $region59
        $region58: #{vae_forward.10} parent=54 // pred_region
          _
        $region59: #{vae_forward.10} parent=54 // pred_fallthru
          _
        %p307 = pneg %p51
        %p308 = pneg %p48
        %p309 = scmp.lt.s32.totalorder %s21, 0
        %s310 = scalar_select %p309, %s21, 0
        %p311 = scmp.lt.s32.totalorder %s23, 0
        %s312 = scalar_select %p311, %s23, 0
        %s313 = sadd.s32 %s312, %s310
        %s314 = smul.addr %s313, 4
        %s315 = scalar_lea.vmem %s1, %s314
        %p316 = pneg %p79
        %p317 = pneg %p76
        %s318 = sand.u32 %s94, 1
        %s319 = sand.u32 %s94, 1
        %s320 = smul.addr %s319, 256
        %s321 = scalar_lea.vmem [#allocation4], %s320
        %p322 = pneg %p107
        %p323 = pneg %p104
        %s324 = smul.u32 4, %s22
        %p325 = scmp.lt.s32.totalorder %s324, 11
        %s326 = scalar_select %p325, %s324, 11
        %s327 = scalar_lea.vmem %s3, %s326
        %p328 = pneg %p133
        %p329 = pneg %p130
        %p330 = pneg %p161
        %p331 = pneg %p158
        %s332 = smul.u32 4, %s22
        %p333 = scmp.lt.s32.totalorder %s21, 0
        %s334 = scalar_select %p333, %s21, 0
        %p335 = scmp.lt.s32.totalorder %s332, 11
        %s336 = scalar_select %p335, %s332, 11
        %s337 = smul.addr %s334, 12
        %s338 = sadd.s32 %s336, %s337
        %s339 = smul.addr %s338, 8
        %s340 = scalar_lea.vmem %s4, %s339
        %p341 = scmp.lt.s32.totalorder %s21, 0
        %s342 = scalar_select %p341, %s21, 0
        %p343 = scmp.lt.s32.totalorder %s23, 0
        %s344 = scalar_select %p343, %s23, 0
        %s345 = sadd.s32 %s344, %s342
        %s346 = smul.addr %s345, 4
        %s347 = scalar_lea.vmem %s1, %s346
        %s348 = smul.u32 16, %s23
        %s349 = smul.u32 4, %s22
        %s350 = smul.u32 4, %s22
        %p351 = scmp.lt.s32.totalorder %s350, 11
        %s352 = scalar_select %p351, %s350, 11
        %s353 = scalar_lea.vmem %s3, %s352
        %s354 = smul.u32 4, %s22
        %s355 = smul.u32 4, %s22
        %p356 = scmp.lt.s32.totalorder %s21, 0
        %s357 = scalar_select %p356, %s21, 0
        %p358 = scmp.lt.s32.totalorder %s355, 11
        %s359 = scalar_select %p358, %s355, 11
        %s360 = smul.addr %s357, 12
        %s361 = sadd.s32 %s359, %s360
        %s362 = smul.addr %s361, 8
        %s363 = scalar_lea.vmem %s4, %s362
        %s364 = smul.u32 4, %s22
        %p366 = scmp.eq.s32.totalorder %s23, 0
        // Predicated region
        $region60: #{vae_forward.10} parent=54 // pred_check
          %p367 = pneg %p366
        $region61: #{vae_forward.10} parent=54 // pred_check_branch
          %369 = sbr.rel (%p367) target = $region63
        $region62: #{vae_forward.10} parent=54 // pred_region
          %370 = vst [vmem:[#allocation2] sm:$0xff] 0.0
          %371 = vst [vmem:[#allocation2 + $0x8] sm:$0xff] 0.0
          %372 = vst [vmem:[#allocation2 + $0x10] sm:$0xff] 0.0
          %373 = vst [vmem:[#allocation2 + $0x18] sm:$0xff] 0.0
        $region63: #{vae_forward.10} parent=54 // pred_fallthru
          _
        %v374 = vld [vmem:[#allocation2] sm:$0xff]
        %v375 = vld [vmem:[#allocation2 + $0x8] sm:$0xff]
        %v376 = vld [vmem:[#allocation2 + $0x10] sm:$0xff]
        %v377 = vld [vmem:[#allocation2 + $0x18] sm:$0xff]
        %v378 = vld [vmem:[%s347] sm:$0xf]
        %v379 = vld [vmem:[%s303] sm:$0xff]
        %v380 = vld [vmem:[%s303 + $0x8] sm:$0xff]
        %v381 = vld [vmem:[%s303 + $0x10] sm:$0xff]
        %v382 = vld [vmem:[%s303 + $0x18] sm:$0xff]
        %v383 = vld [vmem:[%s303 + $0x20] sm:$0xff]
        %v384 = vld [vmem:[%s303 + $0x28] sm:$0xff]
        %v385 = vld [vmem:[%s303 + $0x30] sm:$0xff]
        %v386 = vld [vmem:[%s303 + $0x38] sm:$0xff]
        %v387 = vld [vmem:[%s303 + $0x40] sm:$0xff]
        %v388 = vld [vmem:[%s303 + $0x48] sm:$0xff]
        %v389 = vld [vmem:[%s303 + $0x50] sm:$0xff]
        %v390 = vld [vmem:[%s303 + $0x58] sm:$0xff]
        %v391 = vld [vmem:[%s303 + $0x60] sm:$0xff]
        %v392 = vld [vmem:[%s303 + $0x68] sm:$0xff]
        %v393 = vld [vmem:[%s303 + $0x70] sm:$0xff]
        %v394 = vld [vmem:[%s303 + $0x78] sm:$0xff]
        %v395 = vld [vmem:[%s303 + $0x80] sm:$0xff]
        %v396 = vld [vmem:[%s303 + $0x88] sm:$0xff]
        %v397 = vld [vmem:[%s303 + $0x90] sm:$0xff]
        %v398 = vld [vmem:[%s303 + $0x98] sm:$0xff]
        %v399 = vld [vmem:[%s303 + $0xa0] sm:$0xff]
        %v400 = vld [vmem:[%s303 + $0xa8] sm:$0xff]
        %v401 = vld [vmem:[%s303 + $0xb0] sm:$0xff]
        %v402 = vld [vmem:[%s303 + $0xb8] sm:$0xff]
        %v403 = vld [vmem:[%s303 + $0xc0] sm:$0xff]
        %v404 = vld [vmem:[%s303 + $0xc8] sm:$0xff]
        %v405 = vld [vmem:[%s303 + $0xd0] sm:$0xff]
        %v406 = vld [vmem:[%s303 + $0xd8] sm:$0xff]
        %v407 = vld [vmem:[%s303 + $0xe0] sm:$0xff]
        %v408 = vld [vmem:[%s303 + $0xe8] sm:$0xff]
        %v409 = vld [vmem:[%s303 + $0xf0] sm:$0xff]
        %v410 = vld [vmem:[%s303 + $0xf8] sm:$0xff]
        %v443 = vunpack.c.l.b16 %v379
        %v444 = vunpack.c.h.b16 %v379
        %v445 = vunpack.c.l.b16 %v380
        %v446 = vunpack.c.h.b16 %v380
        %v447 = vunpack.c.l.b16 %v381
        %v448 = vunpack.c.h.b16 %v381
        %v449 = vunpack.c.l.b16 %v382
        %v450 = vunpack.c.h.b16 %v382
        %v451 = vunpack.c.l.b16 %v383
        %v452 = vunpack.c.h.b16 %v383
        %v453 = vunpack.c.l.b16 %v384
        %v454 = vunpack.c.h.b16 %v384
        %v455 = vunpack.c.l.b16 %v385
        %v456 = vunpack.c.h.b16 %v385
        %v457 = vunpack.c.l.b16 %v386
        %v458 = vunpack.c.h.b16 %v386
        %v459 = vunpack.c.l.b16 %v387
        %v460 = vunpack.c.h.b16 %v387
        %v461 = vunpack.c.l.b16 %v388
        %v462 = vunpack.c.h.b16 %v388
        %v463 = vunpack.c.l.b16 %v389
        %v464 = vunpack.c.h.b16 %v389
        %v465 = vunpack.c.l.b16 %v390
        %v466 = vunpack.c.h.b16 %v390
        %v467 = vunpack.c.l.b16 %v391
        %v468 = vunpack.c.h.b16 %v391
        %v469 = vunpack.c.l.b16 %v392
        %v470 = vunpack.c.h.b16 %v392
        %v471 = vunpack.c.l.b16 %v393
        %v472 = vunpack.c.h.b16 %v393
        %v473 = vunpack.c.l.b16 %v394
        %v474 = vunpack.c.h.b16 %v394
        %v475 = vunpack.c.l.b16 %v395
        %v476 = vunpack.c.h.b16 %v395
        %v477 = vunpack.c.l.b16 %v396
        %v478 = vunpack.c.h.b16 %v396
        %v479 = vunpack.c.l.b16 %v397
        %v480 = vunpack.c.h.b16 %v397
        %v481 = vunpack.c.l.b16 %v398
        %v482 = vunpack.c.h.b16 %v398
        %v483 = vunpack.c.l.b16 %v399
        %v484 = vunpack.c.h.b16 %v399
        %v485 = vunpack.c.l.b16 %v400
        %v486 = vunpack.c.h.b16 %v400
        %v487 = vunpack.c.l.b16 %v401
        %v488 = vunpack.c.h.b16 %v401
        %v489 = vunpack.c.l.b16 %v402
        %v490 = vunpack.c.h.b16 %v402
        %v491 = vunpack.c.l.b16 %v403
        %v492 = vunpack.c.h.b16 %v403
        %v493 = vunpack.c.l.b16 %v404
        %v494 = vunpack.c.h.b16 %v404
        %v495 = vunpack.c.l.b16 %v405
        %v496 = vunpack.c.h.b16 %v405
        %v497 = vunpack.c.l.b16 %v406
        %v498 = vunpack.c.h.b16 %v406
        %v499 = vunpack.c.l.b16 %v407
        %v500 = vunpack.c.h.b16 %v407
        %v501 = vunpack.c.l.b16 %v408
        %v502 = vunpack.c.h.b16 %v408
        %v503 = vunpack.c.l.b16 %v409
        %v504 = vunpack.c.h.b16 %v409
        %v505 = vunpack.c.l.b16 %v410
        %v506 = vunpack.c.h.b16 %v410
        %v507 = vpack.c.b16 %v447, %v443
        %v508 = vpack.c.b16 %v448, %v444
        %v509 = vpack.c.b16 %v449, %v445
        %v510 = vpack.c.b16 %v450, %v446
        %v511 = vpack.c.b16 %v455, %v451
        %v512 = vpack.c.b16 %v456, %v452
        %v513 = vpack.c.b16 %v457, %v453
        %v514 = vpack.c.b16 %v458, %v454
        %v515 = vpack.c.b16 %v463, %v459
        %v516 = vpack.c.b16 %v464, %v460
        %v517 = vpack.c.b16 %v465, %v461
        %v518 = vpack.c.b16 %v466, %v462
        %v519 = vpack.c.b16 %v471, %v467
        %v520 = vpack.c.b16 %v472, %v468
        %v521 = vpack.c.b16 %v473, %v469
        %v522 = vpack.c.b16 %v474, %v470
        %v523 = vpack.c.b16 %v479, %v475
        %v524 = vpack.c.b16 %v480, %v476
        %v525 = vpack.c.b16 %v481, %v477
        %v526 = vpack.c.b16 %v482, %v478
        %v527 = vpack.c.b16 %v487, %v483
        %v528 = vpack.c.b16 %v488, %v484
        %v529 = vpack.c.b16 %v489, %v485
        %v530 = vpack.c.b16 %v490, %v486
        %v531 = vpack.c.b16 %v495, %v491
        %v532 = vpack.c.b16 %v496, %v492
        %v533 = vpack.c.b16 %v497, %v493
        %v534 = vpack.c.b16 %v498, %v494
        %v535 = vpack.c.b16 %v503, %v499
        %v536 = vpack.c.b16 %v504, %v500
        %v537 = vpack.c.b16 %v505, %v501
        %v538 = vpack.c.b16 %v506, %v502
        %571 = vmatprep.subr.bf16.mxu0 %v508
        %572 = vmatpush1.bf16.msra.mxu0 %v507
        %573 = vmatprep.subr.bf16.mxu0 %v512
        %574 = vmatpush1.bf16.msra.mxu0 %v511
        %575 = vmatprep.subr.bf16.mxu0 %v516
        %576 = vmatpush1.bf16.msra.mxu0 %v515
        %577 = vmatprep.subr.bf16.mxu0 %v520
        %578 = vmatpush1.bf16.msra.mxu0 %v519
        %579 = vmatprep.subr.bf16.mxu0 %v524
        %580 = vmatpush1.bf16.msra.mxu0 %v523
        %581 = vmatprep.subr.bf16.mxu0 %v528
        %582 = vmatpush1.bf16.msra.mxu0 %v527
        %583 = vmatprep.subr.bf16.mxu0 %v532
        %584 = vmatpush1.bf16.msra.mxu0 %v531
        %585 = vmatprep.subr.bf16.mxu0 %v536
        %586 = vmatpush1.bf16.msra.mxu0 %v535
        %587 = vmatprep.subr.bf16.mxu0 0
        %588 = vmatpush1.bf16.msra.mxu0 0
        %589 = vmatprep.subr.bf16.mxu0 0
        %590 = vmatpush1.bf16.msra.mxu0 0
        %591 = vmatprep.subr.bf16.mxu0 0
        %592 = vmatpush1.bf16.msra.mxu0 0
        %593 = vmatprep.subr.bf16.mxu0 0
        %594 = vmatpush1.bf16.msra.mxu0 0
        %595 = vmatprep.subr.bf16.mxu0 0
        %596 = vmatpush1.bf16.msra.mxu0 0
        %597 = vmatprep.subr.bf16.mxu0 0
        %598 = vmatpush1.bf16.msra.mxu0 0
        %599 = vmatprep.subr.bf16.mxu0 0
        %600 = vmatpush1.bf16.msra.mxu0 0
        %601 = vmatprep.subr.bf16.mxu0 0
        %602 = vmatpush1.bf16.msra.mxu0 0
        %603 = vmatprep.mubr.bf16.mxu0 0
        %604 = vmatmul.mubr.bf16.gmra.mrb[0].mxu0 %v378
        %v605 = vpop.f32.mrb[0].mxu0
        %v606 = vadd.f32 0.0, %v605
        %v607 = vpop.f32.mrb[0].mxu0
        %v608 = vadd.f32 0.0, %v607
        %v609 = vpop.f32.mrb[0].mxu0
        %v610 = vpop.f32.mrb[0].mxu0
        %611 = vdwg.mxu0
        %612 = vmatprep.subr.bf16.mxu0 %v510
        %613 = vmatpush1.bf16.msra.mxu0 %v509
        %614 = vmatprep.subr.bf16.mxu0 %v514
        %615 = vmatpush1.bf16.msra.mxu0 %v513
        %616 = vmatprep.subr.bf16.mxu0 %v518
        %617 = vmatpush1.bf16.msra.mxu0 %v517
        %618 = vmatprep.subr.bf16.mxu0 %v522
        %619 = vmatpush1.bf16.msra.mxu0 %v521
        %620 = vmatprep.subr.bf16.mxu0 %v526
        %621 = vmatpush1.bf16.msra.mxu0 %v525
        %622 = vmatprep.subr.bf16.mxu0 %v530
        %623 = vmatpush1.bf16.msra.mxu0 %v529
        %624 = vmatprep.subr.bf16.mxu0 %v534
        %625 = vmatpush1.bf16.msra.mxu0 %v533
        %626 = vmatprep.subr.bf16.mxu0 %v538
        %627 = vmatpush1.bf16.msra.mxu0 %v537
        %628 = vmatprep.subr.bf16.mxu0 0
        %629 = vmatpush1.bf16.msra.mxu0 0
        %630 = vmatprep.subr.bf16.mxu0 0
        %631 = vmatpush1.bf16.msra.mxu0 0
        %632 = vmatprep.subr.bf16.mxu0 0
        %633 = vmatpush1.bf16.msra.mxu0 0
        %634 = vmatprep.subr.bf16.mxu0 0
        %635 = vmatpush1.bf16.msra.mxu0 0
        %636 = vmatprep.subr.bf16.mxu0 0
        %637 = vmatpush1.bf16.msra.mxu0 0
        %638 = vmatprep.subr.bf16.mxu0 0
        %639 = vmatpush1.bf16.msra.mxu0 0
        %640 = vmatprep.subr.bf16.mxu0 0
        %641 = vmatpush1.bf16.msra.mxu0 0
        %642 = vmatprep.subr.bf16.mxu0 0
        %643 = vmatpush1.bf16.msra.mxu0 0
        %644 = vmatprep.mubr.bf16.mxu0 0
        %645 = vmatmul.mubr.bf16.gmra.mrb[0].mxu0 %v378
        %v646 = vpop.f32.mrb[0].mxu0
        %v647 = vadd.f32 0.0, %v646
        %v648 = vpop.f32.mrb[0].mxu0
        %v649 = vadd.f32 0.0, %v648
        %v650 = vpop.f32.mrb[0].mxu0
        %v651 = vpop.f32.mrb[0].mxu0
        %652 = vdwg.mxu0
        %v653 = vadd.f32 %v374, %v606
        %v654 = vadd.f32 %v375, %v608
        %v655 = vadd.f32 %v376, %v647
        %v656 = vadd.f32 %v377, %v649
        %657 = vst [vmem:[#allocation2] sm:$0xff] %v653
        %658 = vst [vmem:[#allocation2 + $0x8] sm:$0xff] %v654
        %659 = vst [vmem:[#allocation2 + $0x10] sm:$0xff] %v655
        %660 = vst [vmem:[#allocation2 + $0x18] sm:$0xff] %v656
        // Predicated region
        $region64: #{vae_forward.10} parent=54 // pred_check
          %p661 = pneg %p366
        $region65: #{vae_forward.10} parent=54 // pred_check_branch
          %663 = sbr.rel (%p661) target = $region67
        $region66: #{vae_forward.10} parent=54 // pred_region
          %v664 = vld [vmem:[#allocation2] sm:$0xff]
          %v665 = vld [vmem:[#allocation2 + $0x8] sm:$0xff]
          %v666 = vld [vmem:[#allocation2 + $0x10] sm:$0xff]
          %v667 = vld [vmem:[#allocation2 + $0x18] sm:$0xff]
          %v668 = vld [vmem:[%s353] sm:$0xf]
          %v670 = vlaneseq
          %v671 = vshrl.u32 %v670, 7
          %v672 = vsub.s32 0, %v671
          %v673 = vrot.slane %v668, %v672
          %v674 = vlaneseq
          %v675 = vshrl.u32 %v674, 7
          %v676 = vsub.s32 1, %v675
          %v677 = vrot.slane %v668, %v676
          %v678 = vlaneseq
          %v679 = vshrl.u32 %v678, 7
          %v680 = vsub.s32 2, %v679
          %v681 = vrot.slane %v668, %v680
          %v682 = vlaneseq
          %v683 = vshrl.u32 %v682, 7
          %v684 = vsub.s32 3, %v683
          %v685 = vrot.slane %v668, %v684
          %v690 = vadd.f32 %v664, %v673
          %v691 = vadd.f32 %v665, %v677
          %v692 = vadd.f32 %v666, %v681
          %v693 = vadd.f32 %v667, %v685
          %s694 = sld [smem:[#allocation3]]
          %v695 = vstv %s694
          %v696 = vmul.f32 %v690, %v695
          %v697 = vmul.f32 %v691, %v695
          %v698 = vmul.f32 %v692, %v695
          %v699 = vmul.f32 %v693, %v695
          %v700 = vmax.f32 %v696, 0.0
          %v701 = vmax.f32 %v697, 0.0
          %v702 = vmax.f32 %v698, 0.0
          %v703 = vmax.f32 %v699, 0.0
          %704 = vst [vmem:[%s363] sm:$0xff] %v700
          %705 = vst [vmem:[%s363 + $0x8] sm:$0xff] %v701
          %706 = vst [vmem:[%s363 + $0x10] sm:$0xff] %v702
          %707 = vst [vmem:[%s363 + $0x18] sm:$0xff] %v703
        $region67: #{vae_forward.10} parent=54 // pred_fallthru
          _
        %s708 = smul.u32 4, %s22
        %p709 = scmp.lt.s32.totalorder %s21, 0
        %s710 = scalar_select %p709, %s21, 0
        %p711 = scmp.lt.s32.totalorder %s708, 11
        %s712 = scalar_select %p711, %s708, 11
        %s713 = smul.addr %s710, 12
        %s714 = sadd.s32 %s712, %s713
        %s715 = smul.addr %s714, 8
        %s716 = scalar_lea.vmem %s4, %s715
        // Predicated region
        $region68: #{vae_forward.10} parent=54 // pred_check
          %p717 = pneg %p158
        $region69: #{vae_forward.10} parent=54 // pred_check_branch
          %719 = sbr.rel (%p717) target = $region71
        $region70: #{vae_forward.10} parent=54 // pred_region
          %s720 = smul.u32 4, %s22
        $region71: #{vae_forward.10} parent=54 // pred_fallthru
          _
      $region55: #{vae_forward.10} parent=5 // pred_fallthru
        _
      %p721 = scmp.le.s32.totalorder 2, %s11
      // Predicated region
      $region72: #{vae_forward.10} parent=5 // pred_check
        %p722 = pneg %p721
      $region73: #{vae_forward.10} parent=5 // pred_check_branch
        %724 = sbr.rel (%p722) target = $region75
      $region74: #{vae_forward.10} parent=5 // pred_region
        %s725 = ssub.s32 %s11, 2
        // Predicated region
        $region76: #{vae_forward.10} parent=74 // pred_check
          %p726 = pneg %p164
        $region77: #{vae_forward.10} parent=74 // pred_check_branch
          %728 = sbr.rel (%p726) target = $region79
        $region78: #{vae_forward.10} parent=74 // pred_region
          %s729 = smul.u32 4, %s25
          %p730 = scmp.lt.s32.totalorder %s24, 0
          %s731 = scalar_select %p730, %s24, 0
          %p732 = scmp.lt.s32.totalorder %s729, 11
          %s733 = scalar_select %p732, %s729, 11
          %s734 = smul.addr %s731, 12
          %s735 = sadd.s32 %s733, %s734
          %s736 = smul.addr %s735, 8
          %s737 = scalar_lea.vmem %s4, %s736
        $region79: #{vae_forward.10} parent=74 // pred_fallthru
          _
      $region75: #{vae_forward.10} parent=5 // pred_fallthru
        _
    $region6: #{vae_forward.10} parent=1 // loop_footer
      %s15 = sadd.s32 1, %s11
    $region7: #{vae_forward.10} parent=1 // loop_footer_branch
      %10 = sbr.rel target = $region3
    $region8: #{vae_forward.10} parent=1 // loop_exit
      _

// kernel: vae_forward.12
$region0: #{vae_forward.12}
  #allocation0 [shape = 'u32[]', space=smem, size = 0x4, offset = 0x4, fixed_abs, tag = 'smem constant byte address 0x4 - core index']
  #allocation1 [shape = 'u32[144,128]{1,0:T(1,128)}', space=vmem, size = 0x12000, scoped, tag = 'internal scratch']
  #allocation2 [shape = 'f32[8,128]{1,0:T(8,128)}', space=vmem, size = 0x1000, scoped, tag = 'scratch operand']
  #allocation3 [shape = 'f32[1]{0:T(128)S(6)}', space=smem, size = 0x200, scoped, tag = 'scoped memory for vae_forward.12']
  %s0 = inlined_call_operand.<no memory space> [shape: f32[1], index: 0, kind: input, shape index: {}]
  %s1 = inlined_call_operand.vmem [shape: bf16[8,1536], index: 1, kind: input, shape index: {}]
  %s2 = inlined_call_operand.vmem [shape: bf16[1536,128], index: 2, kind: input, shape index: {}]
  %s3 = inlined_call_operand.vmem [shape: f32[1,128], index: 3, kind: input, shape index: {}]
  %s4 = inlined_call_operand.vmem [shape: f32[8,128], index: 4, kind: output, shape index: {}]
  %s5 = sld [smem:[#allocation0]]
  $region57: #{vae_forward.12} parent=0
    _
  %s7 = ssub.s32 1, %s5
  %s8 = scalar_select 0, %s7, %s5
  %9 = sst [smem:[#allocation3]] %s0
  loop: start=0, step=1, limit=5
  $region2: #{vae_forward.12} parent=0 // loop_pre_header
    _
  $region3: #{vae_forward.12} parent=0 // loop_header
    %s11 = sphi 0, %s15
    %p12 = scmp.ge.s32.totalorder %s11, 5
    %s18 = sphi 0, %s37
    %s19 = sphi 0, %s33
    %s20 = sphi 0, %s29
    %s21 = sphi 0, %s18
    %s22 = sphi 0, %s19
    %s23 = sphi 0, %s20
    %s24 = sphi 0, %s21
    %s25 = sphi 0, %s22
    %s26 = sphi 0, %s23
    %s38 = sphi 0, %s38
    %s40 = sphi 0, %s38
    %s41 = sphi 0, %s40
    %s55 = sphi 0, %s41
    %s63 = sphi 0, %s65
    %s66 = sphi 0, %s63
    %s67 = sphi 0, %s66
    %s83 = sphi 0, %s67
    %s91 = sphi 0, %s93
    %s94 = sphi 0, %s91
    %s95 = sphi 0, %s94
    %s111 = sphi 0, %s95
    %s117 = sphi 0, %s119
    %s120 = sphi 0, %s117
    %s121 = sphi 0, %s120
    %s137 = sphi 0, %s121
    %s145 = sphi 0, %s147
    %s148 = sphi 0, %s145
    %s149 = sphi 0, %s148
    %s165 = sphi 0, %s149
  $region4: #{vae_forward.12} parent=0 // loop_header_branch
    %14 = sbr.rel (%p12) target = $region8
  $region5: #{vae_forward.12} parent=0 // loop_body
    %s16 = ssub.s32 %s11, 1
    %s17 = ssub.s32 %s11, 2
    %s27 = sadd.s32 1, %s20
    %p28 = scmp.ge.s32.totalorder %s27, 3
    %s29 = scalar_select %p28, 0, %s27
    %s30 = sadd.s32 1, %s19
    %s31 = scalar_select %p28, %s30, %s19
    %p32 = scmp.ge.s32.totalorder %s31, 1
    %s33 = scalar_select %p32, 0, %s31
    %s34 = sadd.s32 1, %s18
    %s35 = scalar_select %p32, %s34, %s18
    %p36 = scmp.ge.s32.totalorder %s35, 1
    %s37 = scalar_select %p36, 0, %s35
    %s39 = sadd.s32 %s38, 1
    %p42 = scmp.eq.s32.totalorder %s11, 2
    %p43 = scmp.ne.s32.totalorder %s38, %s40
    %p44 = scmp.eq.s32.totalorder %s11, 0
    %p45 = por %p43, %p44
    %p46 = scmp.ne.s32.totalorder %s38, %s40
    %p47 = scmp.eq.s32.totalorder %s16, 2
    %p48 = por %p46, %p47
    %p49 = scmp.ne.s32.totalorder %s40, %s41
    %p50 = scmp.eq.s32.totalorder %s16, 0
    %p51 = por %p49, %p50
    %p52 = scmp.ne.s32.totalorder %s40, %s41
    %p53 = scmp.eq.s32.totalorder %s17, 2
    %p54 = por %p52, %p53
    %p56 = scmp.ne.s32.totalorder %s41, %s55
    %p57 = scmp.eq.s32.totalorder %s17, 0
    %p58 = por %p56, %p57
    %s59 = ssub.s32 %s18, %s37
    %s60 = ssub.s32 %s20, %s29
    %s61 = sor.u32 %s59, %s60
    %p62 = scmp.eq.s32.totalorder %s61, 0
    %s64 = sadd.s32 %s63, 1
    %s65 = scalar_select %p62, %s63, %s64
    %p68 = pneg %p62
    %p69 = scmp.eq.s32.totalorder %s11, 2
    %p70 = por %p68, %p69
    %p71 = scmp.ne.s32.totalorder %s63, %s66
    %p72 = scmp.eq.s32.totalorder %s11, 0
    %p73 = por %p71, %p72
    %p74 = scmp.ne.s32.totalorder %s63, %s66
    %p75 = scmp.eq.s32.totalorder %s16, 2
    %p76 = por %p74, %p75
    %p77 = scmp.ne.s32.totalorder %s66, %s67
    %p78 = scmp.eq.s32.totalorder %s16, 0
    %p79 = por %p77, %p78
    %p80 = scmp.ne.s32.totalorder %s66, %s67
    %p81 = scmp.eq.s32.totalorder %s17, 2
    %p82 = por %p80, %p81
    %p84 = scmp.ne.s32.totalorder %s67, %s83
    %p85 = scmp.eq.s32.totalorder %s17, 0
    %p86 = por %p84, %p85
    %s87 = ssub.s32 %s20, %s29
    %s88 = ssub.s32 %s19, %s33
    %s89 = sor.u32 %s87, %s88
    %p90 = scmp.eq.s32.totalorder %s89, 0
    %s92 = sadd.s32 %s91, 1
    %s93 = scalar_select %p90, %s91, %s92
    %p96 = pneg %p90
    %p97 = scmp.eq.s32.totalorder %s11, 2
    %p98 = por %p96, %p97
    %p99 = scmp.ne.s32.totalorder %s91, %s94
    %p100 = scmp.eq.s32.totalorder %s11, 0
    %p101 = por %p99, %p100
    %p102 = scmp.ne.s32.totalorder %s91, %s94
    %p103 = scmp.eq.s32.totalorder %s16, 2
    %p104 = por %p102, %p103
    %p105 = scmp.ne.s32.totalorder %s94, %s95
    %p106 = scmp.eq.s32.totalorder %s16, 0
    %p107 = por %p105, %p106
    %p108 = scmp.ne.s32.totalorder %s94, %s95
    %p109 = scmp.eq.s32.totalorder %s17, 2
    %p110 = por %p108, %p109
    %p112 = scmp.ne.s32.totalorder %s95, %s111
    %p113 = scmp.eq.s32.totalorder %s17, 0
    %p114 = por %p112, %p113
    %s115 = ssub.s32 %s19, %s33
    %p116 = scmp.eq.s32.totalorder %s115, 0
    %s118 = sadd.s32 %s117, 1
    %s119 = scalar_select %p116, %s117, %s118
    %p122 = pneg %p116
    %p123 = scmp.eq.s32.totalorder %s11, 2
    %p124 = por %p122, %p123
    %p125 = scmp.ne.s32.totalorder %s117, %s120
    %p126 = scmp.eq.s32.totalorder %s11, 0
    %p127 = por %p125, %p126
    %p128 = scmp.ne.s32.totalorder %s117, %s120
    %p129 = scmp.eq.s32.totalorder %s16, 2
    %p130 = por %p128, %p129
    %p131 = scmp.ne.s32.totalorder %s120, %s121
    %p132 = scmp.eq.s32.totalorder %s16, 0
    %p133 = por %p131, %p132
    %p134 = scmp.ne.s32.totalorder %s120, %s121
    %p135 = scmp.eq.s32.totalorder %s17, 2
    %p136 = por %p134, %p135
    %p138 = scmp.ne.s32.totalorder %s121, %s137
    %p139 = scmp.eq.s32.totalorder %s17, 0
    %p140 = por %p138, %p139
    %s141 = ssub.s32 %s18, %s37
    %s142 = ssub.s32 %s19, %s33
    %s143 = sor.u32 %s141, %s142
    %p144 = scmp.eq.s32.totalorder %s143, 0
    %s146 = sadd.s32 %s145, 1
    %s147 = scalar_select %p144, %s145, %s146
    %p150 = pneg %p144
    %p151 = scmp.eq.s32.totalorder %s11, 2
    %p152 = por %p150, %p151
    %p153 = scmp.ne.s32.totalorder %s145, %s148
    %p154 = scmp.eq.s32.totalorder %s11, 0
    %p155 = por %p153, %p154
    %p156 = scmp.ne.s32.totalorder %s145, %s148
    %p157 = scmp.eq.s32.totalorder %s16, 2
    %p158 = por %p156, %p157
    %p159 = scmp.ne.s32.totalorder %s148, %s149
    %p160 = scmp.eq.s32.totalorder %s16, 0
    %p161 = por %p159, %p160
    %p162 = scmp.ne.s32.totalorder %s148, %s149
    %p163 = scmp.eq.s32.totalorder %s17, 2
    %p164 = por %p162, %p163
    %p166 = scmp.ne.s32.totalorder %s149, %s165
    %p167 = scmp.eq.s32.totalorder %s17, 0
    %p168 = por %p166, %p167
    %p169 = scmp.le.s32.totalorder 1, %s11
    %p170 = scmp.lt.s32.totalorder %s11, 4
    %p171 = pnand %p169, %p170
    %p172 = pneg %p171
    // Predicated region
    $region9: #{vae_forward.12} parent=5 // pred_check
      _
    $region10: #{vae_forward.12} parent=5 // pred_check_branch
      %174 = sbr.rel (%p171) target = $region12
    $region11: #{vae_forward.12} parent=5 // pred_region
      %s175 = ssub.s32 %s11, 1
      // Predicated region
      $region13: #{vae_forward.12} parent=11 // pred_check
        %p176 = pneg %p51
      $region14: #{vae_forward.12} parent=11 // pred_check_branch
        %178 = sbr.rel (%p176) target = $region16
      $region15: #{vae_forward.12} parent=11 // pred_region
        _
      $region16: #{vae_forward.12} parent=11 // pred_fallthru
        _
      // Predicated region
      $region17: #{vae_forward.12} parent=11 // pred_check
        %p179 = pneg %p133
      $region18: #{vae_forward.12} parent=11 // pred_check_branch
        %181 = sbr.rel (%p179) target = $region20
      $region19: #{vae_forward.12} parent=11 // pred_region
        %p182 = scmp.lt.s32.totalorder %s22, 0
        %s183 = scalar_select %p182, %s22, 0
        %s184 = scalar_lea.vmem %s3, %s183
      $region20: #{vae_forward.12} parent=11 // pred_fallthru
        _
    $region12: #{vae_forward.12} parent=5 // pred_fallthru
      _
    %p185 = scmp.lt.s32.totalorder %s11, 3
    // Predicated region
    $region21: #{vae_forward.12} parent=5 // pred_check
      %p186 = pneg %p185
    $region22: #{vae_forward.12} parent=5 // pred_check_branch
      %188 = sbr.rel (%p186) target = $region24
    $region23: #{vae_forward.12} parent=5 // pred_region
      // Predicated region
      $region25: #{vae_forward.12} parent=23 // pred_check
        %p189 = pneg %p73
      $region26: #{vae_forward.12} parent=23 // pred_check_branch
        %191 = sbr.rel (%p189) target = $region28
      $region27: #{vae_forward.12} parent=23 // pred_region
        %s192 = smul.u32 4, %s20
        %p193 = scmp.lt.s32.totalorder %s18, 0
        %s194 = scalar_select %p193, %s18, 0
        %p195 = scmp.lt.s32.totalorder %s192, 11
        %s196 = scalar_select %p195, %s192, 11
        %s197 = smul.addr %s194, 12
        %s198 = sadd.s32 %s196, %s197
        %s199 = smul.addr %s198, 4
        %s200 = scalar_lea.vmem %s1, %s199
        %s201 = smul.u32 4, %s20
      $region28: #{vae_forward.12} parent=23 // pred_fallthru
        _
      // Predicated region
      $region29: #{vae_forward.12} parent=23 // pred_check
        %p202 = pneg %p101
      $region30: #{vae_forward.12} parent=23 // pred_check_branch
        %204 = sbr.rel (%p202) target = $region32
      $region31: #{vae_forward.12} parent=23 // pred_region
        %s205 = smul.u32 64, %s20
        %p206 = scmp.lt.s32.totalorder %s205, 191
        %s207 = scalar_select %p206, %s205, 191
        %p208 = scmp.lt.s32.totalorder %s19, 0
        %s209 = scalar_select %p208, %s19, 0
        %s210 = sadd.s32 %s209, %s207
        %s211 = smul.addr %s210, 4
        %s212 = scalar_lea.vmem %s2, %s211
        %s213 = smul.u32 64, %s20
      $region32: #{vae_forward.12} parent=23 // pred_fallthru
        _
    $region24: #{vae_forward.12} parent=5 // pred_fallthru
      _
    %p214 = scmp.le.s32.totalorder 1, %s11
    %p215 = scmp.lt.s32.totalorder %s11, 4
    %p216 = pnand %p214, %p215
    %p217 = pneg %p216
    // Predicated region
    $region33: #{vae_forward.12} parent=5 // pred_check
      _
    $region34: #{vae_forward.12} parent=5 // pred_check_branch
      %219 = sbr.rel (%p216) target = $region36
    $region35: #{vae_forward.12} parent=5 // pred_region
      %s220 = ssub.s32 %s11, 1
      %p221 = pneg %p51
      %p222 = pneg %p48
      %s223 = smul.u32 4, %s23
      %p224 = scmp.lt.s32.totalorder %s21, 0
      %s225 = scalar_select %p224, %s21, 0
      %p226 = scmp.lt.s32.totalorder %s223, 11
      %s227 = scalar_select %p226, %s223, 11
      %s228 = smul.addr %s225, 12
      %s229 = sadd.s32 %s227, %s228
      %s230 = smul.addr %s229, 4
      %s231 = scalar_lea.vmem %s1, %s230
      %p232 = pneg %p79
      %p233 = pneg %p76
      %s234 = smul.u32 64, %s23
      %p235 = scmp.lt.s32.totalorder %s234, 191
      %s236 = scalar_select %p235, %s234, 191
      %p237 = scmp.lt.s32.totalorder %s22, 0
      %s238 = scalar_select %p237, %s22, 0
      %s239 = sadd.s32 %s238, %s236
      %s240 = smul.addr %s239, 4
      %s241 = scalar_lea.vmem %s2, %s240
      %p242 = pneg %p107
      %p243 = pneg %p104
      %p244 = scmp.lt.s32.totalorder %s22, 0
      %s245 = scalar_select %p244, %s22, 0
      %s246 = scalar_lea.vmem %s3, %s245
      %p247 = pneg %p133
      %p248 = pneg %p130
      %p249 = pneg %p161
      %p250 = pneg %p158
      %p251 = scmp.lt.s32.totalorder %s21, 0
      %s252 = scalar_select %p251, %s21, 0
      %p253 = scmp.lt.s32.totalorder %s22, 0
      %s254 = scalar_select %p253, %s22, 0
      %s255 = sadd.s32 %s254, %s252
      %s256 = smul.addr %s255, 8
      %s257 = scalar_lea.vmem %s4, %s256
      %s258 = smul.u32 4, %s23
      %p259 = scmp.lt.s32.totalorder %s21, 0
      %s260 = scalar_select %p259, %s21, 0
      %p261 = scmp.lt.s32.totalorder %s258, 11
      %s262 = scalar_select %p261, %s258, 11
      %s263 = smul.addr %s260, 12
      %s264 = sadd.s32 %s262, %s263
      %s265 = smul.addr %s264, 4
      %s266 = scalar_lea.vmem %s1, %s265
      %s267 = smul.u32 4, %s23
      %s268 = smul.u32 64, %s23
      %p269 = scmp.lt.s32.totalorder %s268, 191
      %s270 = scalar_select %p269, %s268, 191
      %p271 = scmp.lt.s32.totalorder %s22, 0
      %s272 = scalar_select %p271, %s22, 0
      %s273 = sadd.s32 %s272, %s270
      %s274 = smul.addr %s273, 4
      %s275 = scalar_lea.vmem %s2, %s274
      %s276 = smul.u32 64, %s23
      %p277 = scmp.lt.s32.totalorder %s22, 0
      %s278 = scalar_select %p277, %s22, 0
      %s279 = scalar_lea.vmem %s3, %s278
      %p280 = scmp.lt.s32.totalorder %s21, 0
      %s281 = scalar_select %p280, %s21, 0
      %p282 = scmp.lt.s32.totalorder %s22, 0
      %s283 = scalar_select %p282, %s22, 0
      %s284 = sadd.s32 %s283, %s281
      %s285 = smul.addr %s284, 8
      %s286 = scalar_lea.vmem %s4, %s285
      %p288 = scmp.eq.s32.totalorder %s23, 0
      // Predicated region
      $region37: #{vae_forward.12} parent=35 // pred_check
        %p289 = pneg %p288
      $region38: #{vae_forward.12} parent=35 // pred_check_branch
        %291 = sbr.rel (%p289) target = $region40
      $region39: #{vae_forward.12} parent=35 // pred_region
        %292 = vst [vmem:[#allocation2] sm:$0xff] 0.0
      $region40: #{vae_forward.12} parent=35 // pred_fallthru
        _
      %v293 = vld [vmem:[#allocation2] sm:$0xff]
      %v294 = vld [vmem:[%s266] sm:$0xff]
      %v295 = vld [vmem:[%s266 + $0x8] sm:$0xff]
      %v296 = vld [vmem:[%s275] sm:$0xf]
      %v297 = vld [vmem:[%s275 + $0x4] sm:$0xf]
      %v298 = vld [vmem:[%s275 + $0x8] sm:$0xf]
      %v299 = vld [vmem:[%s275 + $0xc] sm:$0xf]
      %v300 = vld [vmem:[%s275 + $0x10] sm:$0xf]
      %v301 = vld [vmem:[%s275 + $0x14] sm:$0xf]
      %v302 = vld [vmem:[%s275 + $0x18] sm:$0xf]
      %v303 = vld [vmem:[%s275 + $0x1c] sm:$0xf]
      %v304 = vld [vmem:[%s275 + $0x20] sm:$0xf]
      %v305 = vld [vmem:[%s275 + $0x24] sm:$0xf]
      %v306 = vld [vmem:[%s275 + $0x28] sm:$0xf]
      %v307 = vld [vmem:[%s275 + $0x2c] sm:$0xf]
      %v308 = vld [vmem:[%s275 + $0x30] sm:$0xf]
      %v309 = vld [vmem:[%s275 + $0x34] sm:$0xf]
      %v310 = vld [vmem:[%s275 + $0x38] sm:$0xf]
      %v311 = vld [vmem:[%s275 + $0x3c] sm:$0xf]
      %v312 = vld [vmem:[%s275 + $0x40] sm:$0xf]
      %v313 = vld [vmem:[%s275 + $0x44] sm:$0xf]
      %v314 = vld [vmem:[%s275 + $0x48] sm:$0xf]
      %v315 = vld [vmem:[%s275 + $0x4c] sm:$0xf]
      %v316 = vld [vmem:[%s275 + $0x50] sm:$0xf]
      %v317 = vld [vmem:[%s275 + $0x54] sm:$0xf]
      %v318 = vld [vmem:[%s275 + $0x58] sm:$0xf]
      %v319 = vld [vmem:[%s275 + $0x5c] sm:$0xf]
      %v320 = vld [vmem:[%s275 + $0x60] sm:$0xf]
      %v321 = vld [vmem:[%s275 + $0x64] sm:$0xf]
      %v322 = vld [vmem:[%s275 + $0x68] sm:$0xf]
      %v323 = vld [vmem:[%s275 + $0x6c] sm:$0xf]
      %v324 = vld [vmem:[%s275 + $0x70] sm:$0xf]
      %v325 = vld [vmem:[%s275 + $0x74] sm:$0xf]
      %v326 = vld [vmem:[%s275 + $0x78] sm:$0xf]
      %v327 = vld [vmem:[%s275 + $0x7c] sm:$0xf]
      %v328 = vld [vmem:[%s275 + $0x80] sm:$0xf]
      %v329 = vld [vmem:[%s275 + $0x84] sm:$0xf]
      %v330 = vld [vmem:[%s275 + $0x88] sm:$0xf]
      %v331 = vld [vmem:[%s275 + $0x8c] sm:$0xf]
      %v332 = vld [vmem:[%s275 + $0x90] sm:$0xf]
      %v333 = vld [vmem:[%s275 + $0x94] sm:$0xf]
      %v334 = vld [vmem:[%s275 + $0x98] sm:$0xf]
      %v335 = vld [vmem:[%s275 + $0x9c] sm:$0xf]
      %v336 = vld [vmem:[%s275 + $0xa0] sm:$0xf]
      %v337 = vld [vmem:[%s275 + $0xa4] sm:$0xf]
      %v338 = vld [vmem:[%s275 + $0xa8] sm:$0xf]
      %v339 = vld [vmem:[%s275 + $0xac] sm:$0xf]
      %v340 = vld [vmem:[%s275 + $0xb0] sm:$0xf]
      %v341 = vld [vmem:[%s275 + $0xb4] sm:$0xf]
      %v342 = vld [vmem:[%s275 + $0xb8] sm:$0xf]
      %v343 = vld [vmem:[%s275 + $0xbc] sm:$0xf]
      %v344 = vld [vmem:[%s275 + $0xc0] sm:$0xf]
      %v345 = vld [vmem:[%s275 + $0xc4] sm:$0xf]
      %v346 = vld [vmem:[%s275 + $0xc8] sm:$0xf]
      %v347 = vld [vmem:[%s275 + $0xcc] sm:$0xf]
      %v348 = vld [vmem:[%s275 + $0xd0] sm:$0xf]
      %v349 = vld [vmem:[%s275 + $0xd4] sm:$0xf]
      %v350 = vld [vmem:[%s275 + $0xd8] sm:$0xf]
      %v351 = vld [vmem:[%s275 + $0xdc] sm:$0xf]
      %v352 = vld [vmem:[%s275 + $0xe0] sm:$0xf]
      %v353 = vld [vmem:[%s275 + $0xe4] sm:$0xf]
      %v354 = vld [vmem:[%s275 + $0xe8] sm:$0xf]
      %v355 = vld [vmem:[%s275 + $0xec] sm:$0xf]
      %v356 = vld [vmem:[%s275 + $0xf0] sm:$0xf]
      %v357 = vld [vmem:[%s275 + $0xf4] sm:$0xf]
      %v358 = vld [vmem:[%s275 + $0xf8] sm:$0xf]
      %v359 = vld [vmem:[%s275 + $0xfc] sm:$0xf]
      %v362 = vunpack.c.l.b16 %v294
      %v363 = vunpack.c.h.b16 %v294
      %v364 = vunpack.c.l.b16 %v295
      %v365 = vunpack.c.h.b16 %v295
      %v366 = vpack.c.b16 %v362, %v362
      %v367 = vpack.c.b16 %v363, %v363
      %v368 = vpack.c.b16 %v364, %v364
      %v369 = vpack.c.b16 %v365, %v365
      %v438 = vunpack.c.l.b16 %v296
      %v439 = vunpack.c.l.b16 %v297
      %v440 = vunpack.c.l.b16 %v298
      %v441 = vunpack.c.l.b16 %v299
      %v442 = vunpack.c.l.b16 %v300
      %v443 = vunpack.c.l.b16 %v301
      %v444 = vunpack.c.l.b16 %v302
      %v445 = vunpack.c.l.b16 %v303
      %v446 = vunpack.c.l.b16 %v304
      %v447 = vunpack.c.l.b16 %v305
      %v448 = vunpack.c.l.b16 %v306
      %v449 = vunpack.c.l.b16 %v307
      %v450 = vunpack.c.l.b16 %v308
      %v451 = vunpack.c.l.b16 %v309
      %v452 = vunpack.c.l.b16 %v310
      %v453 = vunpack.c.l.b16 %v311
      %v454 = vunpack.c.l.b16 %v312
      %v455 = vunpack.c.l.b16 %v313
      %v456 = vunpack.c.l.b16 %v314
      %v457 = vunpack.c.l.b16 %v315
      %v458 = vunpack.c.l.b16 %v316
      %v459 = vunpack.c.l.b16 %v317
      %v460 = vunpack.c.l.b16 %v318
      %v461 = vunpack.c.l.b16 %v319
      %v462 = vunpack.c.l.b16 %v320
      %v463 = vunpack.c.l.b16 %v321
      %v464 = vunpack.c.l.b16 %v322
      %v465 = vunpack.c.l.b16 %v323
      %v466 = vunpack.c.l.b16 %v324
      %v467 = vunpack.c.l.b16 %v325
      %v468 = vunpack.c.l.b16 %v326
      %v469 = vunpack.c.l.b16 %v327
      %v470 = vunpack.c.l.b16 %v328
      %v471 = vunpack.c.l.b16 %v329
      %v472 = vunpack.c.l.b16 %v330
      %v473 = vunpack.c.l.b16 %v331
      %v474 = vunpack.c.l.b16 %v332
      %v475 = vunpack.c.l.b16 %v333
      %v476 = vunpack.c.l.b16 %v334
      %v477 = vunpack.c.l.b16 %v335
      %v478 = vunpack.c.l.b16 %v336
      %v479 = vunpack.c.l.b16 %v337
      %v480 = vunpack.c.l.b16 %v338
      %v481 = vunpack.c.l.b16 %v339
      %v482 = vunpack.c.l.b16 %v340
      %v483 = vunpack.c.l.b16 %v341
      %v484 = vunpack.c.l.b16 %v342
      %v485 = vunpack.c.l.b16 %v343
      %v486 = vunpack.c.l.b16 %v344
      %v487 = vunpack.c.l.b16 %v345
      %v488 = vunpack.c.l.b16 %v346
      %v489 = vunpack.c.l.b16 %v347
      %v490 = vunpack.c.l.b16 %v348
      %v491 = vunpack.c.l.b16 %v349
      %v492 = vunpack.c.l.b16 %v350
      %v493 = vunpack.c.l.b16 %v351
      %v494 = vunpack.c.l.b16 %v352
      %v495 = vunpack.c.l.b16 %v353
      %v496 = vunpack.c.l.b16 %v354
      %v497 = vunpack.c.l.b16 %v355
      %v498 = vunpack.c.l.b16 %v356
      %v499 = vunpack.c.l.b16 %v357
      %v500 = vunpack.c.l.b16 %v358
      %v501 = vunpack.c.l.b16 %v359
      %v502 = vpack.c.b16 %v439, %v438
      %v503 = vpack.c.b16 %v441, %v440
      %v504 = vpack.c.b16 %v443, %v442
      %v505 = vpack.c.b16 %v445, %v444
      %v506 = vpack.c.b16 %v447, %v446
      %v507 = vpack.c.b16 %v449, %v448
      %v508 = vpack.c.b16 %v451, %v450
      %v509 = vpack.c.b16 %v453, %v452
      %v510 = vpack.c.b16 %v455, %v454
      %v511 = vpack.c.b16 %v457, %v456
      %v512 = vpack.c.b16 %v459, %v458
      %v513 = vpack.c.b16 %v461, %v460
      %v514 = vpack.c.b16 %v463, %v462
      %v515 = vpack.c.b16 %v465, %v464
      %v516 = vpack.c.b16 %v467, %v466
      %v517 = vpack.c.b16 %v469, %v468
      %v518 = vpack.c.b16 %v471, %v470
      %v519 = vpack.c.b16 %v473, %v472
      %v520 = vpack.c.b16 %v475, %v474
      %v521 = vpack.c.b16 %v477, %v476
      %v522 = vpack.c.b16 %v479, %v478
      %v523 = vpack.c.b16 %v481, %v480
      %v524 = vpack.c.b16 %v483, %v482
      %v525 = vpack.c.b16 %v485, %v484
      %v526 = vpack.c.b16 %v487, %v486
      %v527 = vpack.c.b16 %v489, %v488
      %v528 = vpack.c.b16 %v491, %v490
      %v529 = vpack.c.b16 %v493, %v492
      %v530 = vpack.c.b16 %v495, %v494
      %v531 = vpack.c.b16 %v497, %v496
      %v532 = vpack.c.b16 %v499, %v498
      %v533 = vpack.c.b16 %v501, %v500
      %566 = vmatprep.subr.bf16.mxu0 0
      %567 = vmatpush1.bf16.msra.mxu0 %v502
      %568 = vmatprep.subr.bf16.mxu0 0
      %569 = vmatpush1.bf16.msra.mxu0 %v503
      %570 = vmatprep.subr.bf16.mxu0 0
      %571 = vmatpush1.bf16.msra.mxu0 %v504
      %572 = vmatprep.subr.bf16.mxu0 0
      %573 = vmatpush1.bf16.msra.mxu0 %v505
      %574 = vmatprep.subr.bf16.mxu0 0
      %575 = vmatpush1.bf16.msra.mxu0 %v506
      %576 = vmatprep.subr.bf16.mxu0 0
      %577 = vmatpush1.bf16.msra.mxu0 %v507
      %578 = vmatprep.subr.bf16.mxu0 0
      %579 = vmatpush1.bf16.msra.mxu0 %v508
      %580 = vmatprep.subr.bf16.mxu0 0
      %581 = vmatpush1.bf16.msra.mxu0 %v509
      %582 = vmatprep.subr.bf16.mxu0 0
      %583 = vmatpush1.bf16.msra.mxu0 %v510
      %584 = vmatprep.subr.bf16.mxu0 0
      %585 = vmatpush1.bf16.msra.mxu0 %v511
      %586 = vmatprep.subr.bf16.mxu0 0
      %587 = vmatpush1.bf16.msra.mxu0 %v512
      %588 = vmatprep.subr.bf16.mxu0 0
      %589 = vmatpush1.bf16.msra.mxu0 %v513
      %590 = vmatprep.subr.bf16.mxu0 0
      %591 = vmatpush1.bf16.msra.mxu0 %v514
      %592 = vmatprep.subr.bf16.mxu0 0
      %593 = vmatpush1.bf16.msra.mxu0 %v515
      %594 = vmatprep.subr.bf16.mxu0 0
      %595 = vmatpush1.bf16.msra.mxu0 %v516
      %596 = vmatprep.subr.bf16.mxu0 0
      %597 = vmatpush1.bf16.msra.mxu0 %v517
      %598 = vmatprep.mubr.bf16.mxu0 %v367
      %599 = vmatmul.mubr.bf16.gmra.mrb[0].mxu0 %v366
      %v600 = vpop.f32.mrb[0].mxu0
      %v601 = vadd.f32 0.0, %v600
      %v602 = vpop.f32.mrb[0].mxu0
      %v603 = vpop.f32.mrb[0].mxu0
      %v604 = vpop.f32.mrb[0].mxu0
      %605 = vdwg.mxu0
      %606 = vmatprep.subr.bf16.mxu0 0
      %607 = vmatpush1.bf16.msra.mxu0 %v518
      %608 = vmatprep.subr.bf16.mxu0 0
      %609 = vmatpush1.bf16.msra.mxu0 %v519
      %610 = vmatprep.subr.bf16.mxu0 0
      %611 = vmatpush1.bf16.msra.mxu0 %v520
      %612 = vmatprep.subr.bf16.mxu0 0
      %613 = vmatpush1.bf16.msra.mxu0 %v521
      %614 = vmatprep.subr.bf16.mxu0 0
      %615 = vmatpush1.bf16.msra.mxu0 %v522
      %616 = vmatprep.subr.bf16.mxu0 0
      %617 = vmatpush1.bf16.msra.mxu0 %v523
      %618 = vmatprep.subr.bf16.mxu0 0
      %619 = vmatpush1.bf16.msra.mxu0 %v524
      %620 = vmatprep.subr.bf16.mxu0 0
      %621 = vmatpush1.bf16.msra.mxu0 %v525
      %622 = vmatprep.subr.bf16.mxu0 0
      %623 = vmatpush1.bf16.msra.mxu0 %v526
      %624 = vmatprep.subr.bf16.mxu0 0
      %625 = vmatpush1.bf16.msra.mxu0 %v527
      %626 = vmatprep.subr.bf16.mxu0 0
      %627 = vmatpush1.bf16.msra.mxu0 %v528
      %628 = vmatprep.subr.bf16.mxu0 0
      %629 = vmatpush1.bf16.msra.mxu0 %v529
      %630 = vmatprep.subr.bf16.mxu0 0
      %631 = vmatpush1.bf16.msra.mxu0 %v530
      %632 = vmatprep.subr.bf16.mxu0 0
      %633 = vmatpush1.bf16.msra.mxu0 %v531
      %634 = vmatprep.subr.bf16.mxu0 0
      %635 = vmatpush1.bf16.msra.mxu0 %v532
      %636 = vmatprep.subr.bf16.mxu0 0
      %637 = vmatpush1.bf16.msra.mxu0 %v533
      %638 = vmatprep.mubr.bf16.mxu0 %v369
      %639 = vmatmul.mubr.bf16.gmra.mrb[0].mxu0 %v368
      %v640 = vpop.f32.mrb[0].mxu0
      %v641 = vadd.f32 %v601, %v640
      %v642 = vpop.f32.mrb[0].mxu0
      %v643 = vpop.f32.mrb[0].mxu0
      %v644 = vpop.f32.mrb[0].mxu0
      %645 = vdwg.mxu0
      %v646 = vadd.f32 %v293, %v641
      %647 = vst [vmem:[#allocation2] sm:$0xff] %v646
      %p648 = scmp.eq.s32.totalorder %s23, 2
      // Predicated region
      $region41: #{vae_forward.12} parent=35 // pred_check
        %p649 = pneg %p648
      $region42: #{vae_forward.12} parent=35 // pred_check_branch
        %651 = sbr.rel (%p649) target = $region44
      $region43: #{vae_forward.12} parent=35 // pred_region
        %v652 = vld [vmem:[#allocation2] sm:$0xff]
        %v653 = vld [vmem:[%s279] sm:$0x1]
        %v655 = vlaneseq
        %v656 = vshrl.u32 %v655, 7
        %v657 = vsub.s32 0, %v656
        %v658 = vrot.slane %v653, %v657
        %v660 = vadd.f32 %v652, %v658
        %s661 = sld [smem:[#allocation3]]
        %v662 = vstv %s661
        %v663 = vmul.f32 %v660, %v662
        %664 = vst [vmem:[%s286] sm:$0xff] %v663
      $region44: #{vae_forward.12} parent=35 // pred_fallthru
        _
      %p665 = scmp.lt.s32.totalorder %s21, 0
      %s666 = scalar_select %p665, %s21, 0
      %p667 = scmp.lt.s32.totalorder %s22, 0
      %s668 = scalar_select %p667, %s22, 0
      %s669 = sadd.s32 %s668, %s666
      %s670 = smul.addr %s669, 8
      %s671 = scalar_lea.vmem %s4, %s670
      // Predicated region
      $region45: #{vae_forward.12} parent=35 // pred_check
        %p672 = pneg %p158
      $region46: #{vae_forward.12} parent=35 // pred_check_branch
        %674 = sbr.rel (%p672) target = $region48
      $region47: #{vae_forward.12} parent=35 // pred_region
        _
      $region48: #{vae_forward.12} parent=35 // pred_fallthru
        _
      // Predicated region
      $region49: #{vae_forward.12} parent=35 // pred_check
        %p675 = pneg %p158
      $region50: #{vae_forward.12} parent=35 // pred_check_branch
        %677 = sbr.rel (%p675) target = $region52
      $region51: #{vae_forward.12} parent=35 // pred_region
        %p678 = scmp.lt.s32.totalorder %s21, 0
        %s679 = scalar_select %p678, %s21, 0
        %p680 = scmp.lt.s32.totalorder %s22, 0
        %s681 = scalar_select %p680, %s22, 0
        %s682 = sadd.s32 %s681, %s679
        %s683 = smul.addr %s682, 8
        %s684 = scalar_lea.vmem %s4, %s683
      $region52: #{vae_forward.12} parent=35 // pred_fallthru
        _
    $region36: #{vae_forward.12} parent=5 // pred_fallthru
      _
    %p685 = scmp.le.s32.totalorder 2, %s11
    // Predicated region
    $region53: #{vae_forward.12} parent=5 // pred_check
      %p686 = pneg %p685
    $region54: #{vae_forward.12} parent=5 // pred_check_branch
      %688 = sbr.rel (%p686) target = $region56
    $region55: #{vae_forward.12} parent=5 // pred_region
      %s689 = ssub.s32 %s11, 2
    $region56: #{vae_forward.12} parent=5 // pred_fallthru
      _
  $region6: #{vae_forward.12} parent=0 // loop_footer
    %s15 = sadd.s32 1, %s11
  $region7: #{vae_forward.12} parent=0 // loop_footer_branch
    %10 = sbr.rel target = $region3
  $region8: #{vae_forward.12} parent=0 // loop_exit
    _

// kernel: vae_forward.11
$region0: #{vae_forward.11}
  #allocation0 [shape = 'u32[]', space=smem, size = 0x4, offset = 0x4, fixed_abs, tag = 'smem constant byte address 0x4 - core index']
  #allocation1 [shape = 'u32[144,128]{1,0:T(1,128)}', space=vmem, size = 0x12000, scoped, tag = 'internal scratch']
  #allocation2 [shape = 'f32[8,512]{1,0:T(8,128)}', space=vmem, size = 0x4000, scoped, tag = 'scratch operand']
  #allocation3 [shape = 'f32[1]{0:T(128)S(6)}', space=smem, size = 0x200, scoped, tag = 'scoped memory for vae_forward.11']
  %s0 = inlined_call_operand.<no memory space> [shape: f32[1], index: 0, kind: input, shape index: {}]
  %s1 = inlined_call_operand.vmem [shape: bf16[8,1536], index: 1, kind: input, shape index: {}]
  %s2 = inlined_call_operand.vmem [shape: bf16[1536,1536], index: 2, kind: input, shape index: {}]
  %s3 = inlined_call_operand.vmem [shape: f32[1,1536], index: 3, kind: input, shape index: {}]
  %s4 = inlined_call_operand.vmem [shape: f32[8,1536], index: 4, kind: output, shape index: {}]
  %s5 = sld [smem:[#allocation0]]
  $region80: #{vae_forward.11} parent=0
    _
  %s7 = ssub.s32 1, %s5
  %s8 = scalar_select 0, %s7, %s5
  %9 = sst [smem:[#allocation3]] %s0
  $region1: #{vae_forward.11} parent=0
    #allocation4 [shape = 'u8[1048576]{0}', space=vmem, size = 0x100000, scoped, tag = 'input window, operand 2']
    loop: start=0, step=1, limit=11
    $region2: #{vae_forward.11} parent=1 // loop_pre_header
      _
    $region3: #{vae_forward.11} parent=1 // loop_header
      %s11 = sphi 0, %s15
      %p12 = scmp.ge.s32.totalorder %s11, 11
      %s18 = sphi 0, %s37
      %s19 = sphi 0, %s33
      %s20 = sphi 0, %s29
      %s21 = sphi 0, %s18
      %s22 = sphi 0, %s19
      %s23 = sphi 0, %s20
      %s24 = sphi 0, %s21
      %s25 = sphi 0, %s22
      %s26 = sphi 0, %s23
      %s38 = sphi 0, %s38
      %s40 = sphi 0, %s38
      %s41 = sphi 0, %s40
      %s55 = sphi 0, %s41
      %s63 = sphi 0, %s65
      %s66 = sphi 0, %s63
      %s67 = sphi 0, %s66
      %s83 = sphi 0, %s67
      %s91 = sphi 0, %s93
      %s94 = sphi 0, %s91
      %s95 = sphi 0, %s94
      %s111 = sphi 0, %s95
      %s117 = sphi 0, %s119
      %s120 = sphi 0, %s117
      %s121 = sphi 0, %s120
      %s137 = sphi 0, %s121
      %s145 = sphi 0, %s147
      %s148 = sphi 0, %s145
      %s149 = sphi 0, %s148
      %s165 = sphi 0, %s149
    $region4: #{vae_forward.11} parent=1 // loop_header_branch
      %14 = sbr.rel (%p12) target = $region8
    $region5: #{vae_forward.11} parent=1 // loop_body
      %s16 = ssub.s32 %s11, 1
      %s17 = ssub.s32 %s11, 2
      %s27 = sadd.s32 1, %s20
      %p28 = scmp.ge.s32.totalorder %s27, 3
      %s29 = scalar_select %p28, 0, %s27
      %s30 = sadd.s32 1, %s19
      %s31 = scalar_select %p28, %s30, %s19
      %p32 = scmp.ge.s32.totalorder %s31, 3
      %s33 = scalar_select %p32, 0, %s31
      %s34 = sadd.s32 1, %s18
      %s35 = scalar_select %p32, %s34, %s18
      %p36 = scmp.ge.s32.totalorder %s35, 1
      %s37 = scalar_select %p36, 0, %s35
      %s39 = sadd.s32 %s38, 1
      %p42 = scmp.eq.s32.totalorder %s11, 8
      %p43 = scmp.ne.s32.totalorder %s38, %s40
      %p44 = scmp.eq.s32.totalorder %s11, 0
      %p45 = por %p43, %p44
      %p46 = scmp.ne.s32.totalorder %s38, %s40
      %p47 = scmp.eq.s32.totalorder %s16, 8
      %p48 = por %p46, %p47
      %p49 = scmp.ne.s32.totalorder %s40, %s41
      %p50 = scmp.eq.s32.totalorder %s16, 0
      %p51 = por %p49, %p50
      %p52 = scmp.ne.s32.totalorder %s40, %s41
      %p53 = scmp.eq.s32.totalorder %s17, 8
      %p54 = por %p52, %p53
      %p56 = scmp.ne.s32.totalorder %s41, %s55
      %p57 = scmp.eq.s32.totalorder %s17, 0
      %p58 = por %p56, %p57
      %s59 = ssub.s32 %s18, %s37
      %s60 = ssub.s32 %s20, %s29
      %s61 = sor.u32 %s59, %s60
      %p62 = scmp.eq.s32.totalorder %s61, 0
      %s64 = sadd.s32 %s63, 1
      %s65 = scalar_select %p62, %s63, %s64
      %p68 = pneg %p62
      %p69 = scmp.eq.s32.totalorder %s11, 8
      %p70 = por %p68, %p69
      %p71 = scmp.ne.s32.totalorder %s63, %s66
      %p72 = scmp.eq.s32.totalorder %s11, 0
      %p73 = por %p71, %p72
      %p74 = scmp.ne.s32.totalorder %s63, %s66
      %p75 = scmp.eq.s32.totalorder %s16, 8
      %p76 = por %p74, %p75
      %p77 = scmp.ne.s32.totalorder %s66, %s67
      %p78 = scmp.eq.s32.totalorder %s16, 0
      %p79 = por %p77, %p78
      %p80 = scmp.ne.s32.totalorder %s66, %s67
      %p81 = scmp.eq.s32.totalorder %s17, 8
      %p82 = por %p80, %p81
      %p84 = scmp.ne.s32.totalorder %s67, %s83
      %p85 = scmp.eq.s32.totalorder %s17, 0
      %p86 = por %p84, %p85
      %s87 = ssub.s32 %s20, %s29
      %s88 = ssub.s32 %s19, %s33
      %s89 = sor.u32 %s87, %s88
      %p90 = scmp.eq.s32.totalorder %s89, 0
      %s92 = sadd.s32 %s91, 1
      %s93 = scalar_select %p90, %s91, %s92
      %p96 = pneg %p90
      %p97 = scmp.eq.s32.totalorder %s11, 8
      %p98 = por %p96, %p97
      %p99 = scmp.ne.s32.totalorder %s91, %s94
      %p100 = scmp.eq.s32.totalorder %s11, 0
      %p101 = por %p99, %p100
      %p102 = scmp.ne.s32.totalorder %s91, %s94
      %p103 = scmp.eq.s32.totalorder %s16, 8
      %p104 = por %p102, %p103
      %p105 = scmp.ne.s32.totalorder %s94, %s95
      %p106 = scmp.eq.s32.totalorder %s16, 0
      %p107 = por %p105, %p106
      %p108 = scmp.ne.s32.totalorder %s94, %s95
      %p109 = scmp.eq.s32.totalorder %s17, 8
      %p110 = por %p108, %p109
      %p112 = scmp.ne.s32.totalorder %s95, %s111
      %p113 = scmp.eq.s32.totalorder %s17, 0
      %p114 = por %p112, %p113
      %s115 = ssub.s32 %s19, %s33
      %p116 = scmp.eq.s32.totalorder %s115, 0
      %s118 = sadd.s32 %s117, 1
      %s119 = scalar_select %p116, %s117, %s118
      %p122 = pneg %p116
      %p123 = scmp.eq.s32.totalorder %s11, 8
      %p124 = por %p122, %p123
      %p125 = scmp.ne.s32.totalorder %s117, %s120
      %p126 = scmp.eq.s32.totalorder %s11, 0
      %p127 = por %p125, %p126
      %p128 = scmp.ne.s32.totalorder %s117, %s120
      %p129 = scmp.eq.s32.totalorder %s16, 8
      %p130 = por %p128, %p129
      %p131 = scmp.ne.s32.totalorder %s120, %s121
      %p132 = scmp.eq.s32.totalorder %s16, 0
      %p133 = por %p131, %p132
      %p134 = scmp.ne.s32.totalorder %s120, %s121
      %p135 = scmp.eq.s32.totalorder %s17, 8
      %p136 = por %p134, %p135
      %p138 = scmp.ne.s32.totalorder %s121, %s137
      %p139 = scmp.eq.s32.totalorder %s17, 0
      %p140 = por %p138, %p139
      %s141 = ssub.s32 %s18, %s37
      %s142 = ssub.s32 %s19, %s33
      %s143 = sor.u32 %s141, %s142
      %p144 = scmp.eq.s32.totalorder %s143, 0
      %s146 = sadd.s32 %s145, 1
      %s147 = scalar_select %p144, %s145, %s146
      %p150 = pneg %p144
      %p151 = scmp.eq.s32.totalorder %s11, 8
      %p152 = por %p150, %p151
      %p153 = scmp.ne.s32.totalorder %s145, %s148
      %p154 = scmp.eq.s32.totalorder %s11, 0
      %p155 = por %p153, %p154
      %p156 = scmp.ne.s32.totalorder %s145, %s148
      %p157 = scmp.eq.s32.totalorder %s16, 8
      %p158 = por %p156, %p157
      %p159 = scmp.ne.s32.totalorder %s148, %s149
      %p160 = scmp.eq.s32.totalorder %s16, 0
      %p161 = por %p159, %p160
      %p162 = scmp.ne.s32.totalorder %s148, %s149
      %p163 = scmp.eq.s32.totalorder %s17, 8
      %p164 = por %p162, %p163
      %p166 = scmp.ne.s32.totalorder %s149, %s165
      %p167 = scmp.eq.s32.totalorder %s17, 0
      %p168 = por %p166, %p167
      %p169 = scmp.le.s32.totalorder 1, %s11
      %p170 = scmp.lt.s32.totalorder %s11, 10
      %p171 = pnand %p169, %p170
      %p172 = pneg %p171
      // Predicated region
      $region9: #{vae_forward.11} parent=5 // pred_check
        _
      $region10: #{vae_forward.11} parent=5 // pred_check_branch
        %174 = sbr.rel (%p171) target = $region12
      $region11: #{vae_forward.11} parent=5 // pred_region
        %s175 = ssub.s32 %s11, 1
        // Predicated region
        $region13: #{vae_forward.11} parent=11 // pred_check
          %p176 = pneg %p51
        $region14: #{vae_forward.11} parent=11 // pred_check_branch
          %178 = sbr.rel (%p176) target = $region16
        $region15: #{vae_forward.11} parent=11 // pred_region
          _
        $region16: #{vae_forward.11} parent=11 // pred_fallthru
          _
      $region12: #{vae_forward.11} parent=5 // pred_fallthru
        _
      %p179 = scmp.lt.s32.totalorder %s11, 9
      // Predicated region
      $region17: #{vae_forward.11} parent=5 // pred_check
        %p180 = pneg %p179
      $region18: #{vae_forward.11} parent=5 // pred_check_branch
        %182 = sbr.rel (%p180) target = $region20
      $region19: #{vae_forward.11} parent=5 // pred_region
        // Predicated region
        $region21: #{vae_forward.11} parent=19 // pred_check
          %p183 = pneg %p73
        $region22: #{vae_forward.11} parent=19 // pred_check_branch
          %185 = sbr.rel (%p183) target = $region24
        $region23: #{vae_forward.11} parent=19 // pred_region
          %s186 = smul.u32 4, %s20
          %p187 = scmp.lt.s32.totalorder %s18, 0
          %s188 = scalar_select %p187, %s18, 0
          %p189 = scmp.lt.s32.totalorder %s186, 11
          %s190 = scalar_select %p189, %s186, 11
          %s191 = smul.addr %s188, 12
          %s192 = sadd.s32 %s190, %s191
          %s193 = smul.addr %s192, 4
          %s194 = scalar_lea.vmem %s1, %s193
          %s195 = smul.u32 4, %s20
        $region24: #{vae_forward.11} parent=19 // pred_fallthru
          _
        // Predicated region
        $region25: #{vae_forward.11} parent=19 // pred_check
          %p196 = pneg %p101
        $region26: #{vae_forward.11} parent=19 // pred_check_branch
          %198 = sbr.rel (%p196) target = $region28
        $region27: #{vae_forward.11} parent=19 // pred_region
          %s199 = sand.u32 %s91, 1
          %s200 = sand.u32 %s91, 1
          %s201 = smul.addr %s200, 1024
          %s202 = scalar_lea.vmem [#allocation4], %s201
          %s203 = smul.u32 64, %s20
          %s204 = smul.u32 4, %s19
          %s205 = smul.addr %s203, 12
          %s206 = sadd.s32 %s204, %s205
          %s207 = smul.addr %s206, 4
          %s208 = scalar_lea.vmem %s2, %s207
          // Predicated region
          $region29: #{vae_forward.11} parent=27 // pred_check
            _
          $region30: #{vae_forward.11} parent=27 // pred_check_branch
            %210 = sbr.rel (0) target = $region32
          $region31: #{vae_forward.11} parent=27 // pred_region
            // Predicated region
            $region33: #{vae_forward.11} parent=31 // pred_check
              _
            $region34: #{vae_forward.11} parent=31 // pred_check_branch
              %212 = sbr.rel (0) target = $region36
            $region35: #{vae_forward.11} parent=31 // pred_region
              loop: start=0, step=1, limit=1
              $region37: #{vae_forward.11} parent=35 // loop_pre_header
                _
              $region38: #{vae_forward.11} parent=35 // loop_header
                %s214 = sphi 0, %s218
                %p215 = scmp.ge.s32.totalorder %s214, 1
                %s219 = sphi %s208, %s208
                %s220 = sphi %s202, %s202
              $region39: #{vae_forward.11} parent=35 // loop_header_branch
                %217 = sbr.rel (%p215) target = $region43
              $region40: #{vae_forward.11} parent=35 // loop_body
                %v221 = vld [vmem:[%s219] sm:$0xff]
                %222 = vst [vmem:[%s220] sm:$0xff] %v221
                %v223 = vld [vmem:[%s219 + $0x8] sm:$0xff]
                %224 = vst [vmem:[%s220 + $0x8] sm:$0xff] %v223
                %v225 = vld [vmem:[%s219 + $0x30] sm:$0xff]
                %226 = vst [vmem:[%s220 + $0x10] sm:$0xff] %v225
                %v227 = vld [vmem:[%s219 + $0x38] sm:$0xff]
                %228 = vst [vmem:[%s220 + $0x18] sm:$0xff] %v227
                %v229 = vld [vmem:[%s219 + $0x60] sm:$0xff]
                %230 = vst [vmem:[%s220 + $0x20] sm:$0xff] %v229
                %v231 = vld [vmem:[%s219 + $0x68] sm:$0xff]
                %232 = vst [vmem:[%s220 + $0x28] sm:$0xff] %v231
                %v233 = vld [vmem:[%s219 + $0x90] sm:$0xff]
                %234 = vst [vmem:[%s220 + $0x30] sm:$0xff] %v233
                %v235 = vld [vmem:[%s219 + $0x98] sm:$0xff]
                %236 = vst [vmem:[%s220 + $0x38] sm:$0xff] %v235
                %v237 = vld [vmem:[%s219 + $0xc0] sm:$0xff]
                %238 = vst [vmem:[%s220 + $0x40] sm:$0xff] %v237
                %v239 = vld [vmem:[%s219 + $0xc8] sm:$0xff]
                %240 = vst [vmem:[%s220 + $0x48] sm:$0xff] %v239
                %v241 = vld [vmem:[%s219 + $0xf0] sm:$0xff]
                %242 = vst [vmem:[%s220 + $0x50] sm:$0xff] %v241
                %v243 = vld [vmem:[%s219 + $0xf8] sm:$0xff]
                %244 = vst [vmem:[%s220 + $0x58] sm:$0xff] %v243
                %v245 = vld [vmem:[%s219 + $0x120] sm:$0xff]
                %246 = vst [vmem:[%s220 + $0x60] sm:$0xff] %v245
                %v247 = vld [vmem:[%s219 + $0x128] sm:$0xff]
                %248 = vst [vmem:[%s220 + $0x68] sm:$0xff] %v247
                %v249 = vld [vmem:[%s219 + $0x150] sm:$0xff]
                %250 = vst [vmem:[%s220 + $0x70] sm:$0xff] %v249
                %v251 = vld [vmem:[%s219 + $0x158] sm:$0xff]
                %252 = vst [vmem:[%s220 + $0x78] sm:$0xff] %v251
                %v253 = vld [vmem:[%s219 + $0x180] sm:$0xff]
                %254 = vst [vmem:[%s220 + $0x80] sm:$0xff] %v253
                %v255 = vld [vmem:[%s219 + $0x188] sm:$0xff]
                %256 = vst [vmem:[%s220 + $0x88] sm:$0xff] %v255
                %v257 = vld [vmem:[%s219 + $0x1b0] sm:$0xff]
                %258 = vst [vmem:[%s220 + $0x90] sm:$0xff] %v257
                %v259 = vld [vmem:[%s219 + $0x1b8] sm:$0xff]
                %260 = vst [vmem:[%s220 + $0x98] sm:$0xff] %v259
                %v261 = vld [vmem:[%s219 + $0x1e0] sm:$0xff]
                %262 = vst [vmem:[%s220 + $0xa0] sm:$0xff] %v261
                %v263 = vld [vmem:[%s219 + $0x1e8] sm:$0xff]
                %264 = vst [vmem:[%s220 + $0xa8] sm:$0xff] %v263
                %v265 = vld [vmem:[%s219 + $0x210] sm:$0xff]
                %266 = vst [vmem:[%s220 + $0xb0] sm:$0xff] %v265
                %v267 = vld [vmem:[%s219 + $0x218] sm:$0xff]
                %268 = vst [vmem:[%s220 + $0xb8] sm:$0xff] %v267
                %v269 = vld [vmem:[%s219 + $0x240] sm:$0xff]
                %270 = vst [vmem:[%s220 + $0xc0] sm:$0xff] %v269
                %v271 = vld [vmem:[%s219 + $0x248] sm:$0xff]
                %272 = vst [vmem:[%s220 + $0xc8] sm:$0xff] %v271
                %v273 = vld [vmem:[%s219 + $0x270] sm:$0xff]
                %274 = vst [vmem:[%s220 + $0xd0] sm:$0xff] %v273
                %v275 = vld [vmem:[%s219 + $0x278] sm:$0xff]
                %276 = vst [vmem:[%s220 + $0xd8] sm:$0xff] %v275
                %v277 = vld [vmem:[%s219 + $0x2a0] sm:$0xff]
                %278 = vst [vmem:[%s220 + $0xe0] sm:$0xff] %v277
                %v279 = vld [vmem:[%s219 + $0x2a8] sm:$0xff]
                %280 = vst [vmem:[%s220 + $0xe8] sm:$0xff] %v279
                %v281 = vld [vmem:[%s219 + $0x2d0] sm:$0xff]
                %282 = vst [vmem:[%s220 + $0xf0] sm:$0xff] %v281
                %v283 = vld [vmem:[%s219 + $0x2d8] sm:$0xff]
                %284 = vst [vmem:[%s220 + $0xf8] sm:$0xff] %v283
                %v285 = vld [vmem:[%s219 + $0x300] sm:$0xff]
                %286 = vst [vmem:[%s220 + $0x100] sm:$0xff] %v285
                %v287 = vld [vmem:[%s219 + $0x308] sm:$0xff]
                %288 = vst [vmem:[%s220 + $0x108] sm:$0xff] %v287
                %v289 = vld [vmem:[%s219 + $0x330] sm:$0xff]
                %290 = vst [vmem:[%s220 + $0x110] sm:$0xff] %v289
                %v291 = vld [vmem:[%s219 + $0x338] sm:$0xff]
                %292 = vst [vmem:[%s220 + $0x118] sm:$0xff] %v291
                %v293 = vld [vmem:[%s219 + $0x360] sm:$0xff]
                %294 = vst [vmem:[%s220 + $0x120] sm:$0xff] %v293
                %v295 = vld [vmem:[%s219 + $0x368] sm:$0xff]
                %296 = vst [vmem:[%s220 + $0x128] sm:$0xff] %v295
                %v297 = vld [vmem:[%s219 + $0x390] sm:$0xff]
                %298 = vst [vmem:[%s220 + $0x130] sm:$0xff] %v297
                %v299 = vld [vmem:[%s219 + $0x398] sm:$0xff]
                %300 = vst [vmem:[%s220 + $0x138] sm:$0xff] %v299
                %v301 = vld [vmem:[%s219 + $0x3c0] sm:$0xff]
                %302 = vst [vmem:[%s220 + $0x140] sm:$0xff] %v301
                %v303 = vld [vmem:[%s219 + $0x3c8] sm:$0xff]
                %304 = vst [vmem:[%s220 + $0x148] sm:$0xff] %v303
                %v305 = vld [vmem:[%s219 + $0x3f0] sm:$0xff]
                %306 = vst [vmem:[%s220 + $0x150] sm:$0xff] %v305
                %v307 = vld [vmem:[%s219 + $0x3f8] sm:$0xff]
                %308 = vst [vmem:[%s220 + $0x158] sm:$0xff] %v307
                %v309 = vld [vmem:[%s219 + $0x420] sm:$0xff]
                %310 = vst [vmem:[%s220 + $0x160] sm:$0xff] %v309
                %v311 = vld [vmem:[%s219 + $0x428] sm:$0xff]
                %312 = vst [vmem:[%s220 + $0x168] sm:$0xff] %v311
                %v313 = vld [vmem:[%s219 + $0x450] sm:$0xff]
                %314 = vst [vmem:[%s220 + $0x170] sm:$0xff] %v313
                %v315 = vld [vmem:[%s219 + $0x458] sm:$0xff]
                %316 = vst [vmem:[%s220 + $0x178] sm:$0xff] %v315
                %v317 = vld [vmem:[%s219 + $0x480] sm:$0xff]
                %318 = vst [vmem:[%s220 + $0x180] sm:$0xff] %v317
                %v319 = vld [vmem:[%s219 + $0x488] sm:$0xff]
                %320 = vst [vmem:[%s220 + $0x188] sm:$0xff] %v319
                %v321 = vld [vmem:[%s219 + $0x4b0] sm:$0xff]
                %322 = vst [vmem:[%s220 + $0x190] sm:$0xff] %v321
                %v323 = vld [vmem:[%s219 + $0x4b8] sm:$0xff]
                %324 = vst [vmem:[%s220 + $0x198] sm:$0xff] %v323
                %v325 = vld [vmem:[%s219 + $0x4e0] sm:$0xff]
                %326 = vst [vmem:[%s220 + $0x1a0] sm:$0xff] %v325
                %v327 = vld [vmem:[%s219 + $0x4e8] sm:$0xff]
                %328 = vst [vmem:[%s220 + $0x1a8] sm:$0xff] %v327
                %v329 = vld [vmem:[%s219 + $0x510] sm:$0xff]
                %330 = vst [vmem:[%s220 + $0x1b0] sm:$0xff] %v329
                %v331 = vld [vmem:[%s219 + $0x518] sm:$0xff]
                %332 = vst [vmem:[%s220 + $0x1b8] sm:$0xff] %v331
                %v333 = vld [vmem:[%s219 + $0x540] sm:$0xff]
                %334 = vst [vmem:[%s220 + $0x1c0] sm:$0xff] %v333
                %v335 = vld [vmem:[%s219 + $0x548] sm:$0xff]
                %336 = vst [vmem:[%s220 + $0x1c8] sm:$0xff] %v335
                %v337 = vld [vmem:[%s219 + $0x570] sm:$0xff]
                %338 = vst [vmem:[%s220 + $0x1d0] sm:$0xff] %v337
                %v339 = vld [vmem:[%s219 + $0x578] sm:$0xff]
                %340 = vst [vmem:[%s220 + $0x1d8] sm:$0xff] %v339
                %v341 = vld [vmem:[%s219 + $0x5a0] sm:$0xff]
                %342 = vst [vmem:[%s220 + $0x1e0] sm:$0xff] %v341
                %v343 = vld [vmem:[%s219 + $0x5a8] sm:$0xff]
                %344 = vst [vmem:[%s220 + $0x1e8] sm:$0xff] %v343
                %v345 = vld [vmem:[%s219 + $0x5d0] sm:$0xff]
                %346 = vst [vmem:[%s220 + $0x1f0] sm:$0xff] %v345
                %v347 = vld [vmem:[%s219 + $0x5d8] sm:$0xff]
                %348 = vst [vmem:[%s220 + $0x1f8] sm:$0xff] %v347
                %v349 = vld [vmem:[%s219 + $0x600] sm:$0xff]
                %350 = vst [vmem:[%s220 + $0x200] sm:$0xff] %v349
                %v351 = vld [vmem:[%s219 + $0x608] sm:$0xff]
                %352 = vst [vmem:[%s220 + $0x208] sm:$0xff] %v351
                %v353 = vld [vmem:[%s219 + $0x630] sm:$0xff]
                %354 = vst [vmem:[%s220 + $0x210] sm:$0xff] %v353
                %v355 = vld [vmem:[%s219 + $0x638] sm:$0xff]
                %356 = vst [vmem:[%s220 + $0x218] sm:$0xff] %v355
                %v357 = vld [vmem:[%s219 + $0x660] sm:$0xff]
                %358 = vst [vmem:[%s220 + $0x220] sm:$0xff] %v357
                %v359 = vld [vmem:[%s219 + $0x668] sm:$0xff]
                %360 = vst [vmem:[%s220 + $0x228] sm:$0xff] %v359
                %v361 = vld [vmem:[%s219 + $0x690] sm:$0xff]
                %362 = vst [vmem:[%s220 + $0x230] sm:$0xff] %v361
                %v363 = vld [vmem:[%s219 + $0x698] sm:$0xff]
                %364 = vst [vmem:[%s220 + $0x238] sm:$0xff] %v363
                %v365 = vld [vmem:[%s219 + $0x6c0] sm:$0xff]
                %366 = vst [vmem:[%s220 + $0x240] sm:$0xff] %v365
                %v367 = vld [vmem:[%s219 + $0x6c8] sm:$0xff]
                %368 = vst [vmem:[%s220 + $0x248] sm:$0xff] %v367
                %v369 = vld [vmem:[%s219 + $0x6f0] sm:$0xff]
                %370 = vst [vmem:[%s220 + $0x250] sm:$0xff] %v369
                %v371 = vld [vmem:[%s219 + $0x6f8] sm:$0xff]
                %372 = vst [vmem:[%s220 + $0x258] sm:$0xff] %v371
                %v373 = vld [vmem:[%s219 + $0x720] sm:$0xff]
                %374 = vst [vmem:[%s220 + $0x260] sm:$0xff] %v373
                %v375 = vld [vmem:[%s219 + $0x728] sm:$0xff]
                %376 = vst [vmem:[%s220 + $0x268] sm:$0xff] %v375
                %v377 = vld [vmem:[%s219 + $0x750] sm:$0xff]
                %378 = vst [vmem:[%s220 + $0x270] sm:$0xff] %v377
                %v379 = vld [vmem:[%s219 + $0x758] sm:$0xff]
                %380 = vst [vmem:[%s220 + $0x278] sm:$0xff] %v379
                %v381 = vld [vmem:[%s219 + $0x780] sm:$0xff]
                %382 = vst [vmem:[%s220 + $0x280] sm:$0xff] %v381
                %v383 = vld [vmem:[%s219 + $0x788] sm:$0xff]
                %384 = vst [vmem:[%s220 + $0x288] sm:$0xff] %v383
                %v385 = vld [vmem:[%s219 + $0x7b0] sm:$0xff]
                %386 = vst [vmem:[%s220 + $0x290] sm:$0xff] %v385
                %v387 = vld [vmem:[%s219 + $0x7b8] sm:$0xff]
                %388 = vst [vmem:[%s220 + $0x298] sm:$0xff] %v387
                %v389 = vld [vmem:[%s219 + $0x7e0] sm:$0xff]
                %390 = vst [vmem:[%s220 + $0x2a0] sm:$0xff] %v389
                %v391 = vld [vmem:[%s219 + $0x7e8] sm:$0xff]
                %392 = vst [vmem:[%s220 + $0x2a8] sm:$0xff] %v391
                %v393 = vld [vmem:[%s219 + $0x810] sm:$0xff]
                %394 = vst [vmem:[%s220 + $0x2b0] sm:$0xff] %v393
                %v395 = vld [vmem:[%s219 + $0x818] sm:$0xff]
                %396 = vst [vmem:[%s220 + $0x2b8] sm:$0xff] %v395
                %v397 = vld [vmem:[%s219 + $0x840] sm:$0xff]
                %398 = vst [vmem:[%s220 + $0x2c0] sm:$0xff] %v397
                %v399 = vld [vmem:[%s219 + $0x848] sm:$0xff]
                %400 = vst [vmem:[%s220 + $0x2c8] sm:$0xff] %v399
                %v401 = vld [vmem:[%s219 + $0x870] sm:$0xff]
                %402 = vst [vmem:[%s220 + $0x2d0] sm:$0xff] %v401
                %v403 = vld [vmem:[%s219 + $0x878] sm:$0xff]
                %404 = vst [vmem:[%s220 + $0x2d8] sm:$0xff] %v403
                %v405 = vld [vmem:[%s219 + $0x8a0] sm:$0xff]
                %406 = vst [vmem:[%s220 + $0x2e0] sm:$0xff] %v405
                %v407 = vld [vmem:[%s219 + $0x8a8] sm:$0xff]
                %408 = vst [vmem:[%s220 + $0x2e8] sm:$0xff] %v407
                %v409 = vld [vmem:[%s219 + $0x8d0] sm:$0xff]
                %410 = vst [vmem:[%s220 + $0x2f0] sm:$0xff] %v409
                %v411 = vld [vmem:[%s219 + $0x8d8] sm:$0xff]
                %412 = vst [vmem:[%s220 + $0x2f8] sm:$0xff] %v411
                %v413 = vld [vmem:[%s219 + $0x900] sm:$0xff]
                %414 = vst [vmem:[%s220 + $0x300] sm:$0xff] %v413
                %v415 = vld [vmem:[%s219 + $0x908] sm:$0xff]
                %416 = vst [vmem:[%s220 + $0x308] sm:$0xff] %v415
                %v417 = vld [vmem:[%s219 + $0x930] sm:$0xff]
                %418 = vst [vmem:[%s220 + $0x310] sm:$0xff] %v417
                %v419 = vld [vmem:[%s219 + $0x938] sm:$0xff]
                %420 = vst [vmem:[%s220 + $0x318] sm:$0xff] %v419
                %v421 = vld [vmem:[%s219 + $0x960] sm:$0xff]
                %422 = vst [vmem:[%s220 + $0x320] sm:$0xff] %v421
                %v423 = vld [vmem:[%s219 + $0x968] sm:$0xff]
                %424 = vst [vmem:[%s220 + $0x328] sm:$0xff] %v423
                %v425 = vld [vmem:[%s219 + $0x990] sm:$0xff]
                %426 = vst [vmem:[%s220 + $0x330] sm:$0xff] %v425
                %v427 = vld [vmem:[%s219 + $0x998] sm:$0xff]
                %428 = vst [vmem:[%s220 + $0x338] sm:$0xff] %v427
                %v429 = vld [vmem:[%s219 + $0x9c0] sm:$0xff]
                %430 = vst [vmem:[%s220 + $0x340] sm:$0xff] %v429
                %v431 = vld [vmem:[%s219 + $0x9c8] sm:$0xff]
                %432 = vst [vmem:[%s220 + $0x348] sm:$0xff] %v431
                %v433 = vld [vmem:[%s219 + $0x9f0] sm:$0xff]
                %434 = vst [vmem:[%s220 + $0x350] sm:$0xff] %v433
                %v435 = vld [vmem:[%s219 + $0x9f8] sm:$0xff]
                %436 = vst [vmem:[%s220 + $0x358] sm:$0xff] %v435
                %v437 = vld [vmem:[%s219 + $0xa20] sm:$0xff]
                %438 = vst [vmem:[%s220 + $0x360] sm:$0xff] %v437
                %v439 = vld [vmem:[%s219 + $0xa28] sm:$0xff]
                %440 = vst [vmem:[%s220 + $0x368] sm:$0xff] %v439
                %v441 = vld [vmem:[%s219 + $0xa50] sm:$0xff]
                %442 = vst [vmem:[%s220 + $0x370] sm:$0xff] %v441
                %v443 = vld [vmem:[%s219 + $0xa58] sm:$0xff]
                %444 = vst [vmem:[%s220 + $0x378] sm:$0xff] %v443
                %v445 = vld [vmem:[%s219 + $0xa80] sm:$0xff]
                %446 = vst [vmem:[%s220 + $0x380] sm:$0xff] %v445
                %v447 = vld [vmem:[%s219 + $0xa88] sm:$0xff]
                %448 = vst [vmem:[%s220 + $0x388] sm:$0xff] %v447
                %v449 = vld [vmem:[%s219 + $0xab0] sm:$0xff]
                %450 = vst [vmem:[%s220 + $0x390] sm:$0xff] %v449
                %v451 = vld [vmem:[%s219 + $0xab8] sm:$0xff]
                %452 = vst [vmem:[%s220 + $0x398] sm:$0xff] %v451
                %v453 = vld [vmem:[%s219 + $0xae0] sm:$0xff]
                %454 = vst [vmem:[%s220 + $0x3a0] sm:$0xff] %v453
                %v455 = vld [vmem:[%s219 + $0xae8] sm:$0xff]
                %456 = vst [vmem:[%s220 + $0x3a8] sm:$0xff] %v455
                %v457 = vld [vmem:[%s219 + $0xb10] sm:$0xff]
                %458 = vst [vmem:[%s220 + $0x3b0] sm:$0xff] %v457
                %v459 = vld [vmem:[%s219 + $0xb18] sm:$0xff]
                %460 = vst [vmem:[%s220 + $0x3b8] sm:$0xff] %v459
                %v461 = vld [vmem:[%s219 + $0xb40] sm:$0xff]
                %462 = vst [vmem:[%s220 + $0x3c0] sm:$0xff] %v461
                %v463 = vld [vmem:[%s219 + $0xb48] sm:$0xff]
                %464 = vst [vmem:[%s220 + $0x3c8] sm:$0xff] %v463
                %v465 = vld [vmem:[%s219 + $0xb70] sm:$0xff]
                %466 = vst [vmem:[%s220 + $0x3d0] sm:$0xff] %v465
                %v467 = vld [vmem:[%s219 + $0xb78] sm:$0xff]
                %468 = vst [vmem:[%s220 + $0x3d8] sm:$0xff] %v467
                %v469 = vld [vmem:[%s219 + $0xba0] sm:$0xff]
                %470 = vst [vmem:[%s220 + $0x3e0] sm:$0xff] %v469
                %v471 = vld [vmem:[%s219 + $0xba8] sm:$0xff]
                %472 = vst [vmem:[%s220 + $0x3e8] sm:$0xff] %v471
                %v473 = vld [vmem:[%s219 + $0xbd0] sm:$0xff]
                %474 = vst [vmem:[%s220 + $0x3f0] sm:$0xff] %v473
                %v475 = vld [vmem:[%s219 + $0xbd8] sm:$0xff]
                %476 = vst [vmem:[%s220 + $0x3f8] sm:$0xff] %v475
              $region41: #{vae_forward.11} parent=35 // loop_footer
                %s218 = sadd.s32 1, %s214
              $region42: #{vae_forward.11} parent=35 // loop_footer_branch
                %213 = sbr.rel target = $region38
              $region43: #{vae_forward.11} parent=35 // loop_exit
                _
            $region36: #{vae_forward.11} parent=31 // pred_fallthru
              _
            // Predicated region
            $region44: #{vae_forward.11} parent=31 // pred_check
              _
            $region45: #{vae_forward.11} parent=31 // pred_check_branch
              %478 = sbr.rel target = $region47
            $region46: #{vae_forward.11} parent=31 // pred_region
              _
            $region47: #{vae_forward.11} parent=31 // pred_fallthru
              _
          $region32: #{vae_forward.11} parent=27 // pred_fallthru
            _
          %479 = vnop
        $region28: #{vae_forward.11} parent=19 // pred_fallthru
          _
        // Predicated region
        $region48: #{vae_forward.11} parent=19 // pred_check
          %p480 = pneg %p127
        $region49: #{vae_forward.11} parent=19 // pred_check_branch
          %482 = sbr.rel (%p480) target = $region51
        $region50: #{vae_forward.11} parent=19 // pred_region
          %s483 = smul.u32 4, %s19
          %p484 = scmp.lt.s32.totalorder %s483, 11
          %s485 = scalar_select %p484, %s483, 11
          %s486 = scalar_lea.vmem %s3, %s485
          %s487 = smul.u32 4, %s19
        $region51: #{vae_forward.11} parent=19 // pred_fallthru
          _
      $region20: #{vae_forward.11} parent=5 // pred_fallthru
        _
      %p488 = scmp.le.s32.totalorder 1, %s11
      %p489 = scmp.lt.s32.totalorder %s11, 10
      %p490 = pnand %p488, %p489
      %p491 = pneg %p490
      // Predicated region
      $region52: #{vae_forward.11} parent=5 // pred_check
        _
      $region53: #{vae_forward.11} parent=5 // pred_check_branch
        %493 = sbr.rel (%p490) target = $region55
      $region54: #{vae_forward.11} parent=5 // pred_region
        %s494 = ssub.s32 %s11, 1
        %s495 = sand.u32 %s94, 1
        %s496 = sand.u32 %s94, 1
        %s497 = smul.addr %s496, 1024
        %s498 = scalar_lea.vmem [#allocation4], %s497
        // Predicated region
        $region56: #{vae_forward.11} parent=54 // pred_check
          %p499 = pneg %p107
        $region57: #{vae_forward.11} parent=54 // pred_check_branch
          %501 = sbr.rel (%p499) target = $region59
        $region58: #{vae_forward.11} parent=54 // pred_region
          _
        $region59: #{vae_forward.11} parent=54 // pred_fallthru
          _
        %p502 = pneg %p51
        %p503 = pneg %p48
        %s504 = smul.u32 4, %s23
        %p505 = scmp.lt.s32.totalorder %s21, 0
        %s506 = scalar_select %p505, %s21, 0
        %p507 = scmp.lt.s32.totalorder %s504, 11
        %s508 = scalar_select %p507, %s504, 11
        %s509 = smul.addr %s506, 12
        %s510 = sadd.s32 %s508, %s509
        %s511 = smul.addr %s510, 4
        %s512 = scalar_lea.vmem %s1, %s511
        %p513 = pneg %p79
        %p514 = pneg %p76
        %s515 = sand.u32 %s94, 1
        %s516 = sand.u32 %s94, 1
        %s517 = smul.addr %s516, 1024
        %s518 = scalar_lea.vmem [#allocation4], %s517
        %p519 = pneg %p107
        %p520 = pneg %p104
        %s521 = smul.u32 4, %s22
        %p522 = scmp.lt.s32.totalorder %s521, 11
        %s523 = scalar_select %p522, %s521, 11
        %s524 = scalar_lea.vmem %s3, %s523
        %p525 = pneg %p133
        %p526 = pneg %p130
        %p527 = pneg %p161
        %p528 = pneg %p158
        %s529 = smul.u32 4, %s22
        %p530 = scmp.lt.s32.totalorder %s21, 0
        %s531 = scalar_select %p530, %s21, 0
        %p532 = scmp.lt.s32.totalorder %s529, 11
        %s533 = scalar_select %p532, %s529, 11
        %s534 = smul.addr %s531, 12
        %s535 = sadd.s32 %s533, %s534
        %s536 = smul.addr %s535, 8
        %s537 = scalar_lea.vmem %s4, %s536
        %s538 = smul.u32 4, %s23
        %p539 = scmp.lt.s32.totalorder %s21, 0
        %s540 = scalar_select %p539, %s21, 0
        %p541 = scmp.lt.s32.totalorder %s538, 11
        %s542 = scalar_select %p541, %s538, 11
        %s543 = smul.addr %s540, 12
        %s544 = sadd.s32 %s542, %s543
        %s545 = smul.addr %s544, 4
        %s546 = scalar_lea.vmem %s1, %s545
        %s547 = smul.u32 4, %s23
        %s548 = smul.u32 64, %s23
        %s549 = smul.u32 4, %s22
        %s550 = smul.u32 4, %s22
        %p551 = scmp.lt.s32.totalorder %s550, 11
        %s552 = scalar_select %p551, %s550, 11
        %s553 = scalar_lea.vmem %s3, %s552
        %s554 = smul.u32 4, %s22
        %s555 = smul.u32 4, %s22
        %p556 = scmp.lt.s32.totalorder %s21, 0
        %s557 = scalar_select %p556, %s21, 0
        %p558 = scmp.lt.s32.totalorder %s555, 11
        %s559 = scalar_select %p558, %s555, 11
        %s560 = smul.addr %s557, 12
        %s561 = sadd.s32 %s559, %s560
        %s562 = smul.addr %s561, 8
        %s563 = scalar_lea.vmem %s4, %s562
        %s564 = smul.u32 4, %s22
        %p565 = scmp.eq.s32.totalorder %s23, 0
        // Predicated region
        $region60: #{vae_forward.11} parent=54 // pred_check
          %p566 = pneg %p565
        $region61: #{vae_forward.11} parent=54 // pred_check_branch
          %568 = sbr.rel (%p566) target = $region63
        $region62: #{vae_forward.11} parent=54 // pred_region
          %569 = vst [vmem:[#allocation2] sm:$0xff] 0.0
          %570 = vst [vmem:[#allocation2 + $0x8] sm:$0xff] 0.0
          %571 = vst [vmem:[#allocation2 + $0x10] sm:$0xff] 0.0
          %572 = vst [vmem:[#allocation2 + $0x18] sm:$0xff] 0.0
        $region63: #{vae_forward.11} parent=54 // pred_fallthru
          _
        %v573 = vld [vmem:[#allocation2] sm:$0xff]
        %v574 = vld [vmem:[#allocation2 + $0x8] sm:$0xff]
        %v575 = vld [vmem:[#allocation2 + $0x10] sm:$0xff]
        %v576 = vld [vmem:[#allocation2 + $0x18] sm:$0xff]
        %v577 = vld [vmem:[%s546] sm:$0xff]
        %v578 = vld [vmem:[%s546 + $0x8] sm:$0xff]
        %v579 = vld [vmem:[%s498] sm:$0xff]
        %v580 = vld [vmem:[%s498 + $0x8] sm:$0xff]
        %v581 = vld [vmem:[%s498 + $0x10] sm:$0xff]
        %v582 = vld [vmem:[%s498 + $0x18] sm:$0xff]
        %v583 = vld [vmem:[%s498 + $0x20] sm:$0xff]
        %v584 = vld [vmem:[%s498 + $0x28] sm:$0xff]
        %v585 = vld [vmem:[%s498 + $0x30] sm:$0xff]
        %v586 = vld [vmem:[%s498 + $0x38] sm:$0xff]
        %v587 = vld [vmem:[%s498 + $0x40] sm:$0xff]
        %v588 = vld [vmem:[%s498 + $0x48] sm:$0xff]
        %v589 = vld [vmem:[%s498 + $0x50] sm:$0xff]
        %v590 = vld [vmem:[%s498 + $0x58] sm:$0xff]
        %v591 = vld [vmem:[%s498 + $0x60] sm:$0xff]
        %v592 = vld [vmem:[%s498 + $0x68] sm:$0xff]
        %v593 = vld [vmem:[%s498 + $0x70] sm:$0xff]
        %v594 = vld [vmem:[%s498 + $0x78] sm:$0xff]
        %v595 = vld [vmem:[%s498 + $0x80] sm:$0xff]
        %v596 = vld [vmem:[%s498 + $0x88] sm:$0xff]
        %v597 = vld [vmem:[%s498 + $0x90] sm:$0xff]
        %v598 = vld [vmem:[%s498 + $0x98] sm:$0xff]
        %v599 = vld [vmem:[%s498 + $0xa0] sm:$0xff]
        %v600 = vld [vmem:[%s498 + $0xa8] sm:$0xff]
        %v601 = vld [vmem:[%s498 + $0xb0] sm:$0xff]
        %v602 = vld [vmem:[%s498 + $0xb8] sm:$0xff]
        %v603 = vld [vmem:[%s498 + $0xc0] sm:$0xff]
        %v604 = vld [vmem:[%s498 + $0xc8] sm:$0xff]
        %v605 = vld [vmem:[%s498 + $0xd0] sm:$0xff]
        %v606 = vld [vmem:[%s498 + $0xd8] sm:$0xff]
        %v607 = vld [vmem:[%s498 + $0xe0] sm:$0xff]
        %v608 = vld [vmem:[%s498 + $0xe8] sm:$0xff]
        %v609 = vld [vmem:[%s498 + $0xf0] sm:$0xff]
        %v610 = vld [vmem:[%s498 + $0xf8] sm:$0xff]
        %v611 = vld [vmem:[%s498 + $0x100] sm:$0xff]
        %v612 = vld [vmem:[%s498 + $0x108] sm:$0xff]
        %v613 = vld [vmem:[%s498 + $0x110] sm:$0xff]
        %v614 = vld [vmem:[%s498 + $0x118] sm:$0xff]
        %v615 = vld [vmem:[%s498 + $0x120] sm:$0xff]
        %v616 = vld [vmem:[%s498 + $0x128] sm:$0xff]
        %v617 = vld [vmem:[%s498 + $0x130] sm:$0xff]
        %v618 = vld [vmem:[%s498 + $0x138] sm:$0xff]
        %v619 = vld [vmem:[%s498 + $0x140] sm:$0xff]
        %v620 = vld [vmem:[%s498 + $0x148] sm:$0xff]
        %v621 = vld [vmem:[%s498 + $0x150] sm:$0xff]
        %v622 = vld [vmem:[%s498 + $0x158] sm:$0xff]
        %v623 = vld [vmem:[%s498 + $0x160] sm:$0xff]
        %v624 = vld [vmem:[%s498 + $0x168] sm:$0xff]
        %v625 = vld [vmem:[%s498 + $0x170] sm:$0xff]
        %v626 = vld [vmem:[%s498 + $0x178] sm:$0xff]
        %v627 = vld [vmem:[%s498 + $0x180] sm:$0xff]
        %v628 = vld [vmem:[%s498 + $0x188] sm:$0xff]
        %v629 = vld [vmem:[%s498 + $0x190] sm:$0xff]
        %v630 = vld [vmem:[%s498 + $0x198] sm:$0xff]
        %v631 = vld [vmem:[%s498 + $0x1a0] sm:$0xff]
        %v632 = vld [vmem:[%s498 + $0x1a8] sm:$0xff]
        %v633 = vld [vmem:[%s498 + $0x1b0] sm:$0xff]
        %v634 = vld [vmem:[%s498 + $0x1b8] sm:$0xff]
        %v635 = vld [vmem:[%s498 + $0x1c0] sm:$0xff]
        %v636 = vld [vmem:[%s498 + $0x1c8] sm:$0xff]
        %v637 = vld [vmem:[%s498 + $0x1d0] sm:$0xff]
        %v638 = vld [vmem:[%s498 + $0x1d8] sm:$0xff]
        %v639 = vld [vmem:[%s498 + $0x1e0] sm:$0xff]
        %v640 = vld [vmem:[%s498 + $0x1e8] sm:$0xff]
        %v641 = vld [vmem:[%s498 + $0x1f0] sm:$0xff]
        %v642 = vld [vmem:[%s498 + $0x1f8] sm:$0xff]
        %v643 = vld [vmem:[%s498 + $0x200] sm:$0xff]
        %v644 = vld [vmem:[%s498 + $0x208] sm:$0xff]
        %v645 = vld [vmem:[%s498 + $0x210] sm:$0xff]
        %v646 = vld [vmem:[%s498 + $0x218] sm:$0xff]
        %v647 = vld [vmem:[%s498 + $0x220] sm:$0xff]
        %v648 = vld [vmem:[%s498 + $0x228] sm:$0xff]
        %v649 = vld [vmem:[%s498 + $0x230] sm:$0xff]
        %v650 = vld [vmem:[%s498 + $0x238] sm:$0xff]
        %v651 = vld [vmem:[%s498 + $0x240] sm:$0xff]
        %v652 = vld [vmem:[%s498 + $0x248] sm:$0xff]
        %v653 = vld [vmem:[%s498 + $0x250] sm:$0xff]
        %v654 = vld [vmem:[%s498 + $0x258] sm:$0xff]
        %v655 = vld [vmem:[%s498 + $0x260] sm:$0xff]
        %v656 = vld [vmem:[%s498 + $0x268] sm:$0xff]
        %v657 = vld [vmem:[%s498 + $0x270] sm:$0xff]
        %v658 = vld [vmem:[%s498 + $0x278] sm:$0xff]
        %v659 = vld [vmem:[%s498 + $0x280] sm:$0xff]
        %v660 = vld [vmem:[%s498 + $0x288] sm:$0xff]
        %v661 = vld [vmem:[%s498 + $0x290] sm:$0xff]
        %v662 = vld [vmem:[%s498 + $0x298] sm:$0xff]
        %v663 = vld [vmem:[%s498 + $0x2a0] sm:$0xff]
        %v664 = vld [vmem:[%s498 + $0x2a8] sm:$0xff]
        %v665 = vld [vmem:[%s498 + $0x2b0] sm:$0xff]
        %v666 = vld [vmem:[%s498 + $0x2b8] sm:$0xff]
        %v667 = vld [vmem:[%s498 + $0x2c0] sm:$0xff]
        %v668 = vld [vmem:[%s498 + $0x2c8] sm:$0xff]
        %v669 = vld [vmem:[%s498 + $0x2d0] sm:$0xff]
        %v670 = vld [vmem:[%s498 + $0x2d8] sm:$0xff]
        %v671 = vld [vmem:[%s498 + $0x2e0] sm:$0xff]
        %v672 = vld [vmem:[%s498 + $0x2e8] sm:$0xff]
        %v673 = vld [vmem:[%s498 + $0x2f0] sm:$0xff]
        %v674 = vld [vmem:[%s498 + $0x2f8] sm:$0xff]
        %v675 = vld [vmem:[%s498 + $0x300] sm:$0xff]
        %v676 = vld [vmem:[%s498 + $0x308] sm:$0xff]
        %v677 = vld [vmem:[%s498 + $0x310] sm:$0xff]
        %v678 = vld [vmem:[%s498 + $0x318] sm:$0xff]
        %v679 = vld [vmem:[%s498 + $0x320] sm:$0xff]
        %v680 = vld [vmem:[%s498 + $0x328] sm:$0xff]
        %v681 = vld [vmem:[%s498 + $0x330] sm:$0xff]
        %v682 = vld [vmem:[%s498 + $0x338] sm:$0xff]
        %v683 = vld [vmem:[%s498 + $0x340] sm:$0xff]
        %v684 = vld [vmem:[%s498 + $0x348] sm:$0xff]
        %v685 = vld [vmem:[%s498 + $0x350] sm:$0xff]
        %v686 = vld [vmem:[%s498 + $0x358] sm:$0xff]
        %v687 = vld [vmem:[%s498 + $0x360] sm:$0xff]
        %v688 = vld [vmem:[%s498 + $0x368] sm:$0xff]
        %v689 = vld [vmem:[%s498 + $0x370] sm:$0xff]
        %v690 = vld [vmem:[%s498 + $0x378] sm:$0xff]
        %v691 = vld [vmem:[%s498 + $0x380] sm:$0xff]
        %v692 = vld [vmem:[%s498 + $0x388] sm:$0xff]
        %v693 = vld [vmem:[%s498 + $0x390] sm:$0xff]
        %v694 = vld [vmem:[%s498 + $0x398] sm:$0xff]
        %v695 = vld [vmem:[%s498 + $0x3a0] sm:$0xff]
        %v696 = vld [vmem:[%s498 + $0x3a8] sm:$0xff]
        %v697 = vld [vmem:[%s498 + $0x3b0] sm:$0xff]
        %v698 = vld [vmem:[%s498 + $0x3b8] sm:$0xff]
        %v699 = vld [vmem:[%s498 + $0x3c0] sm:$0xff]
        %v700 = vld [vmem:[%s498 + $0x3c8] sm:$0xff]
        %v701 = vld [vmem:[%s498 + $0x3d0] sm:$0xff]
        %v702 = vld [vmem:[%s498 + $0x3d8] sm:$0xff]
        %v703 = vld [vmem:[%s498 + $0x3e0] sm:$0xff]
        %v704 = vld [vmem:[%s498 + $0x3e8] sm:$0xff]
        %v705 = vld [vmem:[%s498 + $0x3f0] sm:$0xff]
        %v706 = vld [vmem:[%s498 + $0x3f8] sm:$0xff]
        %v709 = vunpack.c.l.b16 %v577
        %v710 = vunpack.c.h.b16 %v577
        %v711 = vunpack.c.l.b16 %v578
        %v712 = vunpack.c.h.b16 %v578
        %v713 = vpack.c.b16 %v709, %v709
        %v714 = vpack.c.b16 %v710, %v710
        %v715 = vpack.c.b16 %v711, %v711
        %v716 = vpack.c.b16 %v712, %v712
        %v849 = vunpack.c.l.b16 %v579
        %v850 = vunpack.c.h.b16 %v579
        %v851 = vunpack.c.l.b16 %v580
        %v852 = vunpack.c.h.b16 %v580
        %v853 = vunpack.c.l.b16 %v581
        %v854 = vunpack.c.h.b16 %v581
        %v855 = vunpack.c.l.b16 %v582
        %v856 = vunpack.c.h.b16 %v582
        %v857 = vunpack.c.l.b16 %v583
        %v858 = vunpack.c.h.b16 %v583
        %v859 = vunpack.c.l.b16 %v584
        %v860 = vunpack.c.h.b16 %v584
        %v861 = vunpack.c.l.b16 %v585
        %v862 = vunpack.c.h.b16 %v585
        %v863 = vunpack.c.l.b16 %v586
        %v864 = vunpack.c.h.b16 %v586
        %v865 = vunpack.c.l.b16 %v587
        %v866 = vunpack.c.h.b16 %v587
        %v867 = vunpack.c.l.b16 %v588
        %v868 = vunpack.c.h.b16 %v588
        %v869 = vunpack.c.l.b16 %v589
        %v870 = vunpack.c.h.b16 %v589
        %v871 = vunpack.c.l.b16 %v590
        %v872 = vunpack.c.h.b16 %v590
        %v873 = vunpack.c.l.b16 %v591
        %v874 = vunpack.c.h.b16 %v591
        %v875 = vunpack.c.l.b16 %v592
        %v876 = vunpack.c.h.b16 %v592
        %v877 = vunpack.c.l.b16 %v593
        %v878 = vunpack.c.h.b16 %v593
        %v879 = vunpack.c.l.b16 %v594
        %v880 = vunpack.c.h.b16 %v594
        %v881 = vunpack.c.l.b16 %v595
        %v882 = vunpack.c.h.b16 %v595
        %v883 = vunpack.c.l.b16 %v596
        %v884 = vunpack.c.h.b16 %v596
        %v885 = vunpack.c.l.b16 %v597
        %v886 = vunpack.c.h.b16 %v597
        %v887 = vunpack.c.l.b16 %v598
        %v888 = vunpack.c.h.b16 %v598
        %v889 = vunpack.c.l.b16 %v599
        %v890 = vunpack.c.h.b16 %v599
        %v891 = vunpack.c.l.b16 %v600
        %v892 = vunpack.c.h.b16 %v600
        %v893 = vunpack.c.l.b16 %v601
        %v894 = vunpack.c.h.b16 %v601
        %v895 = vunpack.c.l.b16 %v602
        %v896 = vunpack.c.h.b16 %v602
        %v897 = vunpack.c.l.b16 %v603
        %v898 = vunpack.c.h.b16 %v603
        %v899 = vunpack.c.l.b16 %v604
        %v900 = vunpack.c.h.b16 %v604
        %v901 = vunpack.c.l.b16 %v605
        %v902 = vunpack.c.h.b16 %v605
        %v903 = vunpack.c.l.b16 %v606
        %v904 = vunpack.c.h.b16 %v606
        %v905 = vunpack.c.l.b16 %v607
        %v906 = vunpack.c.h.b16 %v607
        %v907 = vunpack.c.l.b16 %v608
        %v908 = vunpack.c.h.b16 %v608
        %v909 = vunpack.c.l.b16 %v609
        %v910 = vunpack.c.h.b16 %v609
        %v911 = vunpack.c.l.b16 %v610
        %v912 = vunpack.c.h.b16 %v610
        %v913 = vunpack.c.l.b16 %v611
        %v914 = vunpack.c.h.b16 %v611
        %v915 = vunpack.c.l.b16 %v612
        %v916 = vunpack.c.h.b16 %v612
        %v917 = vunpack.c.l.b16 %v613
        %v918 = vunpack.c.h.b16 %v613
        %v919 = vunpack.c.l.b16 %v614
        %v920 = vunpack.c.h.b16 %v614
        %v921 = vunpack.c.l.b16 %v615
        %v922 = vunpack.c.h.b16 %v615
        %v923 = vunpack.c.l.b16 %v616
        %v924 = vunpack.c.h.b16 %v616
        %v925 = vunpack.c.l.b16 %v617
        %v926 = vunpack.c.h.b16 %v617
        %v927 = vunpack.c.l.b16 %v618
        %v928 = vunpack.c.h.b16 %v618
        %v929 = vunpack.c.l.b16 %v619
        %v930 = vunpack.c.h.b16 %v619
        %v931 = vunpack.c.l.b16 %v620
        %v932 = vunpack.c.h.b16 %v620
        %v933 = vunpack.c.l.b16 %v621
        %v934 = vunpack.c.h.b16 %v621
        %v935 = vunpack.c.l.b16 %v622
        %v936 = vunpack.c.h.b16 %v622
        %v937 = vunpack.c.l.b16 %v623
        %v938 = vunpack.c.h.b16 %v623
        %v939 = vunpack.c.l.b16 %v624
        %v940 = vunpack.c.h.b16 %v624
        %v941 = vunpack.c.l.b16 %v625
        %v942 = vunpack.c.h.b16 %v625
        %v943 = vunpack.c.l.b16 %v626
        %v944 = vunpack.c.h.b16 %v626
        %v945 = vunpack.c.l.b16 %v627
        %v946 = vunpack.c.h.b16 %v627
        %v947 = vunpack.c.l.b16 %v628
        %v948 = vunpack.c.h.b16 %v628
        %v949 = vunpack.c.l.b16 %v629
        %v950 = vunpack.c.h.b16 %v629
        %v951 = vunpack.c.l.b16 %v630
        %v952 = vunpack.c.h.b16 %v630
        %v953 = vunpack.c.l.b16 %v631
        %v954 = vunpack.c.h.b16 %v631
        %v955 = vunpack.c.l.b16 %v632
        %v956 = vunpack.c.h.b16 %v632
        %v957 = vunpack.c.l.b16 %v633
        %v958 = vunpack.c.h.b16 %v633
        %v959 = vunpack.c.l.b16 %v634
        %v960 = vunpack.c.h.b16 %v634
        %v961 = vunpack.c.l.b16 %v635
        %v962 = vunpack.c.h.b16 %v635
        %v963 = vunpack.c.l.b16 %v636
        %v964 = vunpack.c.h.b16 %v636
        %v965 = vunpack.c.l.b16 %v637
        %v966 = vunpack.c.h.b16 %v637
        %v967 = vunpack.c.l.b16 %v638
        %v968 = vunpack.c.h.b16 %v638
        %v969 = vunpack.c.l.b16 %v639
        %v970 = vunpack.c.h.b16 %v639
        %v971 = vunpack.c.l.b16 %v640
        %v972 = vunpack.c.h.b16 %v640
        %v973 = vunpack.c.l.b16 %v641
        %v974 = vunpack.c.h.b16 %v641
        %v975 = vunpack.c.l.b16 %v642
        %v976 = vunpack.c.h.b16 %v642
        %v977 = vunpack.c.l.b16 %v643
        %v978 = vunpack.c.h.b16 %v643
        %v979 = vunpack.c.l.b16 %v644
        %v980 = vunpack.c.h.b16 %v644
        %v981 = vunpack.c.l.b16 %v645
        %v982 = vunpack.c.h.b16 %v645
        %v983 = vunpack.c.l.b16 %v646
        %v984 = vunpack.c.h.b16 %v646
        %v985 = vunpack.c.l.b16 %v647
        %v986 = vunpack.c.h.b16 %v647
        %v987 = vunpack.c.l.b16 %v648
        %v988 = vunpack.c.h.b16 %v648
        %v989 = vunpack.c.l.b16 %v649
        %v990 = vunpack.c.h.b16 %v649
        %v991 = vunpack.c.l.b16 %v650
        %v992 = vunpack.c.h.b16 %v650
        %v993 = vunpack.c.l.b16 %v651
        %v994 = vunpack.c.h.b16 %v651
        %v995 = vunpack.c.l.b16 %v652
        %v996 = vunpack.c.h.b16 %v652
        %v997 = vunpack.c.l.b16 %v653
        %v998 = vunpack.c.h.b16 %v653
        %v999 = vunpack.c.l.b16 %v654
        %v1000 = vunpack.c.h.b16 %v654
        %v1001 = vunpack.c.l.b16 %v655
        %v1002 = vunpack.c.h.b16 %v655
        %v1003 = vunpack.c.l.b16 %v656
        %v1004 = vunpack.c.h.b16 %v656
        %v1005 = vunpack.c.l.b16 %v657
        %v1006 = vunpack.c.h.b16 %v657
        %v1007 = vunpack.c.l.b16 %v658
        %v1008 = vunpack.c.h.b16 %v658
        %v1009 = vunpack.c.l.b16 %v659
        %v1010 = vunpack.c.h.b16 %v659
        %v1011 = vunpack.c.l.b16 %v660
        %v1012 = vunpack.c.h.b16 %v660
        %v1013 = vunpack.c.l.b16 %v661
        %v1014 = vunpack.c.h.b16 %v661
        %v1015 = vunpack.c.l.b16 %v662
        %v1016 = vunpack.c.h.b16 %v662
        %v1017 = vunpack.c.l.b16 %v663
        %v1018 = vunpack.c.h.b16 %v663
        %v1019 = vunpack.c.l.b16 %v664
        %v1020 = vunpack.c.h.b16 %v664
        %v1021 = vunpack.c.l.b16 %v665
        %v1022 = vunpack.c.h.b16 %v665
        %v1023 = vunpack.c.l.b16 %v666
        %v1024 = vunpack.c.h.b16 %v666
        %v1025 = vunpack.c.l.b16 %v667
        %v1026 = vunpack.c.h.b16 %v667
        %v1027 = vunpack.c.l.b16 %v668
        %v1028 = vunpack.c.h.b16 %v668
        %v1029 = vunpack.c.l.b16 %v669
        %v1030 = vunpack.c.h.b16 %v669
        %v1031 = vunpack.c.l.b16 %v670
        %v1032 = vunpack.c.h.b16 %v670
        %v1033 = vunpack.c.l.b16 %v671
        %v1034 = vunpack.c.h.b16 %v671
        %v1035 = vunpack.c.l.b16 %v672
        %v1036 = vunpack.c.h.b16 %v672
        %v1037 = vunpack.c.l.b16 %v673
        %v1038 = vunpack.c.h.b16 %v673
        %v1039 = vunpack.c.l.b16 %v674
        %v1040 = vunpack.c.h.b16 %v674
        %v1041 = vunpack.c.l.b16 %v675
        %v1042 = vunpack.c.h.b16 %v675
        %v1043 = vunpack.c.l.b16 %v676
        %v1044 = vunpack.c.h.b16 %v676
        %v1045 = vunpack.c.l.b16 %v677
        %v1046 = vunpack.c.h.b16 %v677
        %v1047 = vunpack.c.l.b16 %v678
        %v1048 = vunpack.c.h.b16 %v678
        %v1049 = vunpack.c.l.b16 %v679
        %v1050 = vunpack.c.h.b16 %v679
        %v1051 = vunpack.c.l.b16 %v680
        %v1052 = vunpack.c.h.b16 %v680
        %v1053 = vunpack.c.l.b16 %v681
        %v1054 = vunpack.c.h.b16 %v681
        %v1055 = vunpack.c.l.b16 %v682
        %v1056 = vunpack.c.h.b16 %v682
        %v1057 = vunpack.c.l.b16 %v683
        %v1058 = vunpack.c.h.b16 %v683
        %v1059 = vunpack.c.l.b16 %v684
        %v1060 = vunpack.c.h.b16 %v684
        %v1061 = vunpack.c.l.b16 %v685
        %v1062 = vunpack.c.h.b16 %v685
        %v1063 = vunpack.c.l.b16 %v686
        %v1064 = vunpack.c.h.b16 %v686
        %v1065 = vunpack.c.l.b16 %v687
        %v1066 = vunpack.c.h.b16 %v687
        %v1067 = vunpack.c.l.b16 %v688
        %v1068 = vunpack.c.h.b16 %v688
        %v1069 = vunpack.c.l.b16 %v689
        %v1070 = vunpack.c.h.b16 %v689
        %v1071 = vunpack.c.l.b16 %v690
        %v1072 = vunpack.c.h.b16 %v690
        %v1073 = vunpack.c.l.b16 %v691
        %v1074 = vunpack.c.h.b16 %v691
        %v1075 = vunpack.c.l.b16 %v692
        %v1076 = vunpack.c.h.b16 %v692
        %v1077 = vunpack.c.l.b16 %v693
        %v1078 = vunpack.c.h.b16 %v693
        %v1079 = vunpack.c.l.b16 %v694
        %v1080 = vunpack.c.h.b16 %v694
        %v1081 = vunpack.c.l.b16 %v695
        %v1082 = vunpack.c.h.b16 %v695
        %v1083 = vunpack.c.l.b16 %v696
        %v1084 = vunpack.c.h.b16 %v696
        %v1085 = vunpack.c.l.b16 %v697
        %v1086 = vunpack.c.h.b16 %v697
        %v1087 = vunpack.c.l.b16 %v698
        %v1088 = vunpack.c.h.b16 %v698
        %v1089 = vunpack.c.l.b16 %v699
        %v1090 = vunpack.c.h.b16 %v699
        %v1091 = vunpack.c.l.b16 %v700
        %v1092 = vunpack.c.h.b16 %v700
        %v1093 = vunpack.c.l.b16 %v701
        %v1094 = vunpack.c.h.b16 %v701
        %v1095 = vunpack.c.l.b16 %v702
        %v1096 = vunpack.c.h.b16 %v702
        %v1097 = vunpack.c.l.b16 %v703
        %v1098 = vunpack.c.h.b16 %v703
        %v1099 = vunpack.c.l.b16 %v704
        %v1100 = vunpack.c.h.b16 %v704
        %v1101 = vunpack.c.l.b16 %v705
        %v1102 = vunpack.c.h.b16 %v705
        %v1103 = vunpack.c.l.b16 %v706
        %v1104 = vunpack.c.h.b16 %v706
        %v1105 = vpack.c.b16 %v853, %v849
        %v1106 = vpack.c.b16 %v854, %v850
        %v1107 = vpack.c.b16 %v855, %v851
        %v1108 = vpack.c.b16 %v856, %v852
        %v1109 = vpack.c.b16 %v861, %v857
        %v1110 = vpack.c.b16 %v862, %v858
        %v1111 = vpack.c.b16 %v863, %v859
        %v1112 = vpack.c.b16 %v864, %v860
        %v1113 = vpack.c.b16 %v869, %v865
        %v1114 = vpack.c.b16 %v870, %v866
        %v1115 = vpack.c.b16 %v871, %v867
        %v1116 = vpack.c.b16 %v872, %v868
        %v1117 = vpack.c.b16 %v877, %v873
        %v1118 = vpack.c.b16 %v878, %v874
        %v1119 = vpack.c.b16 %v879, %v875
        %v1120 = vpack.c.b16 %v880, %v876
        %v1121 = vpack.c.b16 %v885, %v881
        %v1122 = vpack.c.b16 %v886, %v882
        %v1123 = vpack.c.b16 %v887, %v883
        %v1124 = vpack.c.b16 %v888, %v884
        %v1125 = vpack.c.b16 %v893, %v889
        %v1126 = vpack.c.b16 %v894, %v890
        %v1127 = vpack.c.b16 %v895, %v891
        %v1128 = vpack.c.b16 %v896, %v892
        %v1129 = vpack.c.b16 %v901, %v897
        %v1130 = vpack.c.b16 %v902, %v898
        %v1131 = vpack.c.b16 %v903, %v899
        %v1132 = vpack.c.b16 %v904, %v900
        %v1133 = vpack.c.b16 %v909, %v905
        %v1134 = vpack.c.b16 %v910, %v906
        %v1135 = vpack.c.b16 %v911, %v907
        %v1136 = vpack.c.b16 %v912, %v908
        %v1137 = vpack.c.b16 %v917, %v913
        %v1138 = vpack.c.b16 %v918, %v914
        %v1139 = vpack.c.b16 %v919, %v915
        %v1140 = vpack.c.b16 %v920, %v916
        %v1141 = vpack.c.b16 %v925, %v921
        %v1142 = vpack.c.b16 %v926, %v922
        %v1143 = vpack.c.b16 %v927, %v923
        %v1144 = vpack.c.b16 %v928, %v924
        %v1145 = vpack.c.b16 %v933, %v929
        %v1146 = vpack.c.b16 %v934, %v930
        %v1147 = vpack.c.b16 %v935, %v931
        %v1148 = vpack.c.b16 %v936, %v932
        %v1149 = vpack.c.b16 %v941, %v937
        %v1150 = vpack.c.b16 %v942, %v938
        %v1151 = vpack.c.b16 %v943, %v939
        %v1152 = vpack.c.b16 %v944, %v940
        %v1153 = vpack.c.b16 %v949, %v945
        %v1154 = vpack.c.b16 %v950, %v946
        %v1155 = vpack.c.b16 %v951, %v947
        %v1156 = vpack.c.b16 %v952, %v948
        %v1157 = vpack.c.b16 %v957, %v953
        %v1158 = vpack.c.b16 %v958, %v954
        %v1159 = vpack.c.b16 %v959, %v955
        %v1160 = vpack.c.b16 %v960, %v956
        %v1161 = vpack.c.b16 %v965, %v961
        %v1162 = vpack.c.b16 %v966, %v962
        %v1163 = vpack.c.b16 %v967, %v963
        %v1164 = vpack.c.b16 %v968, %v964
        %v1165 = vpack.c.b16 %v973, %v969
        %v1166 = vpack.c.b16 %v974, %v970
        %v1167 = vpack.c.b16 %v975, %v971
        %v1168 = vpack.c.b16 %v976, %v972
        %v1169 = vpack.c.b16 %v981, %v977
        %v1170 = vpack.c.b16 %v982, %v978
        %v1171 = vpack.c.b16 %v983, %v979
        %v1172 = vpack.c.b16 %v984, %v980
        %v1173 = vpack.c.b16 %v989, %v985
        %v1174 = vpack.c.b16 %v990, %v986
        %v1175 = vpack.c.b16 %v991, %v987
        %v1176 = vpack.c.b16 %v992, %v988
        %v1177 = vpack.c.b16 %v997, %v993
        %v1178 = vpack.c.b16 %v998, %v994
        %v1179 = vpack.c.b16 %v999, %v995
        %v1180 = vpack.c.b16 %v1000, %v996
        %v1181 = vpack.c.b16 %v1005, %v1001
        %v1182 = vpack.c.b16 %v1006, %v1002
        %v1183 = vpack.c.b16 %v1007, %v1003
        %v1184 = vpack.c.b16 %v1008, %v1004
        %v1185 = vpack.c.b16 %v1013, %v1009
        %v1186 = vpack.c.b16 %v1014, %v1010
        %v1187 = vpack.c.b16 %v1015, %v1011
        %v1188 = vpack.c.b16 %v1016, %v1012
        %v1189 = vpack.c.b16 %v1021, %v1017
        %v1190 = vpack.c.b16 %v1022, %v1018
        %v1191 = vpack.c.b16 %v1023, %v1019
        %v1192 = vpack.c.b16 %v1024, %v1020
        %v1193 = vpack.c.b16 %v1029, %v1025
        %v1194 = vpack.c.b16 %v1030, %v1026
        %v1195 = vpack.c.b16 %v1031, %v1027
        %v1196 = vpack.c.b16 %v1032, %v1028
        %v1197 = vpack.c.b16 %v1037, %v1033
        %v1198 = vpack.c.b16 %v1038, %v1034
        %v1199 = vpack.c.b16 %v1039, %v1035
        %v1200 = vpack.c.b16 %v1040, %v1036
        %v1201 = vpack.c.b16 %v1045, %v1041
        %v1202 = vpack.c.b16 %v1046, %v1042
        %v1203 = vpack.c.b16 %v1047, %v1043
        %v1204 = vpack.c.b16 %v1048, %v1044
        %v1205 = vpack.c.b16 %v1053, %v1049
        %v1206 = vpack.c.b16 %v1054, %v1050
        %v1207 = vpack.c.b16 %v1055, %v1051
        %v1208 = vpack.c.b16 %v1056, %v1052
        %v1209 = vpack.c.b16 %v1061, %v1057
        %v1210 = vpack.c.b16 %v1062, %v1058
        %v1211 = vpack.c.b16 %v1063, %v1059
        %v1212 = vpack.c.b16 %v1064, %v1060
        %v1213 = vpack.c.b16 %v1069, %v1065
        %v1214 = vpack.c.b16 %v1070, %v1066
        %v1215 = vpack.c.b16 %v1071, %v1067
        %v1216 = vpack.c.b16 %v1072, %v1068
        %v1217 = vpack.c.b16 %v1077, %v1073
        %v1218 = vpack.c.b16 %v1078, %v1074
        %v1219 = vpack.c.b16 %v1079, %v1075
        %v1220 = vpack.c.b16 %v1080, %v1076
        %v1221 = vpack.c.b16 %v1085, %v1081
        %v1222 = vpack.c.b16 %v1086, %v1082
        %v1223 = vpack.c.b16 %v1087, %v1083
        %v1224 = vpack.c.b16 %v1088, %v1084
        %v1225 = vpack.c.b16 %v1093, %v1089
        %v1226 = vpack.c.b16 %v1094, %v1090
        %v1227 = vpack.c.b16 %v1095, %v1091
        %v1228 = vpack.c.b16 %v1096, %v1092
        %v1229 = vpack.c.b16 %v1101, %v1097
        %v1230 = vpack.c.b16 %v1102, %v1098
        %v1231 = vpack.c.b16 %v1103, %v1099
        %v1232 = vpack.c.b16 %v1104, %v1100
        %1361 = vmatprep.subr.bf16.mxu0 %v1106
        %1362 = vmatpush1.bf16.msra.mxu0 %v1105
        %1363 = vmatprep.subr.bf16.mxu0 %v1110
        %1364 = vmatpush1.bf16.msra.mxu0 %v1109
        %1365 = vmatprep.subr.bf16.mxu0 %v1114
        %1366 = vmatpush1.bf16.msra.mxu0 %v1113
        %1367 = vmatprep.subr.bf16.mxu0 %v1118
        %1368 = vmatpush1.bf16.msra.mxu0 %v1117
        %1369 = vmatprep.subr.bf16.mxu0 %v1122
        %1370 = vmatpush1.bf16.msra.mxu0 %v1121
        %1371 = vmatprep.subr.bf16.mxu0 %v1126
        %1372 = vmatpush1.bf16.msra.mxu0 %v1125
        %1373 = vmatprep.subr.bf16.mxu0 %v1130
        %1374 = vmatpush1.bf16.msra.mxu0 %v1129
        %1375 = vmatprep.subr.bf16.mxu0 %v1134
        %1376 = vmatpush1.bf16.msra.mxu0 %v1133
        %1377 = vmatprep.subr.bf16.mxu0 %v1138
        %1378 = vmatpush1.bf16.msra.mxu0 %v1137
        %1379 = vmatprep.subr.bf16.mxu0 %v1142
        %1380 = vmatpush1.bf16.msra.mxu0 %v1141
        %1381 = vmatprep.subr.bf16.mxu0 %v1146
        %1382 = vmatpush1.bf16.msra.mxu0 %v1145
        %1383 = vmatprep.subr.bf16.mxu0 %v1150
        %1384 = vmatpush1.bf16.msra.mxu0 %v1149
        %1385 = vmatprep.subr.bf16.mxu0 %v1154
        %1386 = vmatpush1.bf16.msra.mxu0 %v1153
        %1387 = vmatprep.subr.bf16.mxu0 %v1158
        %1388 = vmatpush1.bf16.msra.mxu0 %v1157
        %1389 = vmatprep.subr.bf16.mxu0 %v1162
        %1390 = vmatpush1.bf16.msra.mxu0 %v1161
        %1391 = vmatprep.subr.bf16.mxu0 %v1166
        %1392 = vmatpush1.bf16.msra.mxu0 %v1165
        %1393 = vmatprep.mubr.bf16.mxu0 %v714
        %1394 = vmatmul.mubr.bf16.gmra.mrb[0].mxu0 %v713
        %v1395 = vpop.f32.mrb[0].mxu0
        %v1396 = vadd.f32 0.0, %v1395
        %v1397 = vpop.f32.mrb[0].mxu0
        %v1398 = vadd.f32 0.0, %v1397
        %v1399 = vpop.f32.mrb[0].mxu0
        %v1400 = vpop.f32.mrb[0].mxu0
        %1401 = vdwg.mxu0
        %1402 = vmatprep.subr.bf16.mxu0 %v1170
        %1403 = vmatpush1.bf16.msra.mxu0 %v1169
        %1404 = vmatprep.subr.bf16.mxu0 %v1174
        %1405 = vmatpush1.bf16.msra.mxu0 %v1173
        %1406 = vmatprep.subr.bf16.mxu0 %v1178
        %1407 = vmatpush1.bf16.msra.mxu0 %v1177
        %1408 = vmatprep.subr.bf16.mxu0 %v1182
        %1409 = vmatpush1.bf16.msra.mxu0 %v1181
        %1410 = vmatprep.subr.bf16.mxu0 %v1186
        %1411 = vmatpush1.bf16.msra.mxu0 %v1185
        %1412 = vmatprep.subr.bf16.mxu0 %v1190
        %1413 = vmatpush1.bf16.msra.mxu0 %v1189
        %1414 = vmatprep.subr.bf16.mxu0 %v1194
        %1415 = vmatpush1.bf16.msra.mxu0 %v1193
        %1416 = vmatprep.subr.bf16.mxu0 %v1198
        %1417 = vmatpush1.bf16.msra.mxu0 %v1197
        %1418 = vmatprep.subr.bf16.mxu0 %v1202
        %1419 = vmatpush1.bf16.msra.mxu0 %v1201
        %1420 = vmatprep.subr.bf16.mxu0 %v1206
        %1421 = vmatpush1.bf16.msra.mxu0 %v1205
        %1422 = vmatprep.subr.bf16.mxu0 %v1210
        %1423 = vmatpush1.bf16.msra.mxu0 %v1209
        %1424 = vmatprep.subr.bf16.mxu0 %v1214
        %1425 = vmatpush1.bf16.msra.mxu0 %v1213
        %1426 = vmatprep.subr.bf16.mxu0 %v1218
        %1427 = vmatpush1.bf16.msra.mxu0 %v1217
        %1428 = vmatprep.subr.bf16.mxu0 %v1222
        %1429 = vmatpush1.bf16.msra.mxu0 %v1221
        %1430 = vmatprep.subr.bf16.mxu0 %v1226
        %1431 = vmatpush1.bf16.msra.mxu0 %v1225
        %1432 = vmatprep.subr.bf16.mxu0 %v1230
        %1433 = vmatpush1.bf16.msra.mxu0 %v1229
        %1434 = vmatprep.mubr.bf16.mxu0 %v716
        %1435 = vmatmul.mubr.bf16.gmra.mrb[0].mxu0 %v715
        %v1436 = vpop.f32.mrb[0].mxu0
        %v1437 = vadd.f32 %v1396, %v1436
        %v1438 = vpop.f32.mrb[0].mxu0
        %v1439 = vadd.f32 %v1398, %v1438
        %v1440 = vpop.f32.mrb[0].mxu0
        %v1441 = vpop.f32.mrb[0].mxu0
        %1442 = vdwg.mxu0
        %1443 = vmatprep.subr.bf16.mxu0 %v1108
        %1444 = vmatpush1.bf16.msra.mxu0 %v1107
        %1445 = vmatprep.subr.bf16.mxu0 %v1112
        %1446 = vmatpush1.bf16.msra.mxu0 %v1111
        %1447 = vmatprep.subr.bf16.mxu0 %v1116
        %1448 = vmatpush1.bf16.msra.mxu0 %v1115
        %1449 = vmatprep.subr.bf16.mxu0 %v1120
        %1450 = vmatpush1.bf16.msra.mxu0 %v1119
        %1451 = vmatprep.subr.bf16.mxu0 %v1124
        %1452 = vmatpush1.bf16.msra.mxu0 %v1123
        %1453 = vmatprep.subr.bf16.mxu0 %v1128
        %1454 = vmatpush1.bf16.msra.mxu0 %v1127
        %1455 = vmatprep.subr.bf16.mxu0 %v1132
        %1456 = vmatpush1.bf16.msra.mxu0 %v1131
        %1457 = vmatprep.subr.bf16.mxu0 %v1136
        %1458 = vmatpush1.bf16.msra.mxu0 %v1135
        %1459 = vmatprep.subr.bf16.mxu0 %v1140
        %1460 = vmatpush1.bf16.msra.mxu0 %v1139
        %1461 = vmatprep.subr.bf16.mxu0 %v1144
        %1462 = vmatpush1.bf16.msra.mxu0 %v1143
        %1463 = vmatprep.subr.bf16.mxu0 %v1148
        %1464 = vmatpush1.bf16.msra.mxu0 %v1147
        %1465 = vmatprep.subr.bf16.mxu0 %v1152
        %1466 = vmatpush1.bf16.msra.mxu0 %v1151
        %1467 = vmatprep.subr.bf16.mxu0 %v1156
        %1468 = vmatpush1.bf16.msra.mxu0 %v1155
        %1469 = vmatprep.subr.bf16.mxu0 %v1160
        %1470 = vmatpush1.bf16.msra.mxu0 %v1159
        %1471 = vmatprep.subr.bf16.mxu0 %v1164
        %1472 = vmatpush1.bf16.msra.mxu0 %v1163
        %1473 = vmatprep.subr.bf16.mxu0 %v1168
        %1474 = vmatpush1.bf16.msra.mxu0 %v1167
        %1475 = vmatprep.mubr.bf16.mxu0 %v714
        %1476 = vmatmul.mubr.bf16.gmra.mrb[0].mxu0 %v713
        %v1477 = vpop.f32.mrb[0].mxu0
        %v1478 = vadd.f32 0.0, %v1477
        %v1479 = vpop.f32.mrb[0].mxu0
        %v1480 = vadd.f32 0.0, %v1479
        %v1481 = vpop.f32.mrb[0].mxu0
        %v1482 = vpop.f32.mrb[0].mxu0
        %1483 = vdwg.mxu0
        %1484 = vmatprep.subr.bf16.mxu0 %v1172
        %1485 = vmatpush1.bf16.msra.mxu0 %v1171
        %1486 = vmatprep.subr.bf16.mxu0 %v1176
        %1487 = vmatpush1.bf16.msra.mxu0 %v1175
        %1488 = vmatprep.subr.bf16.mxu0 %v1180
        %1489 = vmatpush1.bf16.msra.mxu0 %v1179
        %1490 = vmatprep.subr.bf16.mxu0 %v1184
        %1491 = vmatpush1.bf16.msra.mxu0 %v1183
        %1492 = vmatprep.subr.bf16.mxu0 %v1188
        %1493 = vmatpush1.bf16.msra.mxu0 %v1187
        %1494 = vmatprep.subr.bf16.mxu0 %v1192
        %1495 = vmatpush1.bf16.msra.mxu0 %v1191
        %1496 = vmatprep.subr.bf16.mxu0 %v1196
        %1497 = vmatpush1.bf16.msra.mxu0 %v1195
        %1498 = vmatprep.subr.bf16.mxu0 %v1200
        %1499 = vmatpush1.bf16.msra.mxu0 %v1199
        %1500 = vmatprep.subr.bf16.mxu0 %v1204
        %1501 = vmatpush1.bf16.msra.mxu0 %v1203
        %1502 = vmatprep.subr.bf16.mxu0 %v1208
        %1503 = vmatpush1.bf16.msra.mxu0 %v1207
        %1504 = vmatprep.subr.bf16.mxu0 %v1212
        %1505 = vmatpush1.bf16.msra.mxu0 %v1211
        %1506 = vmatprep.subr.bf16.mxu0 %v1216
        %1507 = vmatpush1.bf16.msra.mxu0 %v1215
        %1508 = vmatprep.subr.bf16.mxu0 %v1220
        %1509 = vmatpush1.bf16.msra.mxu0 %v1219
        %1510 = vmatprep.subr.bf16.mxu0 %v1224
        %1511 = vmatpush1.bf16.msra.mxu0 %v1223
        %1512 = vmatprep.subr.bf16.mxu0 %v1228
        %1513 = vmatpush1.bf16.msra.mxu0 %v1227
        %1514 = vmatprep.subr.bf16.mxu0 %v1232
        %1515 = vmatpush1.bf16.msra.mxu0 %v1231
        %1516 = vmatprep.mubr.bf16.mxu0 %v716
        %1517 = vmatmul.mubr.bf16.gmra.mrb[0].mxu0 %v715
        %v1518 = vpop.f32.mrb[0].mxu0
        %v1519 = vadd.f32 %v1478, %v1518
        %v1520 = vpop.f32.mrb[0].mxu0
        %v1521 = vadd.f32 %v1480, %v1520
        %v1522 = vpop.f32.mrb[0].mxu0
        %v1523 = vpop.f32.mrb[0].mxu0
        %1524 = vdwg.mxu0
        %v1525 = vadd.f32 %v573, %v1437
        %v1526 = vadd.f32 %v574, %v1439
        %v1527 = vadd.f32 %v575, %v1519
        %v1528 = vadd.f32 %v576, %v1521
        %1529 = vst [vmem:[#allocation2] sm:$0xff] %v1525
        %1530 = vst [vmem:[#allocation2 + $0x8] sm:$0xff] %v1526
        %1531 = vst [vmem:[#allocation2 + $0x10] sm:$0xff] %v1527
        %1532 = vst [vmem:[#allocation2 + $0x18] sm:$0xff] %v1528
        %p1533 = scmp.eq.s32.totalorder %s23, 2
        // Predicated region
        $region64: #{vae_forward.11} parent=54 // pred_check
          %p1534 = pneg %p1533
        $region65: #{vae_forward.11} parent=54 // pred_check_branch
          %1536 = sbr.rel (%p1534) target = $region67
        $region66: #{vae_forward.11} parent=54 // pred_region
          %v1537 = vld [vmem:[#allocation2] sm:$0xff]
          %v1538 = vld [vmem:[#allocation2 + $0x8] sm:$0xff]
          %v1539 = vld [vmem:[#allocation2 + $0x10] sm:$0xff]
          %v1540 = vld [vmem:[#allocation2 + $0x18] sm:$0xff]
          %v1541 = vld [vmem:[%s553] sm:$0xf]
          %v1543 = vlaneseq
          %v1544 = vshrl.u32 %v1543, 7
          %v1545 = vsub.s32 0, %v1544
          %v1546 = vrot.slane %v1541, %v1545
          %v1547 = vlaneseq
          %v1548 = vshrl.u32 %v1547, 7
          %v1549 = vsub.s32 1, %v1548
          %v1550 = vrot.slane %v1541, %v1549
          %v1551 = vlaneseq
          %v1552 = vshrl.u32 %v1551, 7
          %v1553 = vsub.s32 2, %v1552
          %v1554 = vrot.slane %v1541, %v1553
          %v1555 = vlaneseq
          %v1556 = vshrl.u32 %v1555, 7
          %v1557 = vsub.s32 3, %v1556
          %v1558 = vrot.slane %v1541, %v1557
          %v1563 = vadd.f32 %v1537, %v1546
          %v1564 = vadd.f32 %v1538, %v1550
          %v1565 = vadd.f32 %v1539, %v1554
          %v1566 = vadd.f32 %v1540, %v1558
          %s1567 = sld [smem:[#allocation3]]
          %v1568 = vstv %s1567
          %v1569 = vmul.f32 %v1563, %v1568
          %v1570 = vmul.f32 %v1564, %v1568
          %v1571 = vmul.f32 %v1565, %v1568
          %v1572 = vmul.f32 %v1566, %v1568
          %v1573 = vmax.f32 %v1569, 0.0
          %v1574 = vmax.f32 %v1570, 0.0
          %v1575 = vmax.f32 %v1571, 0.0
          %v1576 = vmax.f32 %v1572, 0.0
          %1577 = vst [vmem:[%s563] sm:$0xff] %v1573
          %1578 = vst [vmem:[%s563 + $0x8] sm:$0xff] %v1574
          %1579 = vst [vmem:[%s563 + $0x10] sm:$0xff] %v1575
          %1580 = vst [vmem:[%s563 + $0x18] sm:$0xff] %v1576
        $region67: #{vae_forward.11} parent=54 // pred_fallthru
          _
        %s1581 = smul.u32 4, %s22
        %p1582 = scmp.lt.s32.totalorder %s21, 0
        %s1583 = scalar_select %p1582, %s21, 0
        %p1584 = scmp.lt.s32.totalorder %s1581, 11
        %s1585 = scalar_select %p1584, %s1581, 11
        %s1586 = smul.addr %s1583, 12
        %s1587 = sadd.s32 %s1585, %s1586
        %s1588 = smul.addr %s1587, 8
        %s1589 = scalar_lea.vmem %s4, %s1588
        // Predicated region
        $region68: #{vae_forward.11} parent=54 // pred_check
          %p1590 = pneg %p158
        $region69: #{vae_forward.11} parent=54 // pred_check_branch
          %1592 = sbr.rel (%p1590) target = $region71
        $region70: #{vae_forward.11} parent=54 // pred_region
          %s1593 = smul.u32 4, %s22
        $region71: #{vae_forward.11} parent=54 // pred_fallthru
          _
      $region55: #{vae_forward.11} parent=5 // pred_fallthru
        _
      %p1594 = scmp.le.s32.totalorder 2, %s11
      // Predicated region
      $region72: #{vae_forward.11} parent=5 // pred_check
        %p1595 = pneg %p1594
      $region73: #{vae_forward.11} parent=5 // pred_check_branch
        %1597 = sbr.rel (%p1595) target = $region75
      $region74: #{vae_forward.11} parent=5 // pred_region
        %s1598 = ssub.s32 %s11, 2
        // Predicated region
        $region76: #{vae_forward.11} parent=74 // pred_check
          %p1599 = pneg %p164
        $region77: #{vae_forward.11} parent=74 // pred_check_branch
          %1601 = sbr.rel (%p1599) target = $region79
        $region78: #{vae_forward.11} parent=74 // pred_region
          %s1602 = smul.u32 4, %s25
          %p1603 = scmp.lt.s32.totalorder %s24, 0
          %s1604 = scalar_select %p1603, %s24, 0
          %p1605 = scmp.lt.s32.totalorder %s1602, 11
          %s1606 = scalar_select %p1605, %s1602, 11
          %s1607 = smul.addr %s1604, 12
          %s1608 = sadd.s32 %s1606, %s1607
          %s1609 = smul.addr %s1608, 8
          %s1610 = scalar_lea.vmem %s4, %s1609
        $region79: #{vae_forward.11} parent=74 // pred_fallthru
          _
      $region75: #{vae_forward.11} parent=5 // pred_fallthru
        _
    $region6: #{vae_forward.11} parent=1 // loop_footer
      %s15 = sadd.s32 1, %s11
    $region7: #{vae_forward.11} parent=1 // loop_footer_branch
      %10 = sbr.rel target = $region3
    $region8: #{vae_forward.11} parent=1 // loop_exit
      _

// kernel: vae_forward.13
$region0: #{vae_forward.13}
  #allocation0 [shape = 'u32[]', space=smem, size = 0x4, offset = 0x4, fixed_abs, tag = 'smem constant byte address 0x4 - core index']
  #allocation1 [shape = 'u32[144,128]{1,0:T(1,128)}', space=vmem, size = 0x12000, scoped, tag = 'internal scratch']
  #allocation2 [shape = 'f32[8,512]{1,0:T(8,128)}', space=vmem, size = 0x4000, scoped, tag = 'scratch operand']
  #allocation3 [shape = 'f32[1]{0:T(128)S(6)}', space=smem, size = 0x200, scoped, tag = 'scoped memory for vae_forward.13']
  %s0 = inlined_call_operand.<no memory space> [shape: f32[1], index: 0, kind: input, shape index: {}]
  %s1 = inlined_call_operand.vmem [shape: bf16[8,128], index: 1, kind: input, shape index: {}]
  %s2 = inlined_call_operand.vmem [shape: bf16[128,512], index: 2, kind: input, shape index: {}]
  %s3 = inlined_call_operand.vmem [shape: f32[1,512], index: 3, kind: input, shape index: {}]
  %s4 = inlined_call_operand.vmem [shape: f32[8,512], index: 4, kind: output, shape index: {}]
  %s5 = sld [smem:[#allocation0]]
  $region34: #{vae_forward.13} parent=0
    _
  %s7 = ssub.s32 1, %s5
  %s8 = scalar_select 0, %s7, %s5
  %9 = sst [smem:[#allocation3]] %s0
  // Predicated region
  $region2: #{vae_forward.13} parent=0 // pred_check
    _
  $region3: #{vae_forward.13} parent=0 // pred_check_branch
    %11 = sbr.rel (0) target = $region5
  $region4: #{vae_forward.13} parent=0 // pred_region
    _
  $region5: #{vae_forward.13} parent=0 // pred_fallthru
    _
  // Predicated region
  $region6: #{vae_forward.13} parent=0 // pred_check
    _
  $region7: #{vae_forward.13} parent=0 // pred_check_branch
    %13 = sbr.rel (0) target = $region9
  $region8: #{vae_forward.13} parent=0 // pred_region
    _
  $region9: #{vae_forward.13} parent=0 // pred_fallthru
    _
  // Predicated region
  $region10: #{vae_forward.13} parent=0 // pred_check
    _
  $region11: #{vae_forward.13} parent=0 // pred_check_branch
    %15 = sbr.rel (0) target = $region13
  $region12: #{vae_forward.13} parent=0 // pred_region
    _
  $region13: #{vae_forward.13} parent=0 // pred_fallthru
    _
  // Predicated region
  $region14: #{vae_forward.13} parent=0 // pred_check
    _
  $region15: #{vae_forward.13} parent=0 // pred_check_branch
    %17 = sbr.rel (0) target = $region17
  $region16: #{vae_forward.13} parent=0 // pred_region
    _
  $region17: #{vae_forward.13} parent=0 // pred_fallthru
    _
  %p19 = scmp.eq.s32.totalorder 0, 0
  // Predicated region
  $region18: #{vae_forward.13} parent=0 // pred_check
    %p20 = pneg %p19
  $region19: #{vae_forward.13} parent=0 // pred_check_branch
    %22 = sbr.rel (%p20) target = $region21
  $region20: #{vae_forward.13} parent=0 // pred_region
    %23 = vst [vmem:[#allocation2] sm:$0xff] 0.0
    %24 = vst [vmem:[#allocation2 + $0x8] sm:$0xff] 0.0
    %25 = vst [vmem:[#allocation2 + $0x10] sm:$0xff] 0.0
    %26 = vst [vmem:[#allocation2 + $0x18] sm:$0xff] 0.0
  $region21: #{vae_forward.13} parent=0 // pred_fallthru
    _
  %v27 = vld [vmem:[#allocation2] sm:$0xff]
  %v28 = vld [vmem:[#allocation2 + $0x8] sm:$0xff]
  %v29 = vld [vmem:[#allocation2 + $0x10] sm:$0xff]
  %v30 = vld [vmem:[#allocation2 + $0x18] sm:$0xff]
  %v31 = vld [vmem:[%s1] sm:$0xf]
  %v32 = vld [vmem:[%s2] sm:$0xff]
  %v33 = vld [vmem:[%s2 + $0x8] sm:$0xff]
  %v34 = vld [vmem:[%s2 + $0x10] sm:$0xff]
  %v35 = vld [vmem:[%s2 + $0x18] sm:$0xff]
  %v36 = vld [vmem:[%s2 + $0x20] sm:$0xff]
  %v37 = vld [vmem:[%s2 + $0x28] sm:$0xff]
  %v38 = vld [vmem:[%s2 + $0x30] sm:$0xff]
  %v39 = vld [vmem:[%s2 + $0x38] sm:$0xff]
  %v40 = vld [vmem:[%s2 + $0x40] sm:$0xff]
  %v41 = vld [vmem:[%s2 + $0x48] sm:$0xff]
  %v42 = vld [vmem:[%s2 + $0x50] sm:$0xff]
  %v43 = vld [vmem:[%s2 + $0x58] sm:$0xff]
  %v44 = vld [vmem:[%s2 + $0x60] sm:$0xff]
  %v45 = vld [vmem:[%s2 + $0x68] sm:$0xff]
  %v46 = vld [vmem:[%s2 + $0x70] sm:$0xff]
  %v47 = vld [vmem:[%s2 + $0x78] sm:$0xff]
  %v48 = vld [vmem:[%s2 + $0x80] sm:$0xff]
  %v49 = vld [vmem:[%s2 + $0x88] sm:$0xff]
  %v50 = vld [vmem:[%s2 + $0x90] sm:$0xff]
  %v51 = vld [vmem:[%s2 + $0x98] sm:$0xff]
  %v52 = vld [vmem:[%s2 + $0xa0] sm:$0xff]
  %v53 = vld [vmem:[%s2 + $0xa8] sm:$0xff]
  %v54 = vld [vmem:[%s2 + $0xb0] sm:$0xff]
  %v55 = vld [vmem:[%s2 + $0xb8] sm:$0xff]
  %v56 = vld [vmem:[%s2 + $0xc0] sm:$0xff]
  %v57 = vld [vmem:[%s2 + $0xc8] sm:$0xff]
  %v58 = vld [vmem:[%s2 + $0xd0] sm:$0xff]
  %v59 = vld [vmem:[%s2 + $0xd8] sm:$0xff]
  %v60 = vld [vmem:[%s2 + $0xe0] sm:$0xff]
  %v61 = vld [vmem:[%s2 + $0xe8] sm:$0xff]
  %v62 = vld [vmem:[%s2 + $0xf0] sm:$0xff]
  %v63 = vld [vmem:[%s2 + $0xf8] sm:$0xff]
  %v96 = vunpack.c.l.b16 %v32
  %v97 = vunpack.c.h.b16 %v32
  %v98 = vunpack.c.l.b16 %v33
  %v99 = vunpack.c.h.b16 %v33
  %v100 = vunpack.c.l.b16 %v34
  %v101 = vunpack.c.h.b16 %v34
  %v102 = vunpack.c.l.b16 %v35
  %v103 = vunpack.c.h.b16 %v35
  %v104 = vunpack.c.l.b16 %v36
  %v105 = vunpack.c.h.b16 %v36
  %v106 = vunpack.c.l.b16 %v37
  %v107 = vunpack.c.h.b16 %v37
  %v108 = vunpack.c.l.b16 %v38
  %v109 = vunpack.c.h.b16 %v38
  %v110 = vunpack.c.l.b16 %v39
  %v111 = vunpack.c.h.b16 %v39
  %v112 = vunpack.c.l.b16 %v40
  %v113 = vunpack.c.h.b16 %v40
  %v114 = vunpack.c.l.b16 %v41
  %v115 = vunpack.c.h.b16 %v41
  %v116 = vunpack.c.l.b16 %v42
  %v117 = vunpack.c.h.b16 %v42
  %v118 = vunpack.c.l.b16 %v43
  %v119 = vunpack.c.h.b16 %v43
  %v120 = vunpack.c.l.b16 %v44
  %v121 = vunpack.c.h.b16 %v44
  %v122 = vunpack.c.l.b16 %v45
  %v123 = vunpack.c.h.b16 %v45
  %v124 = vunpack.c.l.b16 %v46
  %v125 = vunpack.c.h.b16 %v46
  %v126 = vunpack.c.l.b16 %v47
  %v127 = vunpack.c.h.b16 %v47
  %v128 = vunpack.c.l.b16 %v48
  %v129 = vunpack.c.h.b16 %v48
  %v130 = vunpack.c.l.b16 %v49
  %v131 = vunpack.c.h.b16 %v49
  %v132 = vunpack.c.l.b16 %v50
  %v133 = vunpack.c.h.b16 %v50
  %v134 = vunpack.c.l.b16 %v51
  %v135 = vunpack.c.h.b16 %v51
  %v136 = vunpack.c.l.b16 %v52
  %v137 = vunpack.c.h.b16 %v52
  %v138 = vunpack.c.l.b16 %v53
  %v139 = vunpack.c.h.b16 %v53
  %v140 = vunpack.c.l.b16 %v54
  %v141 = vunpack.c.h.b16 %v54
  %v142 = vunpack.c.l.b16 %v55
  %v143 = vunpack.c.h.b16 %v55
  %v144 = vunpack.c.l.b16 %v56
  %v145 = vunpack.c.h.b16 %v56
  %v146 = vunpack.c.l.b16 %v57
  %v147 = vunpack.c.h.b16 %v57
  %v148 = vunpack.c.l.b16 %v58
  %v149 = vunpack.c.h.b16 %v58
  %v150 = vunpack.c.l.b16 %v59
  %v151 = vunpack.c.h.b16 %v59
  %v152 = vunpack.c.l.b16 %v60
  %v153 = vunpack.c.h.b16 %v60
  %v154 = vunpack.c.l.b16 %v61
  %v155 = vunpack.c.h.b16 %v61
  %v156 = vunpack.c.l.b16 %v62
  %v157 = vunpack.c.h.b16 %v62
  %v158 = vunpack.c.l.b16 %v63
  %v159 = vunpack.c.h.b16 %v63
  %v160 = vpack.c.b16 %v100, %v96
  %v161 = vpack.c.b16 %v101, %v97
  %v162 = vpack.c.b16 %v102, %v98
  %v163 = vpack.c.b16 %v103, %v99
  %v164 = vpack.c.b16 %v108, %v104
  %v165 = vpack.c.b16 %v109, %v105
  %v166 = vpack.c.b16 %v110, %v106
  %v167 = vpack.c.b16 %v111, %v107
  %v168 = vpack.c.b16 %v116, %v112
  %v169 = vpack.c.b16 %v117, %v113
  %v170 = vpack.c.b16 %v118, %v114
  %v171 = vpack.c.b16 %v119, %v115
  %v172 = vpack.c.b16 %v124, %v120
  %v173 = vpack.c.b16 %v125, %v121
  %v174 = vpack.c.b16 %v126, %v122
  %v175 = vpack.c.b16 %v127, %v123
  %v176 = vpack.c.b16 %v132, %v128
  %v177 = vpack.c.b16 %v133, %v129
  %v178 = vpack.c.b16 %v134, %v130
  %v179 = vpack.c.b16 %v135, %v131
  %v180 = vpack.c.b16 %v140, %v136
  %v181 = vpack.c.b16 %v141, %v137
  %v182 = vpack.c.b16 %v142, %v138
  %v183 = vpack.c.b16 %v143, %v139
  %v184 = vpack.c.b16 %v148, %v144
  %v185 = vpack.c.b16 %v149, %v145
  %v186 = vpack.c.b16 %v150, %v146
  %v187 = vpack.c.b16 %v151, %v147
  %v188 = vpack.c.b16 %v156, %v152
  %v189 = vpack.c.b16 %v157, %v153
  %v190 = vpack.c.b16 %v158, %v154
  %v191 = vpack.c.b16 %v159, %v155
  %224 = vmatprep.subr.bf16.mxu0 %v161
  %225 = vmatpush1.bf16.msra.mxu0 %v160
  %226 = vmatprep.subr.bf16.mxu0 %v165
  %227 = vmatpush1.bf16.msra.mxu0 %v164
  %228 = vmatprep.subr.bf16.mxu0 %v169
  %229 = vmatpush1.bf16.msra.mxu0 %v168
  %230 = vmatprep.subr.bf16.mxu0 %v173
  %231 = vmatpush1.bf16.msra.mxu0 %v172
  %232 = vmatprep.subr.bf16.mxu0 %v177
  %233 = vmatpush1.bf16.msra.mxu0 %v176
  %234 = vmatprep.subr.bf16.mxu0 %v181
  %235 = vmatpush1.bf16.msra.mxu0 %v180
  %236 = vmatprep.subr.bf16.mxu0 %v185
  %237 = vmatpush1.bf16.msra.mxu0 %v184
  %238 = vmatprep.subr.bf16.mxu0 %v189
  %239 = vmatpush1.bf16.msra.mxu0 %v188
  %240 = vmatprep.subr.bf16.mxu0 0
  %241 = vmatpush1.bf16.msra.mxu0 0
  %242 = vmatprep.subr.bf16.mxu0 0
  %243 = vmatpush1.bf16.msra.mxu0 0
  %244 = vmatprep.subr.bf16.mxu0 0
  %245 = vmatpush1.bf16.msra.mxu0 0
  %246 = vmatprep.subr.bf16.mxu0 0
  %247 = vmatpush1.bf16.msra.mxu0 0
  %248 = vmatprep.subr.bf16.mxu0 0
  %249 = vmatpush1.bf16.msra.mxu0 0
  %250 = vmatprep.subr.bf16.mxu0 0
  %251 = vmatpush1.bf16.msra.mxu0 0
  %252 = vmatprep.subr.bf16.mxu0 0
  %253 = vmatpush1.bf16.msra.mxu0 0
  %254 = vmatprep.subr.bf16.mxu0 0
  %255 = vmatpush1.bf16.msra.mxu0 0
  %256 = vmatprep.mubr.bf16.mxu0 0
  %257 = vmatmul.mubr.bf16.gmra.mrb[0].mxu0 %v31
  %v258 = vpop.f32.mrb[0].mxu0
  %v259 = vadd.f32 0.0, %v258
  %v260 = vpop.f32.mrb[0].mxu0
  %v261 = vadd.f32 0.0, %v260
  %v262 = vpop.f32.mrb[0].mxu0
  %v263 = vpop.f32.mrb[0].mxu0
  %264 = vdwg.mxu0
  %265 = vmatprep.subr.bf16.mxu0 %v163
  %266 = vmatpush1.bf16.msra.mxu0 %v162
  %267 = vmatprep.subr.bf16.mxu0 %v167
  %268 = vmatpush1.bf16.msra.mxu0 %v166
  %269 = vmatprep.subr.bf16.mxu0 %v171
  %270 = vmatpush1.bf16.msra.mxu0 %v170
  %271 = vmatprep.subr.bf16.mxu0 %v175
  %272 = vmatpush1.bf16.msra.mxu0 %v174
  %273 = vmatprep.subr.bf16.mxu0 %v179
  %274 = vmatpush1.bf16.msra.mxu0 %v178
  %275 = vmatprep.subr.bf16.mxu0 %v183
  %276 = vmatpush1.bf16.msra.mxu0 %v182
  %277 = vmatprep.subr.bf16.mxu0 %v187
  %278 = vmatpush1.bf16.msra.mxu0 %v186
  %279 = vmatprep.subr.bf16.mxu0 %v191
  %280 = vmatpush1.bf16.msra.mxu0 %v190
  %281 = vmatprep.subr.bf16.mxu0 0
  %282 = vmatpush1.bf16.msra.mxu0 0
  %283 = vmatprep.subr.bf16.mxu0 0
  %284 = vmatpush1.bf16.msra.mxu0 0
  %285 = vmatprep.subr.bf16.mxu0 0
  %286 = vmatpush1.bf16.msra.mxu0 0
  %287 = vmatprep.subr.bf16.mxu0 0
  %288 = vmatpush1.bf16.msra.mxu0 0
  %289 = vmatprep.subr.bf16.mxu0 0
  %290 = vmatpush1.bf16.msra.mxu0 0
  %291 = vmatprep.subr.bf16.mxu0 0
  %292 = vmatpush1.bf16.msra.mxu0 0
  %293 = vmatprep.subr.bf16.mxu0 0
  %294 = vmatpush1.bf16.msra.mxu0 0
  %295 = vmatprep.subr.bf16.mxu0 0
  %296 = vmatpush1.bf16.msra.mxu0 0
  %297 = vmatprep.mubr.bf16.mxu0 0
  %298 = vmatmul.mubr.bf16.gmra.mrb[0].mxu0 %v31
  %v299 = vpop.f32.mrb[0].mxu0
  %v300 = vadd.f32 0.0, %v299
  %v301 = vpop.f32.mrb[0].mxu0
  %v302 = vadd.f32 0.0, %v301
  %v303 = vpop.f32.mrb[0].mxu0
  %v304 = vpop.f32.mrb[0].mxu0
  %305 = vdwg.mxu0
  %v306 = vadd.f32 %v27, %v259
  %v307 = vadd.f32 %v28, %v261
  %v308 = vadd.f32 %v29, %v300
  %v309 = vadd.f32 %v30, %v302
  %310 = vst [vmem:[#allocation2] sm:$0xff] %v306
  %311 = vst [vmem:[#allocation2 + $0x8] sm:$0xff] %v307
  %312 = vst [vmem:[#allocation2 + $0x10] sm:$0xff] %v308
  %313 = vst [vmem:[#allocation2 + $0x18] sm:$0xff] %v309
  // Predicated region
  $region22: #{vae_forward.13} parent=0 // pred_check
    %p314 = pneg %p19
  $region23: #{vae_forward.13} parent=0 // pred_check_branch
    %316 = sbr.rel (%p314) target = $region25
  $region24: #{vae_forward.13} parent=0 // pred_region
    %v317 = vld [vmem:[#allocation2] sm:$0xff]
    %v318 = vld [vmem:[#allocation2 + $0x8] sm:$0xff]
    %v319 = vld [vmem:[#allocation2 + $0x10] sm:$0xff]
    %v320 = vld [vmem:[#allocation2 + $0x18] sm:$0xff]
    %v321 = vld [vmem:[%s3] sm:$0xf]
    %v323 = vlaneseq
    %v324 = vshrl.u32 %v323, 7
    %v325 = vsub.s32 0, %v324
    %v326 = vrot.slane %v321, %v325
    %v327 = vlaneseq
    %v328 = vshrl.u32 %v327, 7
    %v329 = vsub.s32 1, %v328
    %v330 = vrot.slane %v321, %v329
    %v331 = vlaneseq
    %v332 = vshrl.u32 %v331, 7
    %v333 = vsub.s32 2, %v332
    %v334 = vrot.slane %v321, %v333
    %v335 = vlaneseq
    %v336 = vshrl.u32 %v335, 7
    %v337 = vsub.s32 3, %v336
    %v338 = vrot.slane %v321, %v337
    %v343 = vadd.f32 %v317, %v326
    %v344 = vadd.f32 %v318, %v330
    %v345 = vadd.f32 %v319, %v334
    %v346 = vadd.f32 %v320, %v338
    %s347 = sld [smem:[#allocation3]]
    %v348 = vstv %s347
    %v349 = vmul.f32 %v343, %v348
    %v350 = vmul.f32 %v344, %v348
    %v351 = vmul.f32 %v345, %v348
    %v352 = vmul.f32 %v346, %v348
    %v353 = vmax.f32 %v349, 0.0
    %v354 = vmax.f32 %v350, 0.0
    %v355 = vmax.f32 %v351, 0.0
    %v356 = vmax.f32 %v352, 0.0
    %357 = vst [vmem:[%s4] sm:$0xff] %v353
    %358 = vst [vmem:[%s4 + $0x8] sm:$0xff] %v354
    %359 = vst [vmem:[%s4 + $0x10] sm:$0xff] %v355
    %360 = vst [vmem:[%s4 + $0x18] sm:$0xff] %v356
  $region25: #{vae_forward.13} parent=0 // pred_fallthru
    _
  // Predicated region
  $region26: #{vae_forward.13} parent=0 // pred_check
    _
  $region27: #{vae_forward.13} parent=0 // pred_check_branch
    %362 = sbr.rel (0) target = $region29
  $region28: #{vae_forward.13} parent=0 // pred_region
    _
  $region29: #{vae_forward.13} parent=0 // pred_fallthru
    _
  // Predicated region
  $region30: #{vae_forward.13} parent=0 // pred_check
    _
  $region31: #{vae_forward.13} parent=0 // pred_check_branch
    %364 = sbr.rel (0) target = $region33
  $region32: #{vae_forward.13} parent=0 // pred_region
    _
  $region33: #{vae_forward.13} parent=0 // pred_fallthru
    _

// kernel: vae_forward.14
$region0: #{vae_forward.14}
  #allocation0 [shape = 'u32[]', space=smem, size = 0x4, offset = 0x4, fixed_abs, tag = 'smem constant byte address 0x4 - core index']
  #allocation1 [shape = 'u32[144,128]{1,0:T(1,128)}', space=vmem, size = 0x12000, scoped, tag = 'internal scratch']
  #allocation2 [shape = 'f32[8,512]{1,0:T(8,128)}', space=vmem, size = 0x4000, scoped, tag = 'scratch operand']
  #allocation3 [shape = 'f32[1]{0:T(128)S(6)}', space=smem, size = 0x200, scoped, tag = 'scoped memory for vae_forward.14']
  %s0 = inlined_call_operand.<no memory space> [shape: f32[1], index: 0, kind: input, shape index: {}]
  %s1 = inlined_call_operand.vmem [shape: bf16[8,512], index: 1, kind: input, shape index: {}]
  %s2 = inlined_call_operand.vmem [shape: bf16[512,512], index: 2, kind: input, shape index: {}]
  %s3 = inlined_call_operand.vmem [shape: f32[1,512], index: 3, kind: input, shape index: {}]
  %s4 = inlined_call_operand.vmem [shape: f32[8,512], index: 4, kind: output, shape index: {}]
  %s5 = sld [smem:[#allocation0]]
  $region34: #{vae_forward.14} parent=0
    _
  %s7 = ssub.s32 1, %s5
  %s8 = scalar_select 0, %s7, %s5
  %9 = sst [smem:[#allocation3]] %s0
  // Predicated region
  $region2: #{vae_forward.14} parent=0 // pred_check
    _
  $region3: #{vae_forward.14} parent=0 // pred_check_branch
    %11 = sbr.rel (0) target = $region5
  $region4: #{vae_forward.14} parent=0 // pred_region
    _
  $region5: #{vae_forward.14} parent=0 // pred_fallthru
    _
  // Predicated region
  $region6: #{vae_forward.14} parent=0 // pred_check
    _
  $region7: #{vae_forward.14} parent=0 // pred_check_branch
    %13 = sbr.rel (0) target = $region9
  $region8: #{vae_forward.14} parent=0 // pred_region
    _
  $region9: #{vae_forward.14} parent=0 // pred_fallthru
    _
  // Predicated region
  $region10: #{vae_forward.14} parent=0 // pred_check
    _
  $region11: #{vae_forward.14} parent=0 // pred_check_branch
    %15 = sbr.rel (0) target = $region13
  $region12: #{vae_forward.14} parent=0 // pred_region
    _
  $region13: #{vae_forward.14} parent=0 // pred_fallthru
    _
  // Predicated region
  $region14: #{vae_forward.14} parent=0 // pred_check
    _
  $region15: #{vae_forward.14} parent=0 // pred_check_branch
    %17 = sbr.rel (0) target = $region17
  $region16: #{vae_forward.14} parent=0 // pred_region
    _
  $region17: #{vae_forward.14} parent=0 // pred_fallthru
    _
  %p18 = scmp.eq.s32.totalorder 0, 0
  // Predicated region
  $region18: #{vae_forward.14} parent=0 // pred_check
    %p19 = pneg %p18
  $region19: #{vae_forward.14} parent=0 // pred_check_branch
    %21 = sbr.rel (%p19) target = $region21
  $region20: #{vae_forward.14} parent=0 // pred_region
    %22 = vst [vmem:[#allocation2] sm:$0xff] 0.0
    %23 = vst [vmem:[#allocation2 + $0x8] sm:$0xff] 0.0
    %24 = vst [vmem:[#allocation2 + $0x10] sm:$0xff] 0.0
    %25 = vst [vmem:[#allocation2 + $0x18] sm:$0xff] 0.0
  $region21: #{vae_forward.14} parent=0 // pred_fallthru
    _
  %v26 = vld [vmem:[#allocation2] sm:$0xff]
  %v27 = vld [vmem:[#allocation2 + $0x8] sm:$0xff]
  %v28 = vld [vmem:[#allocation2 + $0x10] sm:$0xff]
  %v29 = vld [vmem:[#allocation2 + $0x18] sm:$0xff]
  %v30 = vld [vmem:[%s1] sm:$0xff]
  %v31 = vld [vmem:[%s1 + $0x8] sm:$0xff]
  %v32 = vld [vmem:[%s2] sm:$0xff]
  %v33 = vld [vmem:[%s2 + $0x8] sm:$0xff]
  %v34 = vld [vmem:[%s2 + $0x10] sm:$0xff]
  %v35 = vld [vmem:[%s2 + $0x18] sm:$0xff]
  %v36 = vld [vmem:[%s2 + $0x20] sm:$0xff]
  %v37 = vld [vmem:[%s2 + $0x28] sm:$0xff]
  %v38 = vld [vmem:[%s2 + $0x30] sm:$0xff]
  %v39 = vld [vmem:[%s2 + $0x38] sm:$0xff]
  %v40 = vld [vmem:[%s2 + $0x40] sm:$0xff]
  %v41 = vld [vmem:[%s2 + $0x48] sm:$0xff]
  %v42 = vld [vmem:[%s2 + $0x50] sm:$0xff]
  %v43 = vld [vmem:[%s2 + $0x58] sm:$0xff]
  %v44 = vld [vmem:[%s2 + $0x60] sm:$0xff]
  %v45 = vld [vmem:[%s2 + $0x68] sm:$0xff]
  %v46 = vld [vmem:[%s2 + $0x70] sm:$0xff]
  %v47 = vld [vmem:[%s2 + $0x78] sm:$0xff]
  %v48 = vld [vmem:[%s2 + $0x80] sm:$0xff]
  %v49 = vld [vmem:[%s2 + $0x88] sm:$0xff]
  %v50 = vld [vmem:[%s2 + $0x90] sm:$0xff]
  %v51 = vld [vmem:[%s2 + $0x98] sm:$0xff]
  %v52 = vld [vmem:[%s2 + $0xa0] sm:$0xff]
  %v53 = vld [vmem:[%s2 + $0xa8] sm:$0xff]
  %v54 = vld [vmem:[%s2 + $0xb0] sm:$0xff]
  %v55 = vld [vmem:[%s2 + $0xb8] sm:$0xff]
  %v56 = vld [vmem:[%s2 + $0xc0] sm:$0xff]
  %v57 = vld [vmem:[%s2 + $0xc8] sm:$0xff]
  %v58 = vld [vmem:[%s2 + $0xd0] sm:$0xff]
  %v59 = vld [vmem:[%s2 + $0xd8] sm:$0xff]
  %v60 = vld [vmem:[%s2 + $0xe0] sm:$0xff]
  %v61 = vld [vmem:[%s2 + $0xe8] sm:$0xff]
  %v62 = vld [vmem:[%s2 + $0xf0] sm:$0xff]
  %v63 = vld [vmem:[%s2 + $0xf8] sm:$0xff]
  %v64 = vld [vmem:[%s2 + $0x100] sm:$0xff]
  %v65 = vld [vmem:[%s2 + $0x108] sm:$0xff]
  %v66 = vld [vmem:[%s2 + $0x110] sm:$0xff]
  %v67 = vld [vmem:[%s2 + $0x118] sm:$0xff]
  %v68 = vld [vmem:[%s2 + $0x120] sm:$0xff]
  %v69 = vld [vmem:[%s2 + $0x128] sm:$0xff]
  %v70 = vld [vmem:[%s2 + $0x130] sm:$0xff]
  %v71 = vld [vmem:[%s2 + $0x138] sm:$0xff]
  %v72 = vld [vmem:[%s2 + $0x140] sm:$0xff]
  %v73 = vld [vmem:[%s2 + $0x148] sm:$0xff]
  %v74 = vld [vmem:[%s2 + $0x150] sm:$0xff]
  %v75 = vld [vmem:[%s2 + $0x158] sm:$0xff]
  %v76 = vld [vmem:[%s2 + $0x160] sm:$0xff]
  %v77 = vld [vmem:[%s2 + $0x168] sm:$0xff]
  %v78 = vld [vmem:[%s2 + $0x170] sm:$0xff]
  %v79 = vld [vmem:[%s2 + $0x178] sm:$0xff]
  %v80 = vld [vmem:[%s2 + $0x180] sm:$0xff]
  %v81 = vld [vmem:[%s2 + $0x188] sm:$0xff]
  %v82 = vld [vmem:[%s2 + $0x190] sm:$0xff]
  %v83 = vld [vmem:[%s2 + $0x198] sm:$0xff]
  %v84 = vld [vmem:[%s2 + $0x1a0] sm:$0xff]
  %v85 = vld [vmem:[%s2 + $0x1a8] sm:$0xff]
  %v86 = vld [vmem:[%s2 + $0x1b0] sm:$0xff]
  %v87 = vld [vmem:[%s2 + $0x1b8] sm:$0xff]
  %v88 = vld [vmem:[%s2 + $0x1c0] sm:$0xff]
  %v89 = vld [vmem:[%s2 + $0x1c8] sm:$0xff]
  %v90 = vld [vmem:[%s2 + $0x1d0] sm:$0xff]
  %v91 = vld [vmem:[%s2 + $0x1d8] sm:$0xff]
  %v92 = vld [vmem:[%s2 + $0x1e0] sm:$0xff]
  %v93 = vld [vmem:[%s2 + $0x1e8] sm:$0xff]
  %v94 = vld [vmem:[%s2 + $0x1f0] sm:$0xff]
  %v95 = vld [vmem:[%s2 + $0x1f8] sm:$0xff]
  %v96 = vld [vmem:[%s2 + $0x200] sm:$0xff]
  %v97 = vld [vmem:[%s2 + $0x208] sm:$0xff]
  %v98 = vld [vmem:[%s2 + $0x210] sm:$0xff]
  %v99 = vld [vmem:[%s2 + $0x218] sm:$0xff]
  %v100 = vld [vmem:[%s2 + $0x220] sm:$0xff]
  %v101 = vld [vmem:[%s2 + $0x228] sm:$0xff]
  %v102 = vld [vmem:[%s2 + $0x230] sm:$0xff]
  %v103 = vld [vmem:[%s2 + $0x238] sm:$0xff]
  %v104 = vld [vmem:[%s2 + $0x240] sm:$0xff]
  %v105 = vld [vmem:[%s2 + $0x248] sm:$0xff]
  %v106 = vld [vmem:[%s2 + $0x250] sm:$0xff]
  %v107 = vld [vmem:[%s2 + $0x258] sm:$0xff]
  %v108 = vld [vmem:[%s2 + $0x260] sm:$0xff]
  %v109 = vld [vmem:[%s2 + $0x268] sm:$0xff]
  %v110 = vld [vmem:[%s2 + $0x270] sm:$0xff]
  %v111 = vld [vmem:[%s2 + $0x278] sm:$0xff]
  %v112 = vld [vmem:[%s2 + $0x280] sm:$0xff]
  %v113 = vld [vmem:[%s2 + $0x288] sm:$0xff]
  %v114 = vld [vmem:[%s2 + $0x290] sm:$0xff]
  %v115 = vld [vmem:[%s2 + $0x298] sm:$0xff]
  %v116 = vld [vmem:[%s2 + $0x2a0] sm:$0xff]
  %v117 = vld [vmem:[%s2 + $0x2a8] sm:$0xff]
  %v118 = vld [vmem:[%s2 + $0x2b0] sm:$0xff]
  %v119 = vld [vmem:[%s2 + $0x2b8] sm:$0xff]
  %v120 = vld [vmem:[%s2 + $0x2c0] sm:$0xff]
  %v121 = vld [vmem:[%s2 + $0x2c8] sm:$0xff]
  %v122 = vld [vmem:[%s2 + $0x2d0] sm:$0xff]
  %v123 = vld [vmem:[%s2 + $0x2d8] sm:$0xff]
  %v124 = vld [vmem:[%s2 + $0x2e0] sm:$0xff]
  %v125 = vld [vmem:[%s2 + $0x2e8] sm:$0xff]
  %v126 = vld [vmem:[%s2 + $0x2f0] sm:$0xff]
  %v127 = vld [vmem:[%s2 + $0x2f8] sm:$0xff]
  %v128 = vld [vmem:[%s2 + $0x300] sm:$0xff]
  %v129 = vld [vmem:[%s2 + $0x308] sm:$0xff]
  %v130 = vld [vmem:[%s2 + $0x310] sm:$0xff]
  %v131 = vld [vmem:[%s2 + $0x318] sm:$0xff]
  %v132 = vld [vmem:[%s2 + $0x320] sm:$0xff]
  %v133 = vld [vmem:[%s2 + $0x328] sm:$0xff]
  %v134 = vld [vmem:[%s2 + $0x330] sm:$0xff]
  %v135 = vld [vmem:[%s2 + $0x338] sm:$0xff]
  %v136 = vld [vmem:[%s2 + $0x340] sm:$0xff]
  %v137 = vld [vmem:[%s2 + $0x348] sm:$0xff]
  %v138 = vld [vmem:[%s2 + $0x350] sm:$0xff]
  %v139 = vld [vmem:[%s2 + $0x358] sm:$0xff]
  %v140 = vld [vmem:[%s2 + $0x360] sm:$0xff]
  %v141 = vld [vmem:[%s2 + $0x368] sm:$0xff]
  %v142 = vld [vmem:[%s2 + $0x370] sm:$0xff]
  %v143 = vld [vmem:[%s2 + $0x378] sm:$0xff]
  %v144 = vld [vmem:[%s2 + $0x380] sm:$0xff]
  %v145 = vld [vmem:[%s2 + $0x388] sm:$0xff]
  %v146 = vld [vmem:[%s2 + $0x390] sm:$0xff]
  %v147 = vld [vmem:[%s2 + $0x398] sm:$0xff]
  %v148 = vld [vmem:[%s2 + $0x3a0] sm:$0xff]
  %v149 = vld [vmem:[%s2 + $0x3a8] sm:$0xff]
  %v150 = vld [vmem:[%s2 + $0x3b0] sm:$0xff]
  %v151 = vld [vmem:[%s2 + $0x3b8] sm:$0xff]
  %v152 = vld [vmem:[%s2 + $0x3c0] sm:$0xff]
  %v153 = vld [vmem:[%s2 + $0x3c8] sm:$0xff]
  %v154 = vld [vmem:[%s2 + $0x3d0] sm:$0xff]
  %v155 = vld [vmem:[%s2 + $0x3d8] sm:$0xff]
  %v156 = vld [vmem:[%s2 + $0x3e0] sm:$0xff]
  %v157 = vld [vmem:[%s2 + $0x3e8] sm:$0xff]
  %v158 = vld [vmem:[%s2 + $0x3f0] sm:$0xff]
  %v159 = vld [vmem:[%s2 + $0x3f8] sm:$0xff]
  %v162 = vunpack.c.l.b16 %v30
  %v163 = vunpack.c.h.b16 %v30
  %v164 = vunpack.c.l.b16 %v31
  %v165 = vunpack.c.h.b16 %v31
  %v166 = vpack.c.b16 %v162, %v162
  %v167 = vpack.c.b16 %v163, %v163
  %v168 = vpack.c.b16 %v164, %v164
  %v169 = vpack.c.b16 %v165, %v165
  %v302 = vunpack.c.l.b16 %v32
  %v303 = vunpack.c.h.b16 %v32
  %v304 = vunpack.c.l.b16 %v33
  %v305 = vunpack.c.h.b16 %v33
  %v306 = vunpack.c.l.b16 %v34
  %v307 = vunpack.c.h.b16 %v34
  %v308 = vunpack.c.l.b16 %v35
  %v309 = vunpack.c.h.b16 %v35
  %v310 = vunpack.c.l.b16 %v36
  %v311 = vunpack.c.h.b16 %v36
  %v312 = vunpack.c.l.b16 %v37
  %v313 = vunpack.c.h.b16 %v37
  %v314 = vunpack.c.l.b16 %v38
  %v315 = vunpack.c.h.b16 %v38
  %v316 = vunpack.c.l.b16 %v39
  %v317 = vunpack.c.h.b16 %v39
  %v318 = vunpack.c.l.b16 %v40
  %v319 = vunpack.c.h.b16 %v40
  %v320 = vunpack.c.l.b16 %v41
  %v321 = vunpack.c.h.b16 %v41
  %v322 = vunpack.c.l.b16 %v42
  %v323 = vunpack.c.h.b16 %v42
  %v324 = vunpack.c.l.b16 %v43
  %v325 = vunpack.c.h.b16 %v43
  %v326 = vunpack.c.l.b16 %v44
  %v327 = vunpack.c.h.b16 %v44
  %v328 = vunpack.c.l.b16 %v45
  %v329 = vunpack.c.h.b16 %v45
  %v330 = vunpack.c.l.b16 %v46
  %v331 = vunpack.c.h.b16 %v46
  %v332 = vunpack.c.l.b16 %v47
  %v333 = vunpack.c.h.b16 %v47
  %v334 = vunpack.c.l.b16 %v48
  %v335 = vunpack.c.h.b16 %v48
  %v336 = vunpack.c.l.b16 %v49
  %v337 = vunpack.c.h.b16 %v49
  %v338 = vunpack.c.l.b16 %v50
  %v339 = vunpack.c.h.b16 %v50
  %v340 = vunpack.c.l.b16 %v51
  %v341 = vunpack.c.h.b16 %v51
  %v342 = vunpack.c.l.b16 %v52
  %v343 = vunpack.c.h.b16 %v52
  %v344 = vunpack.c.l.b16 %v53
  %v345 = vunpack.c.h.b16 %v53
  %v346 = vunpack.c.l.b16 %v54
  %v347 = vunpack.c.h.b16 %v54
  %v348 = vunpack.c.l.b16 %v55
  %v349 = vunpack.c.h.b16 %v55
  %v350 = vunpack.c.l.b16 %v56
  %v351 = vunpack.c.h.b16 %v56
  %v352 = vunpack.c.l.b16 %v57
  %v353 = vunpack.c.h.b16 %v57
  %v354 = vunpack.c.l.b16 %v58
  %v355 = vunpack.c.h.b16 %v58
  %v356 = vunpack.c.l.b16 %v59
  %v357 = vunpack.c.h.b16 %v59
  %v358 = vunpack.c.l.b16 %v60
  %v359 = vunpack.c.h.b16 %v60
  %v360 = vunpack.c.l.b16 %v61
  %v361 = vunpack.c.h.b16 %v61
  %v362 = vunpack.c.l.b16 %v62
  %v363 = vunpack.c.h.b16 %v62
  %v364 = vunpack.c.l.b16 %v63
  %v365 = vunpack.c.h.b16 %v63
  %v366 = vunpack.c.l.b16 %v64
  %v367 = vunpack.c.h.b16 %v64
  %v368 = vunpack.c.l.b16 %v65
  %v369 = vunpack.c.h.b16 %v65
  %v370 = vunpack.c.l.b16 %v66
  %v371 = vunpack.c.h.b16 %v66
  %v372 = vunpack.c.l.b16 %v67
  %v373 = vunpack.c.h.b16 %v67
  %v374 = vunpack.c.l.b16 %v68
  %v375 = vunpack.c.h.b16 %v68
  %v376 = vunpack.c.l.b16 %v69
  %v377 = vunpack.c.h.b16 %v69
  %v378 = vunpack.c.l.b16 %v70
  %v379 = vunpack.c.h.b16 %v70
  %v380 = vunpack.c.l.b16 %v71
  %v381 = vunpack.c.h.b16 %v71
  %v382 = vunpack.c.l.b16 %v72
  %v383 = vunpack.c.h.b16 %v72
  %v384 = vunpack.c.l.b16 %v73
  %v385 = vunpack.c.h.b16 %v73
  %v386 = vunpack.c.l.b16 %v74
  %v387 = vunpack.c.h.b16 %v74
  %v388 = vunpack.c.l.b16 %v75
  %v389 = vunpack.c.h.b16 %v75
  %v390 = vunpack.c.l.b16 %v76
  %v391 = vunpack.c.h.b16 %v76
  %v392 = vunpack.c.l.b16 %v77
  %v393 = vunpack.c.h.b16 %v77
  %v394 = vunpack.c.l.b16 %v78
  %v395 = vunpack.c.h.b16 %v78
  %v396 = vunpack.c.l.b16 %v79
  %v397 = vunpack.c.h.b16 %v79
  %v398 = vunpack.c.l.b16 %v80
  %v399 = vunpack.c.h.b16 %v80
  %v400 = vunpack.c.l.b16 %v81
  %v401 = vunpack.c.h.b16 %v81
  %v402 = vunpack.c.l.b16 %v82
  %v403 = vunpack.c.h.b16 %v82
  %v404 = vunpack.c.l.b16 %v83
  %v405 = vunpack.c.h.b16 %v83
  %v406 = vunpack.c.l.b16 %v84
  %v407 = vunpack.c.h.b16 %v84
  %v408 = vunpack.c.l.b16 %v85
  %v409 = vunpack.c.h.b16 %v85
  %v410 = vunpack.c.l.b16 %v86
  %v411 = vunpack.c.h.b16 %v86
  %v412 = vunpack.c.l.b16 %v87
  %v413 = vunpack.c.h.b16 %v87
  %v414 = vunpack.c.l.b16 %v88
  %v415 = vunpack.c.h.b16 %v88
  %v416 = vunpack.c.l.b16 %v89
  %v417 = vunpack.c.h.b16 %v89
  %v418 = vunpack.c.l.b16 %v90
  %v419 = vunpack.c.h.b16 %v90
  %v420 = vunpack.c.l.b16 %v91
  %v421 = vunpack.c.h.b16 %v91
  %v422 = vunpack.c.l.b16 %v92
  %v423 = vunpack.c.h.b16 %v92
  %v424 = vunpack.c.l.b16 %v93
  %v425 = vunpack.c.h.b16 %v93
  %v426 = vunpack.c.l.b16 %v94
  %v427 = vunpack.c.h.b16 %v94
  %v428 = vunpack.c.l.b16 %v95
  %v429 = vunpack.c.h.b16 %v95
  %v430 = vunpack.c.l.b16 %v96
  %v431 = vunpack.c.h.b16 %v96
  %v432 = vunpack.c.l.b16 %v97
  %v433 = vunpack.c.h.b16 %v97
  %v434 = vunpack.c.l.b16 %v98
  %v435 = vunpack.c.h.b16 %v98
  %v436 = vunpack.c.l.b16 %v99
  %v437 = vunpack.c.h.b16 %v99
  %v438 = vunpack.c.l.b16 %v100
  %v439 = vunpack.c.h.b16 %v100
  %v440 = vunpack.c.l.b16 %v101
  %v441 = vunpack.c.h.b16 %v101
  %v442 = vunpack.c.l.b16 %v102
  %v443 = vunpack.c.h.b16 %v102
  %v444 = vunpack.c.l.b16 %v103
  %v445 = vunpack.c.h.b16 %v103
  %v446 = vunpack.c.l.b16 %v104
  %v447 = vunpack.c.h.b16 %v104
  %v448 = vunpack.c.l.b16 %v105
  %v449 = vunpack.c.h.b16 %v105
  %v450 = vunpack.c.l.b16 %v106
  %v451 = vunpack.c.h.b16 %v106
  %v452 = vunpack.c.l.b16 %v107
  %v453 = vunpack.c.h.b16 %v107
  %v454 = vunpack.c.l.b16 %v108
  %v455 = vunpack.c.h.b16 %v108
  %v456 = vunpack.c.l.b16 %v109
  %v457 = vunpack.c.h.b16 %v109
  %v458 = vunpack.c.l.b16 %v110
  %v459 = vunpack.c.h.b16 %v110
  %v460 = vunpack.c.l.b16 %v111
  %v461 = vunpack.c.h.b16 %v111
  %v462 = vunpack.c.l.b16 %v112
  %v463 = vunpack.c.h.b16 %v112
  %v464 = vunpack.c.l.b16 %v113
  %v465 = vunpack.c.h.b16 %v113
  %v466 = vunpack.c.l.b16 %v114
  %v467 = vunpack.c.h.b16 %v114
  %v468 = vunpack.c.l.b16 %v115
  %v469 = vunpack.c.h.b16 %v115
  %v470 = vunpack.c.l.b16 %v116
  %v471 = vunpack.c.h.b16 %v116
  %v472 = vunpack.c.l.b16 %v117
  %v473 = vunpack.c.h.b16 %v117
  %v474 = vunpack.c.l.b16 %v118
  %v475 = vunpack.c.h.b16 %v118
  %v476 = vunpack.c.l.b16 %v119
  %v477 = vunpack.c.h.b16 %v119
  %v478 = vunpack.c.l.b16 %v120
  %v479 = vunpack.c.h.b16 %v120
  %v480 = vunpack.c.l.b16 %v121
  %v481 = vunpack.c.h.b16 %v121
  %v482 = vunpack.c.l.b16 %v122
  %v483 = vunpack.c.h.b16 %v122
  %v484 = vunpack.c.l.b16 %v123
  %v485 = vunpack.c.h.b16 %v123
  %v486 = vunpack.c.l.b16 %v124
  %v487 = vunpack.c.h.b16 %v124
  %v488 = vunpack.c.l.b16 %v125
  %v489 = vunpack.c.h.b16 %v125
  %v490 = vunpack.c.l.b16 %v126
  %v491 = vunpack.c.h.b16 %v126
  %v492 = vunpack.c.l.b16 %v127
  %v493 = vunpack.c.h.b16 %v127
  %v494 = vunpack.c.l.b16 %v128
  %v495 = vunpack.c.h.b16 %v128
  %v496 = vunpack.c.l.b16 %v129
  %v497 = vunpack.c.h.b16 %v129
  %v498 = vunpack.c.l.b16 %v130
  %v499 = vunpack.c.h.b16 %v130
  %v500 = vunpack.c.l.b16 %v131
  %v501 = vunpack.c.h.b16 %v131
  %v502 = vunpack.c.l.b16 %v132
  %v503 = vunpack.c.h.b16 %v132
  %v504 = vunpack.c.l.b16 %v133
  %v505 = vunpack.c.h.b16 %v133
  %v506 = vunpack.c.l.b16 %v134
  %v507 = vunpack.c.h.b16 %v134
  %v508 = vunpack.c.l.b16 %v135
  %v509 = vunpack.c.h.b16 %v135
  %v510 = vunpack.c.l.b16 %v136
  %v511 = vunpack.c.h.b16 %v136
  %v512 = vunpack.c.l.b16 %v137
  %v513 = vunpack.c.h.b16 %v137
  %v514 = vunpack.c.l.b16 %v138
  %v515 = vunpack.c.h.b16 %v138
  %v516 = vunpack.c.l.b16 %v139
  %v517 = vunpack.c.h.b16 %v139
  %v518 = vunpack.c.l.b16 %v140
  %v519 = vunpack.c.h.b16 %v140
  %v520 = vunpack.c.l.b16 %v141
  %v521 = vunpack.c.h.b16 %v141
  %v522 = vunpack.c.l.b16 %v142
  %v523 = vunpack.c.h.b16 %v142
  %v524 = vunpack.c.l.b16 %v143
  %v525 = vunpack.c.h.b16 %v143
  %v526 = vunpack.c.l.b16 %v144
  %v527 = vunpack.c.h.b16 %v144
  %v528 = vunpack.c.l.b16 %v145
  %v529 = vunpack.c.h.b16 %v145
  %v530 = vunpack.c.l.b16 %v146
  %v531 = vunpack.c.h.b16 %v146
  %v532 = vunpack.c.l.b16 %v147
  %v533 = vunpack.c.h.b16 %v147
  %v534 = vunpack.c.l.b16 %v148
  %v535 = vunpack.c.h.b16 %v148
  %v536 = vunpack.c.l.b16 %v149
  %v537 = vunpack.c.h.b16 %v149
  %v538 = vunpack.c.l.b16 %v150
  %v539 = vunpack.c.h.b16 %v150
  %v540 = vunpack.c.l.b16 %v151
  %v541 = vunpack.c.h.b16 %v151
  %v542 = vunpack.c.l.b16 %v152
  %v543 = vunpack.c.h.b16 %v152
  %v544 = vunpack.c.l.b16 %v153
  %v545 = vunpack.c.h.b16 %v153
  %v546 = vunpack.c.l.b16 %v154
  %v547 = vunpack.c.h.b16 %v154
  %v548 = vunpack.c.l.b16 %v155
  %v549 = vunpack.c.h.b16 %v155
  %v550 = vunpack.c.l.b16 %v156
  %v551 = vunpack.c.h.b16 %v156
  %v552 = vunpack.c.l.b16 %v157
  %v553 = vunpack.c.h.b16 %v157
  %v554 = vunpack.c.l.b16 %v158
  %v555 = vunpack.c.h.b16 %v158
  %v556 = vunpack.c.l.b16 %v159
  %v557 = vunpack.c.h.b16 %v159
  %v558 = vpack.c.b16 %v306, %v302
  %v559 = vpack.c.b16 %v307, %v303
  %v560 = vpack.c.b16 %v308, %v304
  %v561 = vpack.c.b16 %v309, %v305
  %v562 = vpack.c.b16 %v314, %v310
  %v563 = vpack.c.b16 %v315, %v311
  %v564 = vpack.c.b16 %v316, %v312
  %v565 = vpack.c.b16 %v317, %v313
  %v566 = vpack.c.b16 %v322, %v318
  %v567 = vpack.c.b16 %v323, %v319
  %v568 = vpack.c.b16 %v324, %v320
  %v569 = vpack.c.b16 %v325, %v321
  %v570 = vpack.c.b16 %v330, %v326
  %v571 = vpack.c.b16 %v331, %v327
  %v572 = vpack.c.b16 %v332, %v328
  %v573 = vpack.c.b16 %v333, %v329
  %v574 = vpack.c.b16 %v338, %v334
  %v575 = vpack.c.b16 %v339, %v335
  %v576 = vpack.c.b16 %v340, %v336
  %v577 = vpack.c.b16 %v341, %v337
  %v578 = vpack.c.b16 %v346, %v342
  %v579 = vpack.c.b16 %v347, %v343
  %v580 = vpack.c.b16 %v348, %v344
  %v581 = vpack.c.b16 %v349, %v345
  %v582 = vpack.c.b16 %v354, %v350
  %v583 = vpack.c.b16 %v355, %v351
  %v584 = vpack.c.b16 %v356, %v352
  %v585 = vpack.c.b16 %v357, %v353
  %v586 = vpack.c.b16 %v362, %v358
  %v587 = vpack.c.b16 %v363, %v359
  %v588 = vpack.c.b16 %v364, %v360
  %v589 = vpack.c.b16 %v365, %v361
  %v590 = vpack.c.b16 %v370, %v366
  %v591 = vpack.c.b16 %v371, %v367
  %v592 = vpack.c.b16 %v372, %v368
  %v593 = vpack.c.b16 %v373, %v369
  %v594 = vpack.c.b16 %v378, %v374
  %v595 = vpack.c.b16 %v379, %v375
  %v596 = vpack.c.b16 %v380, %v376
  %v597 = vpack.c.b16 %v381, %v377
  %v598 = vpack.c.b16 %v386, %v382
  %v599 = vpack.c.b16 %v387, %v383
  %v600 = vpack.c.b16 %v388, %v384
  %v601 = vpack.c.b16 %v389, %v385
  %v602 = vpack.c.b16 %v394, %v390
  %v603 = vpack.c.b16 %v395, %v391
  %v604 = vpack.c.b16 %v396, %v392
  %v605 = vpack.c.b16 %v397, %v393
  %v606 = vpack.c.b16 %v402, %v398
  %v607 = vpack.c.b16 %v403, %v399
  %v608 = vpack.c.b16 %v404, %v400
  %v609 = vpack.c.b16 %v405, %v401
  %v610 = vpack.c.b16 %v410, %v406
  %v611 = vpack.c.b16 %v411, %v407
  %v612 = vpack.c.b16 %v412, %v408
  %v613 = vpack.c.b16 %v413, %v409
  %v614 = vpack.c.b16 %v418, %v414
  %v615 = vpack.c.b16 %v419, %v415
  %v616 = vpack.c.b16 %v420, %v416
  %v617 = vpack.c.b16 %v421, %v417
  %v618 = vpack.c.b16 %v426, %v422
  %v619 = vpack.c.b16 %v427, %v423
  %v620 = vpack.c.b16 %v428, %v424
  %v621 = vpack.c.b16 %v429, %v425
  %v622 = vpack.c.b16 %v434, %v430
  %v623 = vpack.c.b16 %v435, %v431
  %v624 = vpack.c.b16 %v436, %v432
  %v625 = vpack.c.b16 %v437, %v433
  %v626 = vpack.c.b16 %v442, %v438
  %v627 = vpack.c.b16 %v443, %v439
  %v628 = vpack.c.b16 %v444, %v440
  %v629 = vpack.c.b16 %v445, %v441
  %v630 = vpack.c.b16 %v450, %v446
  %v631 = vpack.c.b16 %v451, %v447
  %v632 = vpack.c.b16 %v452, %v448
  %v633 = vpack.c.b16 %v453, %v449
  %v634 = vpack.c.b16 %v458, %v454
  %v635 = vpack.c.b16 %v459, %v455
  %v636 = vpack.c.b16 %v460, %v456
  %v637 = vpack.c.b16 %v461, %v457
  %v638 = vpack.c.b16 %v466, %v462
  %v639 = vpack.c.b16 %v467, %v463
  %v640 = vpack.c.b16 %v468, %v464
  %v641 = vpack.c.b16 %v469, %v465
  %v642 = vpack.c.b16 %v474, %v470
  %v643 = vpack.c.b16 %v475, %v471
  %v644 = vpack.c.b16 %v476, %v472
  %v645 = vpack.c.b16 %v477, %v473
  %v646 = vpack.c.b16 %v482, %v478
  %v647 = vpack.c.b16 %v483, %v479
  %v648 = vpack.c.b16 %v484, %v480
  %v649 = vpack.c.b16 %v485, %v481
  %v650 = vpack.c.b16 %v490, %v486
  %v651 = vpack.c.b16 %v491, %v487
  %v652 = vpack.c.b16 %v492, %v488
  %v653 = vpack.c.b16 %v493, %v489
  %v654 = vpack.c.b16 %v498, %v494
  %v655 = vpack.c.b16 %v499, %v495
  %v656 = vpack.c.b16 %v500, %v496
  %v657 = vpack.c.b16 %v501, %v497
  %v658 = vpack.c.b16 %v506, %v502
  %v659 = vpack.c.b16 %v507, %v503
  %v660 = vpack.c.b16 %v508, %v504
  %v661 = vpack.c.b16 %v509, %v505
  %v662 = vpack.c.b16 %v514, %v510
  %v663 = vpack.c.b16 %v515, %v511
  %v664 = vpack.c.b16 %v516, %v512
  %v665 = vpack.c.b16 %v517, %v513
  %v666 = vpack.c.b16 %v522, %v518
  %v667 = vpack.c.b16 %v523, %v519
  %v668 = vpack.c.b16 %v524, %v520
  %v669 = vpack.c.b16 %v525, %v521
  %v670 = vpack.c.b16 %v530, %v526
  %v671 = vpack.c.b16 %v531, %v527
  %v672 = vpack.c.b16 %v532, %v528
  %v673 = vpack.c.b16 %v533, %v529
  %v674 = vpack.c.b16 %v538, %v534
  %v675 = vpack.c.b16 %v539, %v535
  %v676 = vpack.c.b16 %v540, %v536
  %v677 = vpack.c.b16 %v541, %v537
  %v678 = vpack.c.b16 %v546, %v542
  %v679 = vpack.c.b16 %v547, %v543
  %v680 = vpack.c.b16 %v548, %v544
  %v681 = vpack.c.b16 %v549, %v545
  %v682 = vpack.c.b16 %v554, %v550
  %v683 = vpack.c.b16 %v555, %v551
  %v684 = vpack.c.b16 %v556, %v552
  %v685 = vpack.c.b16 %v557, %v553
  %814 = vmatprep.subr.bf16.mxu0 %v559
  %815 = vmatpush1.bf16.msra.mxu0 %v558
  %816 = vmatprep.subr.bf16.mxu0 %v563
  %817 = vmatpush1.bf16.msra.mxu0 %v562
  %818 = vmatprep.subr.bf16.mxu0 %v567
  %819 = vmatpush1.bf16.msra.mxu0 %v566
  %820 = vmatprep.subr.bf16.mxu0 %v571
  %821 = vmatpush1.bf16.msra.mxu0 %v570
  %822 = vmatprep.subr.bf16.mxu0 %v575
  %823 = vmatpush1.bf16.msra.mxu0 %v574
  %824 = vmatprep.subr.bf16.mxu0 %v579
  %825 = vmatpush1.bf16.msra.mxu0 %v578
  %826 = vmatprep.subr.bf16.mxu0 %v583
  %827 = vmatpush1.bf16.msra.mxu0 %v582
  %828 = vmatprep.subr.bf16.mxu0 %v587
  %829 = vmatpush1.bf16.msra.mxu0 %v586
  %830 = vmatprep.subr.bf16.mxu0 %v591
  %831 = vmatpush1.bf16.msra.mxu0 %v590
  %832 = vmatprep.subr.bf16.mxu0 %v595
  %833 = vmatpush1.bf16.msra.mxu0 %v594
  %834 = vmatprep.subr.bf16.mxu0 %v599
  %835 = vmatpush1.bf16.msra.mxu0 %v598
  %836 = vmatprep.subr.bf16.mxu0 %v603
  %837 = vmatpush1.bf16.msra.mxu0 %v602
  %838 = vmatprep.subr.bf16.mxu0 %v607
  %839 = vmatpush1.bf16.msra.mxu0 %v606
  %840 = vmatprep.subr.bf16.mxu0 %v611
  %841 = vmatpush1.bf16.msra.mxu0 %v610
  %842 = vmatprep.subr.bf16.mxu0 %v615
  %843 = vmatpush1.bf16.msra.mxu0 %v614
  %844 = vmatprep.subr.bf16.mxu0 %v619
  %845 = vmatpush1.bf16.msra.mxu0 %v618
  %846 = vmatprep.mubr.bf16.mxu0 %v167
  %847 = vmatmul.mubr.bf16.gmra.mrb[0].mxu0 %v166
  %v848 = vpop.f32.mrb[0].mxu0
  %v849 = vadd.f32 0.0, %v848
  %v850 = vpop.f32.mrb[0].mxu0
  %v851 = vadd.f32 0.0, %v850
  %v852 = vpop.f32.mrb[0].mxu0
  %v853 = vpop.f32.mrb[0].mxu0
  %854 = vdwg.mxu0
  %855 = vmatprep.subr.bf16.mxu0 %v623
  %856 = vmatpush1.bf16.msra.mxu0 %v622
  %857 = vmatprep.subr.bf16.mxu0 %v627
  %858 = vmatpush1.bf16.msra.mxu0 %v626
  %859 = vmatprep.subr.bf16.mxu0 %v631
  %860 = vmatpush1.bf16.msra.mxu0 %v630
  %861 = vmatprep.subr.bf16.mxu0 %v635
  %862 = vmatpush1.bf16.msra.mxu0 %v634
  %863 = vmatprep.subr.bf16.mxu0 %v639
  %864 = vmatpush1.bf16.msra.mxu0 %v638
  %865 = vmatprep.subr.bf16.mxu0 %v643
  %866 = vmatpush1.bf16.msra.mxu0 %v642
  %867 = vmatprep.subr.bf16.mxu0 %v647
  %868 = vmatpush1.bf16.msra.mxu0 %v646
  %869 = vmatprep.subr.bf16.mxu0 %v651
  %870 = vmatpush1.bf16.msra.mxu0 %v650
  %871 = vmatprep.subr.bf16.mxu0 %v655
  %872 = vmatpush1.bf16.msra.mxu0 %v654
  %873 = vmatprep.subr.bf16.mxu0 %v659
  %874 = vmatpush1.bf16.msra.mxu0 %v658
  %875 = vmatprep.subr.bf16.mxu0 %v663
  %876 = vmatpush1.bf16.msra.mxu0 %v662
  %877 = vmatprep.subr.bf16.mxu0 %v667
  %878 = vmatpush1.bf16.msra.mxu0 %v666
  %879 = vmatprep.subr.bf16.mxu0 %v671
  %880 = vmatpush1.bf16.msra.mxu0 %v670
  %881 = vmatprep.subr.bf16.mxu0 %v675
  %882 = vmatpush1.bf16.msra.mxu0 %v674
  %883 = vmatprep.subr.bf16.mxu0 %v679
  %884 = vmatpush1.bf16.msra.mxu0 %v678
  %885 = vmatprep.subr.bf16.mxu0 %v683
  %886 = vmatpush1.bf16.msra.mxu0 %v682
  %887 = vmatprep.mubr.bf16.mxu0 %v169
  %888 = vmatmul.mubr.bf16.gmra.mrb[0].mxu0 %v168
  %v889 = vpop.f32.mrb[0].mxu0
  %v890 = vadd.f32 %v849, %v889
  %v891 = vpop.f32.mrb[0].mxu0
  %v892 = vadd.f32 %v851, %v891
  %v893 = vpop.f32.mrb[0].mxu0
  %v894 = vpop.f32.mrb[0].mxu0
  %895 = vdwg.mxu0
  %896 = vmatprep.subr.bf16.mxu0 %v561
  %897 = vmatpush1.bf16.msra.mxu0 %v560
  %898 = vmatprep.subr.bf16.mxu0 %v565
  %899 = vmatpush1.bf16.msra.mxu0 %v564
  %900 = vmatprep.subr.bf16.mxu0 %v569
  %901 = vmatpush1.bf16.msra.mxu0 %v568
  %902 = vmatprep.subr.bf16.mxu0 %v573
  %903 = vmatpush1.bf16.msra.mxu0 %v572
  %904 = vmatprep.subr.bf16.mxu0 %v577
  %905 = vmatpush1.bf16.msra.mxu0 %v576
  %906 = vmatprep.subr.bf16.mxu0 %v581
  %907 = vmatpush1.bf16.msra.mxu0 %v580
  %908 = vmatprep.subr.bf16.mxu0 %v585
  %909 = vmatpush1.bf16.msra.mxu0 %v584
  %910 = vmatprep.subr.bf16.mxu0 %v589
  %911 = vmatpush1.bf16.msra.mxu0 %v588
  %912 = vmatprep.subr.bf16.mxu0 %v593
  %913 = vmatpush1.bf16.msra.mxu0 %v592
  %914 = vmatprep.subr.bf16.mxu0 %v597
  %915 = vmatpush1.bf16.msra.mxu0 %v596
  %916 = vmatprep.subr.bf16.mxu0 %v601
  %917 = vmatpush1.bf16.msra.mxu0 %v600
  %918 = vmatprep.subr.bf16.mxu0 %v605
  %919 = vmatpush1.bf16.msra.mxu0 %v604
  %920 = vmatprep.subr.bf16.mxu0 %v609
  %921 = vmatpush1.bf16.msra.mxu0 %v608
  %922 = vmatprep.subr.bf16.mxu0 %v613
  %923 = vmatpush1.bf16.msra.mxu0 %v612
  %924 = vmatprep.subr.bf16.mxu0 %v617
  %925 = vmatpush1.bf16.msra.mxu0 %v616
  %926 = vmatprep.subr.bf16.mxu0 %v621
  %927 = vmatpush1.bf16.msra.mxu0 %v620
  %928 = vmatprep.mubr.bf16.mxu0 %v167
  %929 = vmatmul.mubr.bf16.gmra.mrb[0].mxu0 %v166
  %v930 = vpop.f32.mrb[0].mxu0
  %v931 = vadd.f32 0.0, %v930
  %v932 = vpop.f32.mrb[0].mxu0
  %v933 = vadd.f32 0.0, %v932
  %v934 = vpop.f32.mrb[0].mxu0
  %v935 = vpop.f32.mrb[0].mxu0
  %936 = vdwg.mxu0
  %937 = vmatprep.subr.bf16.mxu0 %v625
  %938 = vmatpush1.bf16.msra.mxu0 %v624
  %939 = vmatprep.subr.bf16.mxu0 %v629
  %940 = vmatpush1.bf16.msra.mxu0 %v628
  %941 = vmatprep.subr.bf16.mxu0 %v633
  %942 = vmatpush1.bf16.msra.mxu0 %v632
  %943 = vmatprep.subr.bf16.mxu0 %v637
  %944 = vmatpush1.bf16.msra.mxu0 %v636
  %945 = vmatprep.subr.bf16.mxu0 %v641
  %946 = vmatpush1.bf16.msra.mxu0 %v640
  %947 = vmatprep.subr.bf16.mxu0 %v645
  %948 = vmatpush1.bf16.msra.mxu0 %v644
  %949 = vmatprep.subr.bf16.mxu0 %v649
  %950 = vmatpush1.bf16.msra.mxu0 %v648
  %951 = vmatprep.subr.bf16.mxu0 %v653
  %952 = vmatpush1.bf16.msra.mxu0 %v652
  %953 = vmatprep.subr.bf16.mxu0 %v657
  %954 = vmatpush1.bf16.msra.mxu0 %v656
  %955 = vmatprep.subr.bf16.mxu0 %v661
  %956 = vmatpush1.bf16.msra.mxu0 %v660
  %957 = vmatprep.subr.bf16.mxu0 %v665
  %958 = vmatpush1.bf16.msra.mxu0 %v664
  %959 = vmatprep.subr.bf16.mxu0 %v669
  %960 = vmatpush1.bf16.msra.mxu0 %v668
  %961 = vmatprep.subr.bf16.mxu0 %v673
  %962 = vmatpush1.bf16.msra.mxu0 %v672
  %963 = vmatprep.subr.bf16.mxu0 %v677
  %964 = vmatpush1.bf16.msra.mxu0 %v676
  %965 = vmatprep.subr.bf16.mxu0 %v681
  %966 = vmatpush1.bf16.msra.mxu0 %v680
  %967 = vmatprep.subr.bf16.mxu0 %v685
  %968 = vmatpush1.bf16.msra.mxu0 %v684
  %969 = vmatprep.mubr.bf16.mxu0 %v169
  %970 = vmatmul.mubr.bf16.gmra.mrb[0].mxu0 %v168
  %v971 = vpop.f32.mrb[0].mxu0
  %v972 = vadd.f32 %v931, %v971
  %v973 = vpop.f32.mrb[0].mxu0
  %v974 = vadd.f32 %v933, %v973
  %v975 = vpop.f32.mrb[0].mxu0
  %v976 = vpop.f32.mrb[0].mxu0
  %977 = vdwg.mxu0
  %v978 = vadd.f32 %v26, %v890
  %v979 = vadd.f32 %v27, %v892
  %v980 = vadd.f32 %v28, %v972
  %v981 = vadd.f32 %v29, %v974
  %982 = vst [vmem:[#allocation2] sm:$0xff] %v978
  %983 = vst [vmem:[#allocation2 + $0x8] sm:$0xff] %v979
  %984 = vst [vmem:[#allocation2 + $0x10] sm:$0xff] %v980
  %985 = vst [vmem:[#allocation2 + $0x18] sm:$0xff] %v981
  // Predicated region
  $region22: #{vae_forward.14} parent=0 // pred_check
    %p986 = pneg %p18
  $region23: #{vae_forward.14} parent=0 // pred_check_branch
    %988 = sbr.rel (%p986) target = $region25
  $region24: #{vae_forward.14} parent=0 // pred_region
    %v989 = vld [vmem:[#allocation2] sm:$0xff]
    %v990 = vld [vmem:[#allocation2 + $0x8] sm:$0xff]
    %v991 = vld [vmem:[#allocation2 + $0x10] sm:$0xff]
    %v992 = vld [vmem:[#allocation2 + $0x18] sm:$0xff]
    %v993 = vld [vmem:[%s3] sm:$0xf]
    %v995 = vlaneseq
    %v996 = vshrl.u32 %v995, 7
    %v997 = vsub.s32 0, %v996
    %v998 = vrot.slane %v993, %v997
    %v999 = vlaneseq
    %v1000 = vshrl.u32 %v999, 7
    %v1001 = vsub.s32 1, %v1000
    %v1002 = vrot.slane %v993, %v1001
    %v1003 = vlaneseq
    %v1004 = vshrl.u32 %v1003, 7
    %v1005 = vsub.s32 2, %v1004
    %v1006 = vrot.slane %v993, %v1005
    %v1007 = vlaneseq
    %v1008 = vshrl.u32 %v1007, 7
    %v1009 = vsub.s32 3, %v1008
    %v1010 = vrot.slane %v993, %v1009
    %v1015 = vadd.f32 %v989, %v998
    %v1016 = vadd.f32 %v990, %v1002
    %v1017 = vadd.f32 %v991, %v1006
    %v1018 = vadd.f32 %v992, %v1010
    %s1019 = sld [smem:[#allocation3]]
    %v1020 = vstv %s1019
    %v1021 = vmul.f32 %v1015, %v1020
    %v1022 = vmul.f32 %v1016, %v1020
    %v1023 = vmul.f32 %v1017, %v1020
    %v1024 = vmul.f32 %v1018, %v1020
    %v1025 = vxor.u32 %v1021, 2147483648
    %v1026 = vxor.u32 %v1022, 2147483648
    %v1027 = vxor.u32 %v1023, 2147483648
    %v1028 = vxor.u32 %v1024, 2147483648
    %v1029 = vmul.f32 %v1025, 1.442695
    %v1030 = vpow.pop %v1029
    %v1031 = vmul.f32 %v1026, 1.442695
    %v1032 = vpow.pop %v1031
    %v1033 = vmul.f32 %v1027, 1.442695
    %v1034 = vpow.pop %v1033
    %v1035 = vmul.f32 %v1028, 1.442695
    %v1036 = vpow.pop %v1035
    %v1037 = vadd.f32 %v1030, 1.0
    %v1038 = vadd.f32 %v1032, 1.0
    %v1039 = vadd.f32 %v1034, 1.0
    %v1040 = vadd.f32 %v1036, 1.0
    %v1041 = vrcp.pop %v1037
    %v1042 = vmul.f32 1.0, %v1041
    %v1043 = vrcp.pop %v1038
    %v1044 = vmul.f32 1.0, %v1043
    %v1045 = vrcp.pop %v1039
    %v1046 = vmul.f32 1.0, %v1045
    %v1047 = vrcp.pop %v1040
    %v1048 = vmul.f32 1.0, %v1047
    %1049 = vst [vmem:[%s4] sm:$0xff] %v1042
    %1050 = vst [vmem:[%s4 + $0x8] sm:$0xff] %v1044
    %1051 = vst [vmem:[%s4 + $0x10] sm:$0xff] %v1046
    %1052 = vst [vmem:[%s4 + $0x18] sm:$0xff] %v1048
  $region25: #{vae_forward.14} parent=0 // pred_fallthru
    _
  // Predicated region
  $region26: #{vae_forward.14} parent=0 // pred_check
    _
  $region27: #{vae_forward.14} parent=0 // pred_check_branch
    %1054 = sbr.rel (0) target = $region29
  $region28: #{vae_forward.14} parent=0 // pred_region
    _
  $region29: #{vae_forward.14} parent=0 // pred_fallthru
    _
  // Predicated region
  $region30: #{vae_forward.14} parent=0 // pred_check
    _
  $region31: #{vae_forward.14} parent=0 // pred_check_branch
    %1056 = sbr.rel (0) target = $region33
  $region32: #{vae_forward.14} parent=0 // pred_region
    _
  $region33: #{vae_forward.14} parent=0 // pred_fallthru
    _

// kernel: vae_forward.16
$region0: #{vae_forward.16}
  #allocation0 [shape = 'u32[]', space=smem, size = 0x4, offset = 0x4, fixed_abs, tag = 'smem constant byte address 0x4 - core index']
  #allocation1 [shape = 'u32[144,128]{1,0:T(1,128)}', space=vmem, size = 0x12000, scoped, tag = 'internal scratch']
  #allocation2 [shape = 'f32[8,128]{1,0:T(8,128)}', space=vmem, size = 0x1000, scoped, tag = 'scratch operand']
  #allocation3 [shape = 'f32[1]{0:T(128)S(6)}', space=smem, size = 0x200, scoped, tag = 'scoped memory for vae_forward.16']
  %s0 = inlined_call_operand.<no memory space> [shape: f32[1], index: 0, kind: input, shape index: {}]
  %s1 = inlined_call_operand.vmem [shape: bf16[8,512], index: 1, kind: input, shape index: {}]
  %s2 = inlined_call_operand.vmem [shape: bf16[512,128], index: 2, kind: input, shape index: {}]
  %s3 = inlined_call_operand.vmem [shape: f32[1,128], index: 3, kind: input, shape index: {}]
  %s4 = inlined_call_operand.vmem [shape: f32[8,128], index: 4, kind: output, shape index: {}]
  %s5 = sld [smem:[#allocation0]]
  $region34: #{vae_forward.16} parent=0
    _
  %s7 = ssub.s32 1, %s5
  %s8 = scalar_select 0, %s7, %s5
  %9 = sst [smem:[#allocation3]] %s0
  // Predicated region
  $region2: #{vae_forward.16} parent=0 // pred_check
    _
  $region3: #{vae_forward.16} parent=0 // pred_check_branch
    %11 = sbr.rel (0) target = $region5
  $region4: #{vae_forward.16} parent=0 // pred_region
    _
  $region5: #{vae_forward.16} parent=0 // pred_fallthru
    _
  // Predicated region
  $region6: #{vae_forward.16} parent=0 // pred_check
    _
  $region7: #{vae_forward.16} parent=0 // pred_check_branch
    %13 = sbr.rel (0) target = $region9
  $region8: #{vae_forward.16} parent=0 // pred_region
    _
  $region9: #{vae_forward.16} parent=0 // pred_fallthru
    _
  // Predicated region
  $region10: #{vae_forward.16} parent=0 // pred_check
    _
  $region11: #{vae_forward.16} parent=0 // pred_check_branch
    %15 = sbr.rel (0) target = $region13
  $region12: #{vae_forward.16} parent=0 // pred_region
    _
  $region13: #{vae_forward.16} parent=0 // pred_fallthru
    _
  // Predicated region
  $region14: #{vae_forward.16} parent=0 // pred_check
    _
  $region15: #{vae_forward.16} parent=0 // pred_check_branch
    %17 = sbr.rel (0) target = $region17
  $region16: #{vae_forward.16} parent=0 // pred_region
    _
  $region17: #{vae_forward.16} parent=0 // pred_fallthru
    _
  %p19 = scmp.eq.s32.totalorder 0, 0
  // Predicated region
  $region18: #{vae_forward.16} parent=0 // pred_check
    %p20 = pneg %p19
  $region19: #{vae_forward.16} parent=0 // pred_check_branch
    %22 = sbr.rel (%p20) target = $region21
  $region20: #{vae_forward.16} parent=0 // pred_region
    %23 = vst [vmem:[#allocation2] sm:$0xff] 0.0
  $region21: #{vae_forward.16} parent=0 // pred_fallthru
    _
  %v24 = vld [vmem:[#allocation2] sm:$0xff]
  %v25 = vld [vmem:[%s1] sm:$0xff]
  %v26 = vld [vmem:[%s1 + $0x8] sm:$0xff]
  %v27 = vld [vmem:[%s2] sm:$0xf]
  %v28 = vld [vmem:[%s2 + $0x4] sm:$0xf]
  %v29 = vld [vmem:[%s2 + $0x8] sm:$0xf]
  %v30 = vld [vmem:[%s2 + $0xc] sm:$0xf]
  %v31 = vld [vmem:[%s2 + $0x10] sm:$0xf]
  %v32 = vld [vmem:[%s2 + $0x14] sm:$0xf]
  %v33 = vld [vmem:[%s2 + $0x18] sm:$0xf]
  %v34 = vld [vmem:[%s2 + $0x1c] sm:$0xf]
  %v35 = vld [vmem:[%s2 + $0x20] sm:$0xf]
  %v36 = vld [vmem:[%s2 + $0x24] sm:$0xf]
  %v37 = vld [vmem:[%s2 + $0x28] sm:$0xf]
  %v38 = vld [vmem:[%s2 + $0x2c] sm:$0xf]
  %v39 = vld [vmem:[%s2 + $0x30] sm:$0xf]
  %v40 = vld [vmem:[%s2 + $0x34] sm:$0xf]
  %v41 = vld [vmem:[%s2 + $0x38] sm:$0xf]
  %v42 = vld [vmem:[%s2 + $0x3c] sm:$0xf]
  %v43 = vld [vmem:[%s2 + $0x40] sm:$0xf]
  %v44 = vld [vmem:[%s2 + $0x44] sm:$0xf]
  %v45 = vld [vmem:[%s2 + $0x48] sm:$0xf]
  %v46 = vld [vmem:[%s2 + $0x4c] sm:$0xf]
  %v47 = vld [vmem:[%s2 + $0x50] sm:$0xf]
  %v48 = vld [vmem:[%s2 + $0x54] sm:$0xf]
  %v49 = vld [vmem:[%s2 + $0x58] sm:$0xf]
  %v50 = vld [vmem:[%s2 + $0x5c] sm:$0xf]
  %v51 = vld [vmem:[%s2 + $0x60] sm:$0xf]
  %v52 = vld [vmem:[%s2 + $0x64] sm:$0xf]
  %v53 = vld [vmem:[%s2 + $0x68] sm:$0xf]
  %v54 = vld [vmem:[%s2 + $0x6c] sm:$0xf]
  %v55 = vld [vmem:[%s2 + $0x70] sm:$0xf]
  %v56 = vld [vmem:[%s2 + $0x74] sm:$0xf]
  %v57 = vld [vmem:[%s2 + $0x78] sm:$0xf]
  %v58 = vld [vmem:[%s2 + $0x7c] sm:$0xf]
  %v59 = vld [vmem:[%s2 + $0x80] sm:$0xf]
  %v60 = vld [vmem:[%s2 + $0x84] sm:$0xf]
  %v61 = vld [vmem:[%s2 + $0x88] sm:$0xf]
  %v62 = vld [vmem:[%s2 + $0x8c] sm:$0xf]
  %v63 = vld [vmem:[%s2 + $0x90] sm:$0xf]
  %v64 = vld [vmem:[%s2 + $0x94] sm:$0xf]
  %v65 = vld [vmem:[%s2 + $0x98] sm:$0xf]
  %v66 = vld [vmem:[%s2 + $0x9c] sm:$0xf]
  %v67 = vld [vmem:[%s2 + $0xa0] sm:$0xf]
  %v68 = vld [vmem:[%s2 + $0xa4] sm:$0xf]
  %v69 = vld [vmem:[%s2 + $0xa8] sm:$0xf]
  %v70 = vld [vmem:[%s2 + $0xac] sm:$0xf]
  %v71 = vld [vmem:[%s2 + $0xb0] sm:$0xf]
  %v72 = vld [vmem:[%s2 + $0xb4] sm:$0xf]
  %v73 = vld [vmem:[%s2 + $0xb8] sm:$0xf]
  %v74 = vld [vmem:[%s2 + $0xbc] sm:$0xf]
  %v75 = vld [vmem:[%s2 + $0xc0] sm:$0xf]
  %v76 = vld [vmem:[%s2 + $0xc4] sm:$0xf]
  %v77 = vld [vmem:[%s2 + $0xc8] sm:$0xf]
  %v78 = vld [vmem:[%s2 + $0xcc] sm:$0xf]
  %v79 = vld [vmem:[%s2 + $0xd0] sm:$0xf]
  %v80 = vld [vmem:[%s2 + $0xd4] sm:$0xf]
  %v81 = vld [vmem:[%s2 + $0xd8] sm:$0xf]
  %v82 = vld [vmem:[%s2 + $0xdc] sm:$0xf]
  %v83 = vld [vmem:[%s2 + $0xe0] sm:$0xf]
  %v84 = vld [vmem:[%s2 + $0xe4] sm:$0xf]
  %v85 = vld [vmem:[%s2 + $0xe8] sm:$0xf]
  %v86 = vld [vmem:[%s2 + $0xec] sm:$0xf]
  %v87 = vld [vmem:[%s2 + $0xf0] sm:$0xf]
  %v88 = vld [vmem:[%s2 + $0xf4] sm:$0xf]
  %v89 = vld [vmem:[%s2 + $0xf8] sm:$0xf]
  %v90 = vld [vmem:[%s2 + $0xfc] sm:$0xf]
  %v93 = vunpack.c.l.b16 %v25
  %v94 = vunpack.c.h.b16 %v25
  %v95 = vunpack.c.l.b16 %v26
  %v96 = vunpack.c.h.b16 %v26
  %v97 = vpack.c.b16 %v93, %v93
  %v98 = vpack.c.b16 %v94, %v94
  %v99 = vpack.c.b16 %v95, %v95
  %v100 = vpack.c.b16 %v96, %v96
  %v169 = vunpack.c.l.b16 %v27
  %v170 = vunpack.c.l.b16 %v28
  %v171 = vunpack.c.l.b16 %v29
  %v172 = vunpack.c.l.b16 %v30
  %v173 = vunpack.c.l.b16 %v31
  %v174 = vunpack.c.l.b16 %v32
  %v175 = vunpack.c.l.b16 %v33
  %v176 = vunpack.c.l.b16 %v34
  %v177 = vunpack.c.l.b16 %v35
  %v178 = vunpack.c.l.b16 %v36
  %v179 = vunpack.c.l.b16 %v37
  %v180 = vunpack.c.l.b16 %v38
  %v181 = vunpack.c.l.b16 %v39
  %v182 = vunpack.c.l.b16 %v40
  %v183 = vunpack.c.l.b16 %v41
  %v184 = vunpack.c.l.b16 %v42
  %v185 = vunpack.c.l.b16 %v43
  %v186 = vunpack.c.l.b16 %v44
  %v187 = vunpack.c.l.b16 %v45
  %v188 = vunpack.c.l.b16 %v46
  %v189 = vunpack.c.l.b16 %v47
  %v190 = vunpack.c.l.b16 %v48
  %v191 = vunpack.c.l.b16 %v49
  %v192 = vunpack.c.l.b16 %v50
  %v193 = vunpack.c.l.b16 %v51
  %v194 = vunpack.c.l.b16 %v52
  %v195 = vunpack.c.l.b16 %v53
  %v196 = vunpack.c.l.b16 %v54
  %v197 = vunpack.c.l.b16 %v55
  %v198 = vunpack.c.l.b16 %v56
  %v199 = vunpack.c.l.b16 %v57
  %v200 = vunpack.c.l.b16 %v58
  %v201 = vunpack.c.l.b16 %v59
  %v202 = vunpack.c.l.b16 %v60
  %v203 = vunpack.c.l.b16 %v61
  %v204 = vunpack.c.l.b16 %v62
  %v205 = vunpack.c.l.b16 %v63
  %v206 = vunpack.c.l.b16 %v64
  %v207 = vunpack.c.l.b16 %v65
  %v208 = vunpack.c.l.b16 %v66
  %v209 = vunpack.c.l.b16 %v67
  %v210 = vunpack.c.l.b16 %v68
  %v211 = vunpack.c.l.b16 %v69
  %v212 = vunpack.c.l.b16 %v70
  %v213 = vunpack.c.l.b16 %v71
  %v214 = vunpack.c.l.b16 %v72
  %v215 = vunpack.c.l.b16 %v73
  %v216 = vunpack.c.l.b16 %v74
  %v217 = vunpack.c.l.b16 %v75
  %v218 = vunpack.c.l.b16 %v76
  %v219 = vunpack.c.l.b16 %v77
  %v220 = vunpack.c.l.b16 %v78
  %v221 = vunpack.c.l.b16 %v79
  %v222 = vunpack.c.l.b16 %v80
  %v223 = vunpack.c.l.b16 %v81
  %v224 = vunpack.c.l.b16 %v82
  %v225 = vunpack.c.l.b16 %v83
  %v226 = vunpack.c.l.b16 %v84
  %v227 = vunpack.c.l.b16 %v85
  %v228 = vunpack.c.l.b16 %v86
  %v229 = vunpack.c.l.b16 %v87
  %v230 = vunpack.c.l.b16 %v88
  %v231 = vunpack.c.l.b16 %v89
  %v232 = vunpack.c.l.b16 %v90
  %v233 = vpack.c.b16 %v170, %v169
  %v234 = vpack.c.b16 %v172, %v171
  %v235 = vpack.c.b16 %v174, %v173
  %v236 = vpack.c.b16 %v176, %v175
  %v237 = vpack.c.b16 %v178, %v177
  %v238 = vpack.c.b16 %v180, %v179
  %v239 = vpack.c.b16 %v182, %v181
  %v240 = vpack.c.b16 %v184, %v183
  %v241 = vpack.c.b16 %v186, %v185
  %v242 = vpack.c.b16 %v188, %v187
  %v243 = vpack.c.b16 %v190, %v189
  %v244 = vpack.c.b16 %v192, %v191
  %v245 = vpack.c.b16 %v194, %v193
  %v246 = vpack.c.b16 %v196, %v195
  %v247 = vpack.c.b16 %v198, %v197
  %v248 = vpack.c.b16 %v200, %v199
  %v249 = vpack.c.b16 %v202, %v201
  %v250 = vpack.c.b16 %v204, %v203
  %v251 = vpack.c.b16 %v206, %v205
  %v252 = vpack.c.b16 %v208, %v207
  %v253 = vpack.c.b16 %v210, %v209
  %v254 = vpack.c.b16 %v212, %v211
  %v255 = vpack.c.b16 %v214, %v213
  %v256 = vpack.c.b16 %v216, %v215
  %v257 = vpack.c.b16 %v218, %v217
  %v258 = vpack.c.b16 %v220, %v219
  %v259 = vpack.c.b16 %v222, %v221
  %v260 = vpack.c.b16 %v224, %v223
  %v261 = vpack.c.b16 %v226, %v225
  %v262 = vpack.c.b16 %v228, %v227
  %v263 = vpack.c.b16 %v230, %v229
  %v264 = vpack.c.b16 %v232, %v231
  %297 = vmatprep.subr.bf16.mxu0 0
  %298 = vmatpush1.bf16.msra.mxu0 %v233
  %299 = vmatprep.subr.bf16.mxu0 0
  %300 = vmatpush1.bf16.msra.mxu0 %v234
  %301 = vmatprep.subr.bf16.mxu0 0
  %302 = vmatpush1.bf16.msra.mxu0 %v235
  %303 = vmatprep.subr.bf16.mxu0 0
  %304 = vmatpush1.bf16.msra.mxu0 %v236
  %305 = vmatprep.subr.bf16.mxu0 0
  %306 = vmatpush1.bf16.msra.mxu0 %v237
  %307 = vmatprep.subr.bf16.mxu0 0
  %308 = vmatpush1.bf16.msra.mxu0 %v238
  %309 = vmatprep.subr.bf16.mxu0 0
  %310 = vmatpush1.bf16.msra.mxu0 %v239
  %311 = vmatprep.subr.bf16.mxu0 0
  %312 = vmatpush1.bf16.msra.mxu0 %v240
  %313 = vmatprep.subr.bf16.mxu0 0
  %314 = vmatpush1.bf16.msra.mxu0 %v241
  %315 = vmatprep.subr.bf16.mxu0 0
  %316 = vmatpush1.bf16.msra.mxu0 %v242
  %317 = vmatprep.subr.bf16.mxu0 0
  %318 = vmatpush1.bf16.msra.mxu0 %v243
  %319 = vmatprep.subr.bf16.mxu0 0
  %320 = vmatpush1.bf16.msra.mxu0 %v244
  %321 = vmatprep.subr.bf16.mxu0 0
  %322 = vmatpush1.bf16.msra.mxu0 %v245
  %323 = vmatprep.subr.bf16.mxu0 0
  %324 = vmatpush1.bf16.msra.mxu0 %v246
  %325 = vmatprep.subr.bf16.mxu0 0
  %326 = vmatpush1.bf16.msra.mxu0 %v247
  %327 = vmatprep.subr.bf16.mxu0 0
  %328 = vmatpush1.bf16.msra.mxu0 %v248
  %329 = vmatprep.mubr.bf16.mxu0 %v98
  %330 = vmatmul.mubr.bf16.gmra.mrb[0].mxu0 %v97
  %v331 = vpop.f32.mrb[0].mxu0
  %v332 = vadd.f32 0.0, %v331
  %v333 = vpop.f32.mrb[0].mxu0
  %v334 = vpop.f32.mrb[0].mxu0
  %v335 = vpop.f32.mrb[0].mxu0
  %336 = vdwg.mxu0
  %337 = vmatprep.subr.bf16.mxu0 0
  %338 = vmatpush1.bf16.msra.mxu0 %v249
  %339 = vmatprep.subr.bf16.mxu0 0
  %340 = vmatpush1.bf16.msra.mxu0 %v250
  %341 = vmatprep.subr.bf16.mxu0 0
  %342 = vmatpush1.bf16.msra.mxu0 %v251
  %343 = vmatprep.subr.bf16.mxu0 0
  %344 = vmatpush1.bf16.msra.mxu0 %v252
  %345 = vmatprep.subr.bf16.mxu0 0
  %346 = vmatpush1.bf16.msra.mxu0 %v253
  %347 = vmatprep.subr.bf16.mxu0 0
  %348 = vmatpush1.bf16.msra.mxu0 %v254
  %349 = vmatprep.subr.bf16.mxu0 0
  %350 = vmatpush1.bf16.msra.mxu0 %v255
  %351 = vmatprep.subr.bf16.mxu0 0
  %352 = vmatpush1.bf16.msra.mxu0 %v256
  %353 = vmatprep.subr.bf16.mxu0 0
  %354 = vmatpush1.bf16.msra.mxu0 %v257
  %355 = vmatprep.subr.bf16.mxu0 0
  %356 = vmatpush1.bf16.msra.mxu0 %v258
  %357 = vmatprep.subr.bf16.mxu0 0
  %358 = vmatpush1.bf16.msra.mxu0 %v259
  %359 = vmatprep.subr.bf16.mxu0 0
  %360 = vmatpush1.bf16.msra.mxu0 %v260
  %361 = vmatprep.subr.bf16.mxu0 0
  %362 = vmatpush1.bf16.msra.mxu0 %v261
  %363 = vmatprep.subr.bf16.mxu0 0
  %364 = vmatpush1.bf16.msra.mxu0 %v262
  %365 = vmatprep.subr.bf16.mxu0 0
  %366 = vmatpush1.bf16.msra.mxu0 %v263
  %367 = vmatprep.subr.bf16.mxu0 0
  %368 = vmatpush1.bf16.msra.mxu0 %v264
  %369 = vmatprep.mubr.bf16.mxu0 %v100
  %370 = vmatmul.mubr.bf16.gmra.mrb[0].mxu0 %v99
  %v371 = vpop.f32.mrb[0].mxu0
  %v372 = vadd.f32 %v332, %v371
  %v373 = vpop.f32.mrb[0].mxu0
  %v374 = vpop.f32.mrb[0].mxu0
  %v375 = vpop.f32.mrb[0].mxu0
  %376 = vdwg.mxu0
  %v377 = vadd.f32 %v24, %v372
  %378 = vst [vmem:[#allocation2] sm:$0xff] %v377
  // Predicated region
  $region22: #{vae_forward.16} parent=0 // pred_check
    %p379 = pneg %p19
  $region23: #{vae_forward.16} parent=0 // pred_check_branch
    %381 = sbr.rel (%p379) target = $region25
  $region24: #{vae_forward.16} parent=0 // pred_region
    %v382 = vld [vmem:[#allocation2] sm:$0xff]
    %v383 = vld [vmem:[%s3] sm:$0x1]
    %v385 = vlaneseq
    %v386 = vshrl.u32 %v385, 7
    %v387 = vsub.s32 0, %v386
    %v388 = vrot.slane %v383, %v387
    %v390 = vadd.f32 %v382, %v388
    %s391 = sld [smem:[#allocation3]]
    %v392 = vstv %s391
    %v393 = vmul.f32 %v390, %v392
    %394 = vst [vmem:[%s4] sm:$0xff] %v393
  $region25: #{vae_forward.16} parent=0 // pred_fallthru
    _
  // Predicated region
  $region26: #{vae_forward.16} parent=0 // pred_check
    _
  $region27: #{vae_forward.16} parent=0 // pred_check_branch
    %396 = sbr.rel (0) target = $region29
  $region28: #{vae_forward.16} parent=0 // pred_region
    _
  $region29: #{vae_forward.16} parent=0 // pred_fallthru
    _
  // Predicated region
  $region30: #{vae_forward.16} parent=0 // pred_check
    _
  $region31: #{vae_forward.16} parent=0 // pred_check_branch
    %398 = sbr.rel (0) target = $region33
  $region32: #{vae_forward.16} parent=0 // pred_region
    _
  $region33: #{vae_forward.16} parent=0 // pred_fallthru
    _

// kernel: vae_forward.17
$region0: #{vae_forward.17}
  #allocation0 [shape = 'u32[]', space=smem, size = 0x4, offset = 0x4, fixed_abs, tag = 'smem constant byte address 0x4 - core index']
  #allocation1 [shape = 'u32[144,128]{1,0:T(1,128)}', space=vmem, size = 0x12000, scoped, tag = 'internal scratch']
  %s0 = inlined_call_operand.vmem [shape: f32[2,8,16], index: 0, kind: input, shape index: {}]
  %s1 = inlined_call_operand.hbm [shape: f32[2,8,16], index: 1, kind: output, shape index: {}]
  %s2 = sld [smem:[#allocation0]]
  $region14: #{vae_forward.17} parent=0
    _
  %s4 = ssub.s32 1, %s2
  %s5 = scalar_select 0, %s4, %s2
  $region1: #{vae_forward.17} parent=0
    #allocation2 [shape = 'u8[8192]{0}', space=vmem, size = 0x2000, scoped, tag = 'output window, operand 0, single buffered']
    #allocation3 [shape = 's32[1]{0}', space=sflag, size = 0x4, scoped, tag = 'scoped memory for vae_forward.17']
    %6 = vsyncpa [#allocation3], 0
    // Predicated region
    $region2: #{vae_forward.17} parent=1 // pred_check
      _
    $region3: #{vae_forward.17} parent=1 // pred_check_branch
      %8 = sbr.rel (0) target = $region5
    $region4: #{vae_forward.17} parent=1 // pred_region
      _
    $region5: #{vae_forward.17} parent=1 // pred_fallthru
      _
    %v9 = vld [vmem:[%s0] sm:$0xff]
    %v10 = vld [vmem:[%s0 + $0x8] sm:$0xff]
    %vm11 = vcmask 130048
    %v12 = vsel %vm11, %v9, -inf
    %v13 = vrot.slane %v12, 4
    %v14 = vmax.f32 %v12, %v13
    %v15 = vrot.slane %v14, 2
    %v16 = vmax.f32 %v14, %v15
    %v17 = vrot.slane %v16, 1
    %v18 = vmax.f32 %v16, %v17
    %v19 = vsel %vm11, %v10, -inf
    %v20 = vrot.slane %v19, 4
    %v21 = vmax.f32 %v19, %v20
    %v22 = vrot.slane %v21, 2
    %v23 = vmax.f32 %v21, %v22
    %v24 = vrot.slane %v23, 1
    %v25 = vmax.f32 %v23, %v24
    %v26 = vsub.f32 %v9, %v18
    %v27 = vsub.f32 %v10, %v25
    %v28 = vmul.f32 %v26, 1.442695
    %v29 = vpow.pop %v28
    %v30 = vmul.f32 %v27, 1.442695
    %v31 = vpow.pop %v30
    %v32 = vsel %vm11, %v29, 0.0
    %v33 = vrot.slane %v32, 4
    %v34 = vadd.f32 %v32, %v33
    %v35 = vrot.slane %v34, 2
    %v36 = vadd.f32 %v34, %v35
    %v37 = vrot.slane %v36, 1
    %v38 = vadd.f32 %v36, %v37
    %v39 = vsel %vm11, %v31, 0.0
    %v40 = vrot.slane %v39, 4
    %v41 = vadd.f32 %v39, %v40
    %v42 = vrot.slane %v41, 2
    %v43 = vadd.f32 %v41, %v42
    %v44 = vrot.slane %v43, 1
    %v45 = vadd.f32 %v43, %v44
    %v46 = vlog2.pop %v38
    %v47 = vmul.f32 %v46, 0.6931472
    %v48 = vlog2.pop %v45
    %v49 = vmul.f32 %v48, 0.6931472
    %v50 = vadd.f32 %v47, %v18
    %v51 = vadd.f32 %v49, %v25
    %v52 = vsub.f32 %v9, %v50
    %v53 = vsub.f32 %v10, %v51
    %54 = vst.msk [vmem:[#allocation2] sm:$0xff] %vm11, %v52
    %55 = vst.msk [vmem:[#allocation2 + $0x8] sm:$0xff] %vm11, %v53
    // Predicated region
    $region6: #{vae_forward.17} parent=1 // pred_check
      _
    $region7: #{vae_forward.17} parent=1 // pred_check_branch
      %57 = sbr.rel (0) target = $region9
    $region8: #{vae_forward.17} parent=1 // pred_region
      %s59 = ssub.s32 256, 256
      %60 = vsyncadd [#allocation3], %s59
      %s61 = sshll.u32 [#allocation2], 4
      %s62 = int_to_ptr.vmem [resolvable:$true] %s61
      %67 = dma.vmem_to_hbm [thread:$0]  %s62, 256, %s1, [#allocation3], 128, 128, 8
    $region9: #{vae_forward.17} parent=1 // pred_fallthru
      _
    // Predicated region
    $region10: #{vae_forward.17} parent=1 // pred_check
      _
    $region11: #{vae_forward.17} parent=1 // pred_check_branch
      %69 = sbr.rel (0) target = $region13
    $region12: #{vae_forward.17} parent=1 // pred_region
      %70 = dma.done [#allocation3], 256
    $region13: #{vae_forward.17} parent=1 // pred_fallthru
      _
    %71 = vsyncpa [#allocation3], 1

</llo_original>
